<compile_context>
chip_gen: v7x
topology: tpu7x:2x2x1
jax: 0.10.0
libtpu: 0.0.40
codegen_flags: <defaults>
</compile_context>

<pallas_src>
import math
import numpy as np

import jax
import jax.numpy as jnp
from jax.experimental import pallas as pl
from jax.experimental.pallas import tpu as pltpu


# ----------------------------------------------------------------------------
# Fused Pallas kernel
# ----------------------------------------------------------------------------
def _lstm_cell(gates, c, H):
    """PyTorch LSTM cell: gate order i, f, g, o."""
    i = jax.nn.sigmoid(gates[:, 0:H])
    f = jax.nn.sigmoid(gates[:, H:2 * H])
    g = jnp.tanh(gates[:, 2 * H:3 * H])
    o = jax.nn.sigmoid(gates[:, 3 * H:4 * H])
    c_new = f * c + i * g
    h_new = o * jnp.tanh(c_new)
    return h_new, c_new


def _run_bidir_layer(xw_f, whh_f, xw_b, whh_b, B, T, H, h1_scr=None):
    """Run fwd+bwd recurrences together (independent MXU chains per step).

    xw_*  : (T*B, 4H) precomputed input projection (+ bias), time-major rows.
    whh_* : (H, 4H) recurrent weights (values, loaded once).
    If h1_scr is given, per-t hidden states are stored into it
    ((T*B, 2H): fwd in lanes [0:H], bwd in lanes [H:2H]).
    Otherwise returns the running max over time per direction ((B,H) each).
    """
    zero = jnp.zeros((B, H), jnp.float32)
    h_f, c_f, h_b, c_b = zero, zero, zero, zero
    rep_f = rep_b = None
    for s in range(T):                      # fully unrolled, static indices
        tf_, tb = s, T - 1 - s
        g_f = xw_f[tf_ * B:(tf_ + 1) * B, :] + jnp.dot(
            h_f, whh_f, preferred_element_type=jnp.float32)
        g_b = xw_b[tb * B:(tb + 1) * B, :] + jnp.dot(
            h_b, whh_b, preferred_element_type=jnp.float32)
        h_f, c_f = _lstm_cell(g_f, c_f, H)
        h_b, c_b = _lstm_cell(g_b, c_b, H)
        if h1_scr is not None:
            h1_scr[tf_ * B:(tf_ + 1) * B, 0:H] = h_f
            h1_scr[tb * B:(tb + 1) * B, H:2 * H] = h_b
        else:
            rep_f = h_f if rep_f is None else jnp.maximum(rep_f, h_f)
            rep_b = h_b if rep_b is None else jnp.maximum(rep_b, h_b)
    return rep_f, rep_b


def _lstm_score_kernel(tok_ref, emb_ref,
                       wih_f1_ref, whh_f1_ref, bf1_ref,
                       wih_b1_ref, whh_b1_ref, bb1_ref,
                       wih_f2_ref, whh_f2_ref, bf2_ref,
                       wih_b2_ref, whh_b2_ref, bb2_ref,
                       w1_ref, b1_ref, w2_ref, b2_ref, w3_ref, b3_ref,
                       out_ref, h1_scr):
    f32 = jnp.float32
    Vp = emb_ref.shape[0]
    TB = tok_ref.shape[0]
    B = out_ref.shape[0]
    T = TB // B
    H = whh_f1_ref.shape[0]

    # --- embedding lookup as a one-hot matmul (gather-free, uses MXU) ------
    tok = tok_ref[...]                                                 # (T*B, 1)
    onehot = (tok == jax.lax.broadcasted_iota(jnp.int32, (TB, Vp), 1)).astype(f32)
    x = jnp.dot(onehot, emb_ref[...], preferred_element_type=f32)      # (T*B, E)

    # --- layer 1: input projection hoisted out of the recurrence ----------
    xw_f1 = jnp.dot(x, wih_f1_ref[...], preferred_element_type=f32) + bf1_ref[...]
    xw_b1 = jnp.dot(x, wih_b1_ref[...], preferred_element_type=f32) + bb1_ref[...]
    _run_bidir_layer(xw_f1, whh_f1_ref[...], xw_b1, whh_b1_ref[...],
                     B, T, H, h1_scr=h1_scr)
    h1 = h1_scr[...]                                                   # (T*B, 2H)

    # --- layer 2 (pool computed as running max inside the loop) -----------
    xw_f2 = jnp.dot(h1, wih_f2_ref[...], preferred_element_type=f32) + bf2_ref[...]
    xw_b2 = jnp.dot(h1, wih_b2_ref[...], preferred_element_type=f32) + bb2_ref[...]
    rep_f, rep_b = _run_bidir_layer(xw_f2, whh_f2_ref[...],
                                    xw_b2, whh_b2_ref[...], B, T, H)
    rep = jnp.concatenate([rep_f, rep_b], axis=-1)                     # (B, 2H)

    # --- Score MLP (dropout = identity in eval) ----------------------------
    z1 = jnp.maximum(
        jnp.dot(rep, w1_ref[...], preferred_element_type=f32) + b1_ref[...], 0.0)
    z2 = jnp.maximum(
        jnp.dot(z1, w2_ref[...], preferred_element_type=f32) + b2_ref[...], 0.0)
    out_ref[...] = (
        jnp.dot(z2, w3_ref[...], preferred_element_type=f32) + b3_ref[...])


def lstm_score_forward(tokens, params):
    """tokens: (B, T) int32 -> logits (B, 2). Entire model = one pallas_call."""
    B, T = tokens.shape
    emb = params["embedding"]
    V, E = emb.shape
    H = params["lstm"][0][0]["w_hh"].shape[0]

    # Tiny host/XLA-side prep only: time-major flatten of token ids and
    # zero-pad of the embedding rows to a sublane multiple (exact semantics:
    # padded rows are never selected since tokens < V).
    tok_flat = jnp.transpose(tokens, (1, 0)).reshape(T * B, 1)         # row = t*B + b
    V_pad = ((V + 7) // 8) * 8
    emb_p = jnp.pad(emb, ((0, V_pad - V), (0, 0)))

    (l1f, l1b), (l2f, l2b) = params["lstm"]
    s = params["score"]

    return pl.pallas_call(
        _lstm_score_kernel,
        out_shape=jax.ShapeDtypeStruct((B, 2), jnp.float32),
        scratch_shapes=[pltpu.VMEM((T * B, 2 * H), jnp.float32)],      # layer-1 h states
    )(tok_flat, emb_p,
      l1f["w_ih"], l1f["w_hh"], l1f["b"],
      l1b["w_ih"], l1b["w_hh"], l1b["b"],
      l2f["w_ih"], l2f["w_hh"], l2f["b"],
      l2b["w_ih"], l2b["w_hh"], l2b["b"],
      s["w1"], s["b1"], s["w2"], s["b2"], s["w3"], s["b3"])


# ----------------------------------------------------------------------------
# Pure-JAX reference (for correctness check)
# ----------------------------------------------------------------------------
def _ref_lstm_layer(x, w_ih, w_hh, b):
    T, B, _ = x.shape
    H = w_hh.shape[0]

    def step(carry, x_t):
        h, c = carry
        gates = x_t @ w_ih + h @ w_hh + b
        i = jax.nn.sigmoid(gates[:, 0:H])
        f = jax.nn.sigmoid(gates[:, H:2 * H])
        g = jnp.tanh(gates[:, 2 * H:3 * H])
        o = jax.nn.sigmoid(gates[:, 3 * H:4 * H])
        c = f * c + i * g
        h = o * jnp.tanh(c)
        return (h, c), h

    init = (jnp.zeros((B, H), jnp.float32), jnp.zeros((B, H), jnp.float32))
    _, hs = jax.lax.scan(step, init, x)
    return hs


def reference_forward(tokens, params):
    emb = params["embedding"][tokens]
    x = jnp.transpose(emb, (1, 0, 2))
    for layer_p in params["lstm"]:
        outs = []
        for d, p in enumerate(layer_p):
            xi = x if d == 0 else x[::-1]
            h = _ref_lstm_layer(xi, p["w_ih"], p["w_hh"], p["b"])
            if d == 1:
                h = h[::-1]
            outs.append(h)
        x = jnp.concatenate(outs, axis=-1)
    s = params["score"]
    rep = jnp.max(x, axis=0)
    h1 = jnp.maximum(rep @ s["w1"] + s["b1"], 0.0)
    h2 = jnp.maximum(h1 @ s["w2"] + s["b2"], 0.0)
    return h2 @ s["w3"] + s["b3"]


# ----------------------------------------------------------------------------
# Deterministic parameter init (shapes per LSTMScore.__init__)
# ----------------------------------------------------------------------------
def init_params(key, vocab=50, embed_dim=32, lstm_dim=32, score_dim=32,
                num_layers=2, bidir=True):
    num_dirs = 2 if bidir else 1
    keys = iter(jax.random.split(key, 64))

    def u(shape, scale):
        return jax.random.uniform(next(keys), shape, jnp.float32, -scale, scale)

    params = {"embedding": 0.1 * jax.random.normal(
        next(keys), (vocab, embed_dim), jnp.float32)}

    lstm = []
    k = 1.0 / math.sqrt(lstm_dim)
    for layer in range(num_layers):
        d_in = embed_dim if layer == 0 else lstm_dim * num_dirs
        dirs = []
        for _ in range(num_dirs):
            dirs.append({
                "w_ih": u((d_in, 4 * lstm_dim), k),
                "w_hh": u((lstm_dim, 4 * lstm_dim), k),
                "b": u((1, 4 * lstm_dim), k),        # b_ih + b_hh combined
            })
        lstm.append(dirs)
    params["lstm"] = lstm

    input_dim = lstm_dim * num_dirs
    k1 = 1.0 / math.sqrt(input_dim)
    k2 = 1.0 / math.sqrt(score_dim)
    params["score"] = {
        "w1": u((input_dim, score_dim), k1), "b1": u((1, score_dim), k1),
        "w2": u((score_dim, score_dim), k2), "b2": u((1, score_dim), k2),
        "w3": u((score_dim, 2), k2),         "b3": u((1, 2), k2),
    }
    return params


# ----------------------------------------------------------------------------
if __name__ == "__main__":
    key = jax.random.PRNGKey(0)
    pkey, tkey = jax.random.split(key)

    VOCAB, EMBED, LSTM_DIM, SCORE_DIM = 50, 32, 32, 32
    B, T = 2, 8                                  # 2 sentences, 8 tokens each

    params = init_params(pkey, vocab=VOCAB, embed_dim=EMBED,
                         lstm_dim=LSTM_DIM, score_dim=SCORE_DIM)
    tokens = jax.random.randint(tkey, (B, T), 0, VOCAB, dtype=jnp.int32)

    fwd = jax.jit(lstm_score_forward)
    out = jax.block_until_ready(fwd(tokens, params))
    assert out.shape == (B, 2)

    ref = jax.block_until_ready(reference_forward(tokens, params))
    np.testing.assert_allclose(np.asarray(out), np.asarray(ref),
                               rtol=2e-2, atol=2e-2)

    print("KERNEL_OK")
</pallas_src>

<mosaic_0001>
module attributes {stable_mosaic.version = 11 : i64} {
  func.func @_lstm_score_kernel(%arg0: memref<16x1xi32, #tpu.memory_space<vmem>>, %arg1: memref<56x32xf32, #tpu.memory_space<vmem>>, %arg2: memref<32x128xf32, #tpu.memory_space<vmem>>, %arg3: memref<32x128xf32, #tpu.memory_space<vmem>>, %arg4: memref<1x128xf32, #tpu.memory_space<vmem>>, %arg5: memref<32x128xf32, #tpu.memory_space<vmem>>, %arg6: memref<32x128xf32, #tpu.memory_space<vmem>>, %arg7: memref<1x128xf32, #tpu.memory_space<vmem>>, %arg8: memref<64x128xf32, #tpu.memory_space<vmem>>, %arg9: memref<32x128xf32, #tpu.memory_space<vmem>>, %arg10: memref<1x128xf32, #tpu.memory_space<vmem>>, %arg11: memref<64x128xf32, #tpu.memory_space<vmem>>, %arg12: memref<32x128xf32, #tpu.memory_space<vmem>>, %arg13: memref<1x128xf32, #tpu.memory_space<vmem>>, %arg14: memref<64x32xf32, #tpu.memory_space<vmem>>, %arg15: memref<1x32xf32, #tpu.memory_space<vmem>>, %arg16: memref<32x32xf32, #tpu.memory_space<vmem>>, %arg17: memref<1x32xf32, #tpu.memory_space<vmem>>, %arg18: memref<32x2xf32, #tpu.memory_space<vmem>>, %arg19: memref<1x2xf32, #tpu.memory_space<vmem>>, %arg20: memref<2x2xf32, #tpu.memory_space<vmem>>, %arg21: memref<16x64xf32, #tpu.memory_space<vmem>>) attributes {dimension_semantics = [], scalar_prefetch = 0 : i64, scratch_operands = 1 : i64, tpu.core_type = #tpu.core_type<tc>} {
    %c0 = arith.constant 0 : index
    %c0_0 = arith.constant 0 : index
    %0 = vector.load %arg0[%c0, %c0_0] : memref<16x1xi32, #tpu.memory_space<vmem>>, vector<16x1xi32>
    %1 = tpu.iota {dimensions = array<i32: 1>} : vector<16x56xi32>
    %2 = vector.broadcast %0 : vector<16x1xi32> to vector<16x56xi32>
    %3 = arith.cmpi eq, %2, %1 : vector<16x56xi32>
    %4 = arith.extui %3 : vector<16x56xi1> to vector<16x56xi32>
    %5 = arith.sitofp %4 : vector<16x56xi32> to vector<16x56xf32>
    %c0_1 = arith.constant 0 : index
    %c0_2 = arith.constant 0 : index
    %6 = vector.load %arg1[%c0_1, %c0_2] : memref<56x32xf32, #tpu.memory_space<vmem>>, vector<56x32xf32>
    %cst = arith.constant dense<0.000000e+00> : vector<16x32xf32>
    %7 = tpu.matmul %5, %6, %cst {dimension_numbers = #tpu.dot_dimension_numbers<[1], [0], [0], [1], [0, 0, 1, 1], [], []>} : vector<16x56xf32>, vector<56x32xf32>, vector<16x32xf32> -> vector<16x32xf32>
    %c0_3 = arith.constant 0 : index
    %c0_4 = arith.constant 0 : index
    %8 = vector.load %arg2[%c0_3, %c0_4] : memref<32x128xf32, #tpu.memory_space<vmem>>, vector<32x128xf32>
    %cst_5 = arith.constant dense<0.000000e+00> : vector<16x128xf32>
    %9 = tpu.matmul %7, %8, %cst_5 {dimension_numbers = #tpu.dot_dimension_numbers<[1], [0], [0], [1], [0, 0, 1, 1], [], []>} : vector<16x32xf32>, vector<32x128xf32>, vector<16x128xf32> -> vector<16x128xf32>
    %c0_6 = arith.constant 0 : index
    %c0_7 = arith.constant 0 : index
    %10 = vector.load %arg4[%c0_6, %c0_7] : memref<1x128xf32, #tpu.memory_space<vmem>>, vector<1x128xf32>
    %11 = vector.broadcast %10 : vector<1x128xf32> to vector<16x128xf32>
    %12 = arith.addf %9, %11 : vector<16x128xf32>
    %c0_8 = arith.constant 0 : index
    %c0_9 = arith.constant 0 : index
    %13 = vector.load %arg5[%c0_8, %c0_9] : memref<32x128xf32, #tpu.memory_space<vmem>>, vector<32x128xf32>
    %cst_10 = arith.constant dense<0.000000e+00> : vector<16x128xf32>
    %14 = tpu.matmul %7, %13, %cst_10 {dimension_numbers = #tpu.dot_dimension_numbers<[1], [0], [0], [1], [0, 0, 1, 1], [], []>} : vector<16x32xf32>, vector<32x128xf32>, vector<16x128xf32> -> vector<16x128xf32>
    %c0_11 = arith.constant 0 : index
    %c0_12 = arith.constant 0 : index
    %15 = vector.load %arg7[%c0_11, %c0_12] : memref<1x128xf32, #tpu.memory_space<vmem>>, vector<1x128xf32>
    %16 = vector.broadcast %15 : vector<1x128xf32> to vector<16x128xf32>
    %17 = arith.addf %14, %16 : vector<16x128xf32>
    %c0_13 = arith.constant 0 : index
    %c0_14 = arith.constant 0 : index
    %18 = vector.load %arg3[%c0_13, %c0_14] : memref<32x128xf32, #tpu.memory_space<vmem>>, vector<32x128xf32>
    %c0_15 = arith.constant 0 : index
    %c0_16 = arith.constant 0 : index
    %19 = vector.load %arg6[%c0_15, %c0_16] : memref<32x128xf32, #tpu.memory_space<vmem>>, vector<32x128xf32>
    %cst_17 = arith.constant 0.000000e+00 : f32
    %20 = vector.broadcast %cst_17 : f32 to vector<2x32xf32>
    %21 = vector.extract_strided_slice %12 {offsets = [0, 0], sizes = [2, 128], strides = [1, 1]} : vector<16x128xf32> to vector<2x128xf32>
    %cst_18 = arith.constant dense<0.000000e+00> : vector<2x128xf32>
    %22 = tpu.matmul %20, %18, %cst_18 {dimension_numbers = #tpu.dot_dimension_numbers<[1], [0], [0], [1], [0, 0, 1, 1], [], []>} : vector<2x32xf32>, vector<32x128xf32>, vector<2x128xf32> -> vector<2x128xf32>
    %23 = arith.addf %21, %22 : vector<2x128xf32>
    %24 = vector.extract_strided_slice %17 {offsets = [14, 0], sizes = [2, 128], strides = [1, 1]} : vector<16x128xf32> to vector<2x128xf32>
    %cst_19 = arith.constant dense<0.000000e+00> : vector<2x128xf32>
    %25 = tpu.matmul %20, %19, %cst_19 {dimension_numbers = #tpu.dot_dimension_numbers<[1], [0], [0], [1], [0, 0, 1, 1], [], []>} : vector<2x32xf32>, vector<32x128xf32>, vector<2x128xf32> -> vector<2x128xf32>
    %26 = arith.addf %24, %25 : vector<2x128xf32>
    %27 = vector.extract_strided_slice %23 {offsets = [0, 0], sizes = [2, 32], strides = [1, 1]} : vector<2x128xf32> to vector<2x32xf32>
    %28 = arith.negf %27 : vector<2x32xf32>
    %29 = math.exp %28 : vector<2x32xf32>
    %cst_20 = arith.constant 1.000000e+00 : f32
    %30 = vector.broadcast %cst_20 : f32 to vector<2x32xf32>
    %31 = arith.addf %30, %29 : vector<2x32xf32>
    %32 = arith.divf %30, %31 : vector<2x32xf32>
    %33 = vector.extract_strided_slice %23 {offsets = [0, 32], sizes = [2, 32], strides = [1, 1]} : vector<2x128xf32> to vector<2x32xf32>
    %34 = arith.negf %33 : vector<2x32xf32>
    %35 = math.exp %34 : vector<2x32xf32>
    %cst_21 = arith.constant 1.000000e+00 : f32
    %36 = vector.broadcast %cst_21 : f32 to vector<2x32xf32>
    %37 = arith.addf %36, %35 : vector<2x32xf32>
    %38 = arith.divf %36, %37 : vector<2x32xf32>
    %39 = vector.extract_strided_slice %23 {offsets = [0, 64], sizes = [2, 32], strides = [1, 1]} : vector<2x128xf32> to vector<2x32xf32>
    %40 = math.tanh %39 : vector<2x32xf32>
    %41 = vector.extract_strided_slice %23 {offsets = [0, 96], sizes = [2, 32], strides = [1, 1]} : vector<2x128xf32> to vector<2x32xf32>
    %42 = arith.negf %41 : vector<2x32xf32>
    %43 = math.exp %42 : vector<2x32xf32>
    %cst_22 = arith.constant 1.000000e+00 : f32
    %44 = vector.broadcast %cst_22 : f32 to vector<2x32xf32>
    %45 = arith.addf %44, %43 : vector<2x32xf32>
    %46 = arith.divf %44, %45 : vector<2x32xf32>
    %47 = arith.mulf %38, %20 : vector<2x32xf32>
    %48 = arith.mulf %32, %40 : vector<2x32xf32>
    %49 = arith.addf %47, %48 : vector<2x32xf32>
    %50 = math.tanh %49 : vector<2x32xf32>
    %51 = arith.mulf %46, %50 : vector<2x32xf32>
    %52 = vector.extract_strided_slice %26 {offsets = [0, 0], sizes = [2, 32], strides = [1, 1]} : vector<2x128xf32> to vector<2x32xf32>
    %53 = arith.negf %52 : vector<2x32xf32>
    %54 = math.exp %53 : vector<2x32xf32>
    %cst_23 = arith.constant 1.000000e+00 : f32
    %55 = vector.broadcast %cst_23 : f32 to vector<2x32xf32>
    %56 = arith.addf %55, %54 : vector<2x32xf32>
    %57 = arith.divf %55, %56 : vector<2x32xf32>
    %58 = vector.extract_strided_slice %26 {offsets = [0, 32], sizes = [2, 32], strides = [1, 1]} : vector<2x128xf32> to vector<2x32xf32>
    %59 = arith.negf %58 : vector<2x32xf32>
    %60 = math.exp %59 : vector<2x32xf32>
    %cst_24 = arith.constant 1.000000e+00 : f32
    %61 = vector.broadcast %cst_24 : f32 to vector<2x32xf32>
    %62 = arith.addf %61, %60 : vector<2x32xf32>
    %63 = arith.divf %61, %62 : vector<2x32xf32>
    %64 = vector.extract_strided_slice %26 {offsets = [0, 64], sizes = [2, 32], strides = [1, 1]} : vector<2x128xf32> to vector<2x32xf32>
    %65 = math.tanh %64 : vector<2x32xf32>
    %66 = vector.extract_strided_slice %26 {offsets = [0, 96], sizes = [2, 32], strides = [1, 1]} : vector<2x128xf32> to vector<2x32xf32>
    %67 = arith.negf %66 : vector<2x32xf32>
    %68 = math.exp %67 : vector<2x32xf32>
    %cst_25 = arith.constant 1.000000e+00 : f32
    %69 = vector.broadcast %cst_25 : f32 to vector<2x32xf32>
    %70 = arith.addf %69, %68 : vector<2x32xf32>
    %71 = arith.divf %69, %70 : vector<2x32xf32>
    %72 = arith.mulf %63, %20 : vector<2x32xf32>
    %73 = arith.mulf %57, %65 : vector<2x32xf32>
    %74 = arith.addf %72, %73 : vector<2x32xf32>
    %75 = math.tanh %74 : vector<2x32xf32>
    %76 = arith.mulf %71, %75 : vector<2x32xf32>
    %c0_26 = arith.constant 0 : index
    %c0_27 = arith.constant 0 : index
    %77 = vector.load %arg21[%c0_26, %c0_27] : memref<16x64xf32, #tpu.memory_space<vmem>>, vector<2x32xf32>
    tpu.vector_store %arg21[%c0_26, %c0_27], %51 {strides = array<i32>} : memref<16x64xf32, #tpu.memory_space<vmem>>, vector<2x32xf32>,
    %c14 = arith.constant 14 : index
    %c32 = arith.constant 32 : index
    %78 = vector.load %arg21[%c14, %c32] : memref<16x64xf32, #tpu.memory_space<vmem>>, vector<2x32xf32>
    tpu.vector_store %arg21[%c14, %c32], %76 {strides = array<i32>} : memref<16x64xf32, #tpu.memory_space<vmem>>, vector<2x32xf32>,
    %79 = vector.extract_strided_slice %12 {offsets = [2, 0], sizes = [2, 128], strides = [1, 1]} : vector<16x128xf32> to vector<2x128xf32>
    %cst_28 = arith.constant dense<0.000000e+00> : vector<2x128xf32>
    %80 = tpu.matmul %51, %18, %cst_28 {dimension_numbers = #tpu.dot_dimension_numbers<[1], [0], [0], [1], [0, 0, 1, 1], [], []>} : vector<2x32xf32>, vector<32x128xf32>, vector<2x128xf32> -> vector<2x128xf32>
    %81 = arith.addf %79, %80 : vector<2x128xf32>
    %82 = vector.extract_strided_slice %17 {offsets = [12, 0], sizes = [2, 128], strides = [1, 1]} : vector<16x128xf32> to vector<2x128xf32>
    %cst_29 = arith.constant dense<0.000000e+00> : vector<2x128xf32>
    %83 = tpu.matmul %76, %19, %cst_29 {dimension_numbers = #tpu.dot_dimension_numbers<[1], [0], [0], [1], [0, 0, 1, 1], [], []>} : vector<2x32xf32>, vector<32x128xf32>, vector<2x128xf32> -> vector<2x128xf32>
    %84 = arith.addf %82, %83 : vector<2x128xf32>
    %85 = vector.extract_strided_slice %81 {offsets = [0, 0], sizes = [2, 32], strides = [1, 1]} : vector<2x128xf32> to vector<2x32xf32>
    %86 = arith.negf %85 : vector<2x32xf32>
    %87 = math.exp %86 : vector<2x32xf32>
    %cst_30 = arith.constant 1.000000e+00 : f32
    %88 = vector.broadcast %cst_30 : f32 to vector<2x32xf32>
    %89 = arith.addf %88, %87 : vector<2x32xf32>
    %90 = arith.divf %88, %89 : vector<2x32xf32>
    %91 = vector.extract_strided_slice %81 {offsets = [0, 32], sizes = [2, 32], strides = [1, 1]} : vector<2x128xf32> to vector<2x32xf32>
    %92 = arith.negf %91 : vector<2x32xf32>
    %93 = math.exp %92 : vector<2x32xf32>
    %cst_31 = arith.constant 1.000000e+00 : f32
    %94 = vector.broadcast %cst_31 : f32 to vector<2x32xf32>
    %95 = arith.addf %94, %93 : vector<2x32xf32>
    %96 = arith.divf %94, %95 : vector<2x32xf32>
    %97 = vector.extract_strided_slice %81 {offsets = [0, 64], sizes = [2, 32], strides = [1, 1]} : vector<2x128xf32> to vector<2x32xf32>
    %98 = math.tanh %97 : vector<2x32xf32>
    %99 = vector.extract_strided_slice %81 {offsets = [0, 96], sizes = [2, 32], strides = [1, 1]} : vector<2x128xf32> to vector<2x32xf32>
    %100 = arith.negf %99 : vector<2x32xf32>
    %101 = math.exp %100 : vector<2x32xf32>
    %cst_32 = arith.constant 1.000000e+00 : f32
    %102 = vector.broadcast %cst_32 : f32 to vector<2x32xf32>
    %103 = arith.addf %102, %101 : vector<2x32xf32>
    %104 = arith.divf %102, %103 : vector<2x32xf32>
    %105 = arith.mulf %96, %49 : vector<2x32xf32>
    %106 = arith.mulf %90, %98 : vector<2x32xf32>
    %107 = arith.addf %105, %106 : vector<2x32xf32>
    %108 = math.tanh %107 : vector<2x32xf32>
    %109 = arith.mulf %104, %108 : vector<2x32xf32>
    %110 = vector.extract_strided_slice %84 {offsets = [0, 0], sizes = [2, 32], strides = [1, 1]} : vector<2x128xf32> to vector<2x32xf32>
    %111 = arith.negf %110 : vector<2x32xf32>
    %112 = math.exp %111 : vector<2x32xf32>
    %cst_33 = arith.constant 1.000000e+00 : f32
    %113 = vector.broadcast %cst_33 : f32 to vector<2x32xf32>
    %114 = arith.addf %113, %112 : vector<2x32xf32>
    %115 = arith.divf %113, %114 : vector<2x32xf32>
    %116 = vector.extract_strided_slice %84 {offsets = [0, 32], sizes = [2, 32], strides = [1, 1]} : vector<2x128xf32> to vector<2x32xf32>
    %117 = arith.negf %116 : vector<2x32xf32>
    %118 = math.exp %117 : vector<2x32xf32>
    %cst_34 = arith.constant 1.000000e+00 : f32
    %119 = vector.broadcast %cst_34 : f32 to vector<2x32xf32>
    %120 = arith.addf %119, %118 : vector<2x32xf32>
    %121 = arith.divf %119, %120 : vector<2x32xf32>
    %122 = vector.extract_strided_slice %84 {offsets = [0, 64], sizes = [2, 32], strides = [1, 1]} : vector<2x128xf32> to vector<2x32xf32>
    %123 = math.tanh %122 : vector<2x32xf32>
    %124 = vector.extract_strided_slice %84 {offsets = [0, 96], sizes = [2, 32], strides = [1, 1]} : vector<2x128xf32> to vector<2x32xf32>
    %125 = arith.negf %124 : vector<2x32xf32>
    %126 = math.exp %125 : vector<2x32xf32>
    %cst_35 = arith.constant 1.000000e+00 : f32
    %127 = vector.broadcast %cst_35 : f32 to vector<2x32xf32>
    %128 = arith.addf %127, %126 : vector<2x32xf32>
    %129 = arith.divf %127, %128 : vector<2x32xf32>
    %130 = arith.mulf %121, %74 : vector<2x32xf32>
    %131 = arith.mulf %115, %123 : vector<2x32xf32>
    %132 = arith.addf %130, %131 : vector<2x32xf32>
    %133 = math.tanh %132 : vector<2x32xf32>
    %134 = arith.mulf %129, %133 : vector<2x32xf32>
    %c2 = arith.constant 2 : index
    %c0_36 = arith.constant 0 : index
    %135 = vector.load %arg21[%c2, %c0_36] : memref<16x64xf32, #tpu.memory_space<vmem>>, vector<2x32xf32>
    tpu.vector_store %arg21[%c2, %c0_36], %109 {strides = array<i32>} : memref<16x64xf32, #tpu.memory_space<vmem>>, vector<2x32xf32>,
    %c12 = arith.constant 12 : index
    %c32_37 = arith.constant 32 : index
    %136 = vector.load %arg21[%c12, %c32_37] : memref<16x64xf32, #tpu.memory_space<vmem>>, vector<2x32xf32>
    tpu.vector_store %arg21[%c12, %c32_37], %134 {strides = array<i32>} : memref<16x64xf32, #tpu.memory_space<vmem>>, vector<2x32xf32>,
    %137 = vector.extract_strided_slice %12 {offsets = [4, 0], sizes = [2, 128], strides = [1, 1]} : vector<16x128xf32> to vector<2x128xf32>
    %cst_38 = arith.constant dense<0.000000e+00> : vector<2x128xf32>
    %138 = tpu.matmul %109, %18, %cst_38 {dimension_numbers = #tpu.dot_dimension_numbers<[1], [0], [0], [1], [0, 0, 1, 1], [], []>} : vector<2x32xf32>, vector<32x128xf32>, vector<2x128xf32> -> vector<2x128xf32>
    %139 = arith.addf %137, %138 : vector<2x128xf32>
    %140 = vector.extract_strided_slice %17 {offsets = [10, 0], sizes = [2, 128], strides = [1, 1]} : vector<16x128xf32> to vector<2x128xf32>
    %cst_39 = arith.constant dense<0.000000e+00> : vector<2x128xf32>
    %141 = tpu.matmul %134, %19, %cst_39 {dimension_numbers = #tpu.dot_dimension_numbers<[1], [0], [0], [1], [0, 0, 1, 1], [], []>} : vector<2x32xf32>, vector<32x128xf32>, vector<2x128xf32> -> vector<2x128xf32>
    %142 = arith.addf %140, %141 : vector<2x128xf32>
    %143 = vector.extract_strided_slice %139 {offsets = [0, 0], sizes = [2, 32], strides = [1, 1]} : vector<2x128xf32> to vector<2x32xf32>
    %144 = arith.negf %143 : vector<2x32xf32>
    %145 = math.exp %144 : vector<2x32xf32>
    %cst_40 = arith.constant 1.000000e+00 : f32
    %146 = vector.broadcast %cst_40 : f32 to vector<2x32xf32>
    %147 = arith.addf %146, %145 : vector<2x32xf32>
    %148 = arith.divf %146, %147 : vector<2x32xf32>
    %149 = vector.extract_strided_slice %139 {offsets = [0, 32], sizes = [2, 32], strides = [1, 1]} : vector<2x128xf32> to vector<2x32xf32>
    %150 = arith.negf %149 : vector<2x32xf32>
    %151 = math.exp %150 : vector<2x32xf32>
    %cst_41 = arith.constant 1.000000e+00 : f32
    %152 = vector.broadcast %cst_41 : f32 to vector<2x32xf32>
    %153 = arith.addf %152, %151 : vector<2x32xf32>
    %154 = arith.divf %152, %153 : vector<2x32xf32>
    %155 = vector.extract_strided_slice %139 {offsets = [0, 64], sizes = [2, 32], strides = [1, 1]} : vector<2x128xf32> to vector<2x32xf32>
    %156 = math.tanh %155 : vector<2x32xf32>
    %157 = vector.extract_strided_slice %139 {offsets = [0, 96], sizes = [2, 32], strides = [1, 1]} : vector<2x128xf32> to vector<2x32xf32>
    %158 = arith.negf %157 : vector<2x32xf32>
    %159 = math.exp %158 : vector<2x32xf32>
    %cst_42 = arith.constant 1.000000e+00 : f32
    %160 = vector.broadcast %cst_42 : f32 to vector<2x32xf32>
    %161 = arith.addf %160, %159 : vector<2x32xf32>
    %162 = arith.divf %160, %161 : vector<2x32xf32>
    %163 = arith.mulf %154, %107 : vector<2x32xf32>
    %164 = arith.mulf %148, %156 : vector<2x32xf32>
    %165 = arith.addf %163, %164 : vector<2x32xf32>
    %166 = math.tanh %165 : vector<2x32xf32>
    %167 = arith.mulf %162, %166 : vector<2x32xf32>
    %168 = vector.extract_strided_slice %142 {offsets = [0, 0], sizes = [2, 32], strides = [1, 1]} : vector<2x128xf32> to vector<2x32xf32>
    %169 = arith.negf %168 : vector<2x32xf32>
    %170 = math.exp %169 : vector<2x32xf32>
    %cst_43 = arith.constant 1.000000e+00 : f32
    %171 = vector.broadcast %cst_43 : f32 to vector<2x32xf32>
    %172 = arith.addf %171, %170 : vector<2x32xf32>
    %173 = arith.divf %171, %172 : vector<2x32xf32>
    %174 = vector.extract_strided_slice %142 {offsets = [0, 32], sizes = [2, 32], strides = [1, 1]} : vector<2x128xf32> to vector<2x32xf32>
    %175 = arith.negf %174 : vector<2x32xf32>
    %176 = math.exp %175 : vector<2x32xf32>
    %cst_44 = arith.constant 1.000000e+00 : f32
    %177 = vector.broadcast %cst_44 : f32 to vector<2x32xf32>
    %178 = arith.addf %177, %176 : vector<2x32xf32>
    %179 = arith.divf %177, %178 : vector<2x32xf32>
    %180 = vector.extract_strided_slice %142 {offsets = [0, 64], sizes = [2, 32], strides = [1, 1]} : vector<2x128xf32> to vector<2x32xf32>
    %181 = math.tanh %180 : vector<2x32xf32>
    %182 = vector.extract_strided_slice %142 {offsets = [0, 96], sizes = [2, 32], strides = [1, 1]} : vector<2x128xf32> to vector<2x32xf32>
    %183 = arith.negf %182 : vector<2x32xf32>
    %184 = math.exp %183 : vector<2x32xf32>
    %cst_45 = arith.constant 1.000000e+00 : f32
    %185 = vector.broadcast %cst_45 : f32 to vector<2x32xf32>
    %186 = arith.addf %185, %184 : vector<2x32xf32>
    %187 = arith.divf %185, %186 : vector<2x32xf32>
    %188 = arith.mulf %179, %132 : vector<2x32xf32>
    %189 = arith.mulf %173, %181 : vector<2x32xf32>
    %190 = arith.addf %188, %189 : vector<2x32xf32>
    %191 = math.tanh %190 : vector<2x32xf32>
    %192 = arith.mulf %187, %191 : vector<2x32xf32>
    %c4 = arith.constant 4 : index
    %c0_46 = arith.constant 0 : index
    %193 = vector.load %arg21[%c4, %c0_46] : memref<16x64xf32, #tpu.memory_space<vmem>>, vector<2x32xf32>
    tpu.vector_store %arg21[%c4, %c0_46], %167 {strides = array<i32>} : memref<16x64xf32, #tpu.memory_space<vmem>>, vector<2x32xf32>,
    %c10 = arith.constant 10 : index
    %c32_47 = arith.constant 32 : index
    %194 = vector.load %arg21[%c10, %c32_47] : memref<16x64xf32, #tpu.memory_space<vmem>>, vector<2x32xf32>
    tpu.vector_store %arg21[%c10, %c32_47], %192 {strides = array<i32>} : memref<16x64xf32, #tpu.memory_space<vmem>>, vector<2x32xf32>,
    %195 = vector.extract_strided_slice %12 {offsets = [6, 0], sizes = [2, 128], strides = [1, 1]} : vector<16x128xf32> to vector<2x128xf32>
    %cst_48 = arith.constant dense<0.000000e+00> : vector<2x128xf32>
    %196 = tpu.matmul %167, %18, %cst_48 {dimension_numbers = #tpu.dot_dimension_numbers<[1], [0], [0], [1], [0, 0, 1, 1], [], []>} : vector<2x32xf32>, vector<32x128xf32>, vector<2x128xf32> -> vector<2x128xf32>
    %197 = arith.addf %195, %196 : vector<2x128xf32>
    %198 = vector.extract_strided_slice %17 {offsets = [8, 0], sizes = [2, 128], strides = [1, 1]} : vector<16x128xf32> to vector<2x128xf32>
    %cst_49 = arith.constant dense<0.000000e+00> : vector<2x128xf32>
    %199 = tpu.matmul %192, %19, %cst_49 {dimension_numbers = #tpu.dot_dimension_numbers<[1], [0], [0], [1], [0, 0, 1, 1], [], []>} : vector<2x32xf32>, vector<32x128xf32>, vector<2x128xf32> -> vector<2x128xf32>
    %200 = arith.addf %198, %199 : vector<2x128xf32>
    %201 = vector.extract_strided_slice %197 {offsets = [0, 0], sizes = [2, 32], strides = [1, 1]} : vector<2x128xf32> to vector<2x32xf32>
    %202 = arith.negf %201 : vector<2x32xf32>
    %203 = math.exp %202 : vector<2x32xf32>
    %cst_50 = arith.constant 1.000000e+00 : f32
    %204 = vector.broadcast %cst_50 : f32 to vector<2x32xf32>
    %205 = arith.addf %204, %203 : vector<2x32xf32>
    %206 = arith.divf %204, %205 : vector<2x32xf32>
    %207 = vector.extract_strided_slice %197 {offsets = [0, 32], sizes = [2, 32], strides = [1, 1]} : vector<2x128xf32> to vector<2x32xf32>
    %208 = arith.negf %207 : vector<2x32xf32>
    %209 = math.exp %208 : vector<2x32xf32>
    %cst_51 = arith.constant 1.000000e+00 : f32
    %210 = vector.broadcast %cst_51 : f32 to vector<2x32xf32>
    %211 = arith.addf %210, %209 : vector<2x32xf32>
    %212 = arith.divf %210, %211 : vector<2x32xf32>
    %213 = vector.extract_strided_slice %197 {offsets = [0, 64], sizes = [2, 32], strides = [1, 1]} : vector<2x128xf32> to vector<2x32xf32>
    %214 = math.tanh %213 : vector<2x32xf32>
    %215 = vector.extract_strided_slice %197 {offsets = [0, 96], sizes = [2, 32], strides = [1, 1]} : vector<2x128xf32> to vector<2x32xf32>
    %216 = arith.negf %215 : vector<2x32xf32>
    %217 = math.exp %216 : vector<2x32xf32>
    %cst_52 = arith.constant 1.000000e+00 : f32
    %218 = vector.broadcast %cst_52 : f32 to vector<2x32xf32>
    %219 = arith.addf %218, %217 : vector<2x32xf32>
    %220 = arith.divf %218, %219 : vector<2x32xf32>
    %221 = arith.mulf %212, %165 : vector<2x32xf32>
    %222 = arith.mulf %206, %214 : vector<2x32xf32>
    %223 = arith.addf %221, %222 : vector<2x32xf32>
    %224 = math.tanh %223 : vector<2x32xf32>
    %225 = arith.mulf %220, %224 : vector<2x32xf32>
    %226 = vector.extract_strided_slice %200 {offsets = [0, 0], sizes = [2, 32], strides = [1, 1]} : vector<2x128xf32> to vector<2x32xf32>
    %227 = arith.negf %226 : vector<2x32xf32>
    %228 = math.exp %227 : vector<2x32xf32>
    %cst_53 = arith.constant 1.000000e+00 : f32
    %229 = vector.broadcast %cst_53 : f32 to vector<2x32xf32>
    %230 = arith.addf %229, %228 : vector<2x32xf32>
    %231 = arith.divf %229, %230 : vector<2x32xf32>
    %232 = vector.extract_strided_slice %200 {offsets = [0, 32], sizes = [2, 32], strides = [1, 1]} : vector<2x128xf32> to vector<2x32xf32>
    %233 = arith.negf %232 : vector<2x32xf32>
    %234 = math.exp %233 : vector<2x32xf32>
    %cst_54 = arith.constant 1.000000e+00 : f32
    %235 = vector.broadcast %cst_54 : f32 to vector<2x32xf32>
    %236 = arith.addf %235, %234 : vector<2x32xf32>
    %237 = arith.divf %235, %236 : vector<2x32xf32>
    %238 = vector.extract_strided_slice %200 {offsets = [0, 64], sizes = [2, 32], strides = [1, 1]} : vector<2x128xf32> to vector<2x32xf32>
    %239 = math.tanh %238 : vector<2x32xf32>
    %240 = vector.extract_strided_slice %200 {offsets = [0, 96], sizes = [2, 32], strides = [1, 1]} : vector<2x128xf32> to vector<2x32xf32>
    %241 = arith.negf %240 : vector<2x32xf32>
    %242 = math.exp %241 : vector<2x32xf32>
    %cst_55 = arith.constant 1.000000e+00 : f32
    %243 = vector.broadcast %cst_55 : f32 to vector<2x32xf32>
    %244 = arith.addf %243, %242 : vector<2x32xf32>
    %245 = arith.divf %243, %244 : vector<2x32xf32>
    %246 = arith.mulf %237, %190 : vector<2x32xf32>
    %247 = arith.mulf %231, %239 : vector<2x32xf32>
    %248 = arith.addf %246, %247 : vector<2x32xf32>
    %249 = math.tanh %248 : vector<2x32xf32>
    %250 = arith.mulf %245, %249 : vector<2x32xf32>
    %c6 = arith.constant 6 : index
    %c0_56 = arith.constant 0 : index
    %251 = vector.load %arg21[%c6, %c0_56] : memref<16x64xf32, #tpu.memory_space<vmem>>, vector<2x32xf32>
    tpu.vector_store %arg21[%c6, %c0_56], %225 {strides = array<i32>} : memref<16x64xf32, #tpu.memory_space<vmem>>, vector<2x32xf32>,
    %c8 = arith.constant 8 : index
    %c32_57 = arith.constant 32 : index
    %252 = vector.load %arg21[%c8, %c32_57] : memref<16x64xf32, #tpu.memory_space<vmem>>, vector<2x32xf32>
    tpu.vector_store %arg21[%c8, %c32_57], %250 {strides = array<i32>} : memref<16x64xf32, #tpu.memory_space<vmem>>, vector<2x32xf32>,
    %253 = vector.extract_strided_slice %12 {offsets = [8, 0], sizes = [2, 128], strides = [1, 1]} : vector<16x128xf32> to vector<2x128xf32>
    %cst_58 = arith.constant dense<0.000000e+00> : vector<2x128xf32>
    %254 = tpu.matmul %225, %18, %cst_58 {dimension_numbers = #tpu.dot_dimension_numbers<[1], [0], [0], [1], [0, 0, 1, 1], [], []>} : vector<2x32xf32>, vector<32x128xf32>, vector<2x128xf32> -> vector<2x128xf32>
    %255 = arith.addf %253, %254 : vector<2x128xf32>
    %256 = vector.extract_strided_slice %17 {offsets = [6, 0], sizes = [2, 128], strides = [1, 1]} : vector<16x128xf32> to vector<2x128xf32>
    %cst_59 = arith.constant dense<0.000000e+00> : vector<2x128xf32>
    %257 = tpu.matmul %250, %19, %cst_59 {dimension_numbers = #tpu.dot_dimension_numbers<[1], [0], [0], [1], [0, 0, 1, 1], [], []>} : vector<2x32xf32>, vector<32x128xf32>, vector<2x128xf32> -> vector<2x128xf32>
    %258 = arith.addf %256, %257 : vector<2x128xf32>
    %259 = vector.extract_strided_slice %255 {offsets = [0, 0], sizes = [2, 32], strides = [1, 1]} : vector<2x128xf32> to vector<2x32xf32>
    %260 = arith.negf %259 : vector<2x32xf32>
    %261 = math.exp %260 : vector<2x32xf32>
    %cst_60 = arith.constant 1.000000e+00 : f32
    %262 = vector.broadcast %cst_60 : f32 to vector<2x32xf32>
    %263 = arith.addf %262, %261 : vector<2x32xf32>
    %264 = arith.divf %262, %263 : vector<2x32xf32>
    %265 = vector.extract_strided_slice %255 {offsets = [0, 32], sizes = [2, 32], strides = [1, 1]} : vector<2x128xf32> to vector<2x32xf32>
    %266 = arith.negf %265 : vector<2x32xf32>
    %267 = math.exp %266 : vector<2x32xf32>
    %cst_61 = arith.constant 1.000000e+00 : f32
    %268 = vector.broadcast %cst_61 : f32 to vector<2x32xf32>
    %269 = arith.addf %268, %267 : vector<2x32xf32>
    %270 = arith.divf %268, %269 : vector<2x32xf32>
    %271 = vector.extract_strided_slice %255 {offsets = [0, 64], sizes = [2, 32], strides = [1, 1]} : vector<2x128xf32> to vector<2x32xf32>
    %272 = math.tanh %271 : vector<2x32xf32>
    %273 = vector.extract_strided_slice %255 {offsets = [0, 96], sizes = [2, 32], strides = [1, 1]} : vector<2x128xf32> to vector<2x32xf32>
    %274 = arith.negf %273 : vector<2x32xf32>
    %275 = math.exp %274 : vector<2x32xf32>
    %cst_62 = arith.constant 1.000000e+00 : f32
    %276 = vector.broadcast %cst_62 : f32 to vector<2x32xf32>
    %277 = arith.addf %276, %275 : vector<2x32xf32>
    %278 = arith.divf %276, %277 : vector<2x32xf32>
    %279 = arith.mulf %270, %223 : vector<2x32xf32>
    %280 = arith.mulf %264, %272 : vector<2x32xf32>
    %281 = arith.addf %279, %280 : vector<2x32xf32>
    %282 = math.tanh %281 : vector<2x32xf32>
    %283 = arith.mulf %278, %282 : vector<2x32xf32>
    %284 = vector.extract_strided_slice %258 {offsets = [0, 0], sizes = [2, 32], strides = [1, 1]} : vector<2x128xf32> to vector<2x32xf32>
    %285 = arith.negf %284 : vector<2x32xf32>
    %286 = math.exp %285 : vector<2x32xf32>
    %cst_63 = arith.constant 1.000000e+00 : f32
    %287 = vector.broadcast %cst_63 : f32 to vector<2x32xf32>
    %288 = arith.addf %287, %286 : vector<2x32xf32>
    %289 = arith.divf %287, %288 : vector<2x32xf32>
    %290 = vector.extract_strided_slice %258 {offsets = [0, 32], sizes = [2, 32], strides = [1, 1]} : vector<2x128xf32> to vector<2x32xf32>
    %291 = arith.negf %290 : vector<2x32xf32>
    %292 = math.exp %291 : vector<2x32xf32>
    %cst_64 = arith.constant 1.000000e+00 : f32
    %293 = vector.broadcast %cst_64 : f32 to vector<2x32xf32>
    %294 = arith.addf %293, %292 : vector<2x32xf32>
    %295 = arith.divf %293, %294 : vector<2x32xf32>
    %296 = vector.extract_strided_slice %258 {offsets = [0, 64], sizes = [2, 32], strides = [1, 1]} : vector<2x128xf32> to vector<2x32xf32>
    %297 = math.tanh %296 : vector<2x32xf32>
    %298 = vector.extract_strided_slice %258 {offsets = [0, 96], sizes = [2, 32], strides = [1, 1]} : vector<2x128xf32> to vector<2x32xf32>
    %299 = arith.negf %298 : vector<2x32xf32>
    %300 = math.exp %299 : vector<2x32xf32>
    %cst_65 = arith.constant 1.000000e+00 : f32
    %301 = vector.broadcast %cst_65 : f32 to vector<2x32xf32>
    %302 = arith.addf %301, %300 : vector<2x32xf32>
    %303 = arith.divf %301, %302 : vector<2x32xf32>
    %304 = arith.mulf %295, %248 : vector<2x32xf32>
    %305 = arith.mulf %289, %297 : vector<2x32xf32>
    %306 = arith.addf %304, %305 : vector<2x32xf32>
    %307 = math.tanh %306 : vector<2x32xf32>
    %308 = arith.mulf %303, %307 : vector<2x32xf32>
    %c8_66 = arith.constant 8 : index
    %c0_67 = arith.constant 0 : index
    %309 = vector.load %arg21[%c8_66, %c0_67] : memref<16x64xf32, #tpu.memory_space<vmem>>, vector<2x32xf32>
    tpu.vector_store %arg21[%c8_66, %c0_67], %283 {strides = array<i32>} : memref<16x64xf32, #tpu.memory_space<vmem>>, vector<2x32xf32>,
    %c6_68 = arith.constant 6 : index
    %c32_69 = arith.constant 32 : index
    %310 = vector.load %arg21[%c6_68, %c32_69] : memref<16x64xf32, #tpu.memory_space<vmem>>, vector<2x32xf32>
    tpu.vector_store %arg21[%c6_68, %c32_69], %308 {strides = array<i32>} : memref<16x64xf32, #tpu.memory_space<vmem>>, vector<2x32xf32>,
    %311 = vector.extract_strided_slice %12 {offsets = [10, 0], sizes = [2, 128], strides = [1, 1]} : vector<16x128xf32> to vector<2x128xf32>
    %cst_70 = arith.constant dense<0.000000e+00> : vector<2x128xf32>
    %312 = tpu.matmul %283, %18, %cst_70 {dimension_numbers = #tpu.dot_dimension_numbers<[1], [0], [0], [1], [0, 0, 1, 1], [], []>} : vector<2x32xf32>, vector<32x128xf32>, vector<2x128xf32> -> vector<2x128xf32>
    %313 = arith.addf %311, %312 : vector<2x128xf32>
    %314 = vector.extract_strided_slice %17 {offsets = [4, 0], sizes = [2, 128], strides = [1, 1]} : vector<16x128xf32> to vector<2x128xf32>
    %cst_71 = arith.constant dense<0.000000e+00> : vector<2x128xf32>
    %315 = tpu.matmul %308, %19, %cst_71 {dimension_numbers = #tpu.dot_dimension_numbers<[1], [0], [0], [1], [0, 0, 1, 1], [], []>} : vector<2x32xf32>, vector<32x128xf32>, vector<2x128xf32> -> vector<2x128xf32>
    %316 = arith.addf %314, %315 : vector<2x128xf32>
    %317 = vector.extract_strided_slice %313 {offsets = [0, 0], sizes = [2, 32], strides = [1, 1]} : vector<2x128xf32> to vector<2x32xf32>
    %318 = arith.negf %317 : vector<2x32xf32>
    %319 = math.exp %318 : vector<2x32xf32>
    %cst_72 = arith.constant 1.000000e+00 : f32
    %320 = vector.broadcast %cst_72 : f32 to vector<2x32xf32>
    %321 = arith.addf %320, %319 : vector<2x32xf32>
    %322 = arith.divf %320, %321 : vector<2x32xf32>
    %323 = vector.extract_strided_slice %313 {offsets = [0, 32], sizes = [2, 32], strides = [1, 1]} : vector<2x128xf32> to vector<2x32xf32>
    %324 = arith.negf %323 : vector<2x32xf32>
    %325 = math.exp %324 : vector<2x32xf32>
    %cst_73 = arith.constant 1.000000e+00 : f32
    %326 = vector.broadcast %cst_73 : f32 to vector<2x32xf32>
    %327 = arith.addf %326, %325 : vector<2x32xf32>
    %328 = arith.divf %326, %327 : vector<2x32xf32>
    %329 = vector.extract_strided_slice %313 {offsets = [0, 64], sizes = [2, 32], strides = [1, 1]} : vector<2x128xf32> to vector<2x32xf32>
    %330 = math.tanh %329 : vector<2x32xf32>
    %331 = vector.extract_strided_slice %313 {offsets = [0, 96], sizes = [2, 32], strides = [1, 1]} : vector<2x128xf32> to vector<2x32xf32>
    %332 = arith.negf %331 : vector<2x32xf32>
    %333 = math.exp %332 : vector<2x32xf32>
    %cst_74 = arith.constant 1.000000e+00 : f32
    %334 = vector.broadcast %cst_74 : f32 to vector<2x32xf32>
    %335 = arith.addf %334, %333 : vector<2x32xf32>
    %336 = arith.divf %334, %335 : vector<2x32xf32>
    %337 = arith.mulf %328, %281 : vector<2x32xf32>
    %338 = arith.mulf %322, %330 : vector<2x32xf32>
    %339 = arith.addf %337, %338 : vector<2x32xf32>
    %340 = math.tanh %339 : vector<2x32xf32>
    %341 = arith.mulf %336, %340 : vector<2x32xf32>
    %342 = vector.extract_strided_slice %316 {offsets = [0, 0], sizes = [2, 32], strides = [1, 1]} : vector<2x128xf32> to vector<2x32xf32>
    %343 = arith.negf %342 : vector<2x32xf32>
    %344 = math.exp %343 : vector<2x32xf32>
    %cst_75 = arith.constant 1.000000e+00 : f32
    %345 = vector.broadcast %cst_75 : f32 to vector<2x32xf32>
    %346 = arith.addf %345, %344 : vector<2x32xf32>
    %347 = arith.divf %345, %346 : vector<2x32xf32>
    %348 = vector.extract_strided_slice %316 {offsets = [0, 32], sizes = [2, 32], strides = [1, 1]} : vector<2x128xf32> to vector<2x32xf32>
    %349 = arith.negf %348 : vector<2x32xf32>
    %350 = math.exp %349 : vector<2x32xf32>
    %cst_76 = arith.constant 1.000000e+00 : f32
    %351 = vector.broadcast %cst_76 : f32 to vector<2x32xf32>
    %352 = arith.addf %351, %350 : vector<2x32xf32>
    %353 = arith.divf %351, %352 : vector<2x32xf32>
    %354 = vector.extract_strided_slice %316 {offsets = [0, 64], sizes = [2, 32], strides = [1, 1]} : vector<2x128xf32> to vector<2x32xf32>
    %355 = math.tanh %354 : vector<2x32xf32>
    %356 = vector.extract_strided_slice %316 {offsets = [0, 96], sizes = [2, 32], strides = [1, 1]} : vector<2x128xf32> to vector<2x32xf32>
    %357 = arith.negf %356 : vector<2x32xf32>
    %358 = math.exp %357 : vector<2x32xf32>
    %cst_77 = arith.constant 1.000000e+00 : f32
    %359 = vector.broadcast %cst_77 : f32 to vector<2x32xf32>
    %360 = arith.addf %359, %358 : vector<2x32xf32>
    %361 = arith.divf %359, %360 : vector<2x32xf32>
    %362 = arith.mulf %353, %306 : vector<2x32xf32>
    %363 = arith.mulf %347, %355 : vector<2x32xf32>
    %364 = arith.addf %362, %363 : vector<2x32xf32>
    %365 = math.tanh %364 : vector<2x32xf32>
    %366 = arith.mulf %361, %365 : vector<2x32xf32>
    %c10_78 = arith.constant 10 : index
    %c0_79 = arith.constant 0 : index
    %367 = vector.load %arg21[%c10_78, %c0_79] : memref<16x64xf32, #tpu.memory_space<vmem>>, vector<2x32xf32>
    tpu.vector_store %arg21[%c10_78, %c0_79], %341 {strides = array<i32>} : memref<16x64xf32, #tpu.memory_space<vmem>>, vector<2x32xf32>,
    %c4_80 = arith.constant 4 : index
    %c32_81 = arith.constant 32 : index
    %368 = vector.load %arg21[%c4_80, %c32_81] : memref<16x64xf32, #tpu.memory_space<vmem>>, vector<2x32xf32>
    tpu.vector_store %arg21[%c4_80, %c32_81], %366 {strides = array<i32>} : memref<16x64xf32, #tpu.memory_space<vmem>>, vector<2x32xf32>,
    %369 = vector.extract_strided_slice %12 {offsets = [12, 0], sizes = [2, 128], strides = [1, 1]} : vector<16x128xf32> to vector<2x128xf32>
    %cst_82 = arith.constant dense<0.000000e+00> : vector<2x128xf32>
    %370 = tpu.matmul %341, %18, %cst_82 {dimension_numbers = #tpu.dot_dimension_numbers<[1], [0], [0], [1], [0, 0, 1, 1], [], []>} : vector<2x32xf32>, vector<32x128xf32>, vector<2x128xf32> -> vector<2x128xf32>
    %371 = arith.addf %369, %370 : vector<2x128xf32>
    %372 = vector.extract_strided_slice %17 {offsets = [2, 0], sizes = [2, 128], strides = [1, 1]} : vector<16x128xf32> to vector<2x128xf32>
    %cst_83 = arith.constant dense<0.000000e+00> : vector<2x128xf32>
    %373 = tpu.matmul %366, %19, %cst_83 {dimension_numbers = #tpu.dot_dimension_numbers<[1], [0], [0], [1], [0, 0, 1, 1], [], []>} : vector<2x32xf32>, vector<32x128xf32>, vector<2x128xf32> -> vector<2x128xf32>
    %374 = arith.addf %372, %373 : vector<2x128xf32>
    %375 = vector.extract_strided_slice %371 {offsets = [0, 0], sizes = [2, 32], strides = [1, 1]} : vector<2x128xf32> to vector<2x32xf32>
    %376 = arith.negf %375 : vector<2x32xf32>
    %377 = math.exp %376 : vector<2x32xf32>
    %cst_84 = arith.constant 1.000000e+00 : f32
    %378 = vector.broadcast %cst_84 : f32 to vector<2x32xf32>
    %379 = arith.addf %378, %377 : vector<2x32xf32>
    %380 = arith.divf %378, %379 : vector<2x32xf32>
    %381 = vector.extract_strided_slice %371 {offsets = [0, 32], sizes = [2, 32], strides = [1, 1]} : vector<2x128xf32> to vector<2x32xf32>
    %382 = arith.negf %381 : vector<2x32xf32>
    %383 = math.exp %382 : vector<2x32xf32>
    %cst_85 = arith.constant 1.000000e+00 : f32
    %384 = vector.broadcast %cst_85 : f32 to vector<2x32xf32>
    %385 = arith.addf %384, %383 : vector<2x32xf32>
    %386 = arith.divf %384, %385 : vector<2x32xf32>
    %387 = vector.extract_strided_slice %371 {offsets = [0, 64], sizes = [2, 32], strides = [1, 1]} : vector<2x128xf32> to vector<2x32xf32>
    %388 = math.tanh %387 : vector<2x32xf32>
    %389 = vector.extract_strided_slice %371 {offsets = [0, 96], sizes = [2, 32], strides = [1, 1]} : vector<2x128xf32> to vector<2x32xf32>
    %390 = arith.negf %389 : vector<2x32xf32>
    %391 = math.exp %390 : vector<2x32xf32>
    %cst_86 = arith.constant 1.000000e+00 : f32
    %392 = vector.broadcast %cst_86 : f32 to vector<2x32xf32>
    %393 = arith.addf %392, %391 : vector<2x32xf32>
    %394 = arith.divf %392, %393 : vector<2x32xf32>
    %395 = arith.mulf %386, %339 : vector<2x32xf32>
    %396 = arith.mulf %380, %388 : vector<2x32xf32>
    %397 = arith.addf %395, %396 : vector<2x32xf32>
    %398 = math.tanh %397 : vector<2x32xf32>
    %399 = arith.mulf %394, %398 : vector<2x32xf32>
    %400 = vector.extract_strided_slice %374 {offsets = [0, 0], sizes = [2, 32], strides = [1, 1]} : vector<2x128xf32> to vector<2x32xf32>
    %401 = arith.negf %400 : vector<2x32xf32>
    %402 = math.exp %401 : vector<2x32xf32>
    %cst_87 = arith.constant 1.000000e+00 : f32
    %403 = vector.broadcast %cst_87 : f32 to vector<2x32xf32>
    %404 = arith.addf %403, %402 : vector<2x32xf32>
    %405 = arith.divf %403, %404 : vector<2x32xf32>
    %406 = vector.extract_strided_slice %374 {offsets = [0, 32], sizes = [2, 32], strides = [1, 1]} : vector<2x128xf32> to vector<2x32xf32>
    %407 = arith.negf %406 : vector<2x32xf32>
    %408 = math.exp %407 : vector<2x32xf32>
    %cst_88 = arith.constant 1.000000e+00 : f32
    %409 = vector.broadcast %cst_88 : f32 to vector<2x32xf32>
    %410 = arith.addf %409, %408 : vector<2x32xf32>
    %411 = arith.divf %409, %410 : vector<2x32xf32>
    %412 = vector.extract_strided_slice %374 {offsets = [0, 64], sizes = [2, 32], strides = [1, 1]} : vector<2x128xf32> to vector<2x32xf32>
    %413 = math.tanh %412 : vector<2x32xf32>
    %414 = vector.extract_strided_slice %374 {offsets = [0, 96], sizes = [2, 32], strides = [1, 1]} : vector<2x128xf32> to vector<2x32xf32>
    %415 = arith.negf %414 : vector<2x32xf32>
    %416 = math.exp %415 : vector<2x32xf32>
    %cst_89 = arith.constant 1.000000e+00 : f32
    %417 = vector.broadcast %cst_89 : f32 to vector<2x32xf32>
    %418 = arith.addf %417, %416 : vector<2x32xf32>
    %419 = arith.divf %417, %418 : vector<2x32xf32>
    %420 = arith.mulf %411, %364 : vector<2x32xf32>
    %421 = arith.mulf %405, %413 : vector<2x32xf32>
    %422 = arith.addf %420, %421 : vector<2x32xf32>
    %423 = math.tanh %422 : vector<2x32xf32>
    %424 = arith.mulf %419, %423 : vector<2x32xf32>
    %c12_90 = arith.constant 12 : index
    %c0_91 = arith.constant 0 : index
    %425 = vector.load %arg21[%c12_90, %c0_91] : memref<16x64xf32, #tpu.memory_space<vmem>>, vector<2x32xf32>
    tpu.vector_store %arg21[%c12_90, %c0_91], %399 {strides = array<i32>} : memref<16x64xf32, #tpu.memory_space<vmem>>, vector<2x32xf32>,
    %c2_92 = arith.constant 2 : index
    %c32_93 = arith.constant 32 : index
    %426 = vector.load %arg21[%c2_92, %c32_93] : memref<16x64xf32, #tpu.memory_space<vmem>>, vector<2x32xf32>
    tpu.vector_store %arg21[%c2_92, %c32_93], %424 {strides = array<i32>} : memref<16x64xf32, #tpu.memory_space<vmem>>, vector<2x32xf32>,
    %427 = vector.extract_strided_slice %12 {offsets = [14, 0], sizes = [2, 128], strides = [1, 1]} : vector<16x128xf32> to vector<2x128xf32>
    %cst_94 = arith.constant dense<0.000000e+00> : vector<2x128xf32>
    %428 = tpu.matmul %399, %18, %cst_94 {dimension_numbers = #tpu.dot_dimension_numbers<[1], [0], [0], [1], [0, 0, 1, 1], [], []>} : vector<2x32xf32>, vector<32x128xf32>, vector<2x128xf32> -> vector<2x128xf32>
    %429 = arith.addf %427, %428 : vector<2x128xf32>
    %430 = vector.extract_strided_slice %17 {offsets = [0, 0], sizes = [2, 128], strides = [1, 1]} : vector<16x128xf32> to vector<2x128xf32>
    %cst_95 = arith.constant dense<0.000000e+00> : vector<2x128xf32>
    %431 = tpu.matmul %424, %19, %cst_95 {dimension_numbers = #tpu.dot_dimension_numbers<[1], [0], [0], [1], [0, 0, 1, 1], [], []>} : vector<2x32xf32>, vector<32x128xf32>, vector<2x128xf32> -> vector<2x128xf32>
    %432 = arith.addf %430, %431 : vector<2x128xf32>
    %433 = vector.extract_strided_slice %429 {offsets = [0, 0], sizes = [2, 32], strides = [1, 1]} : vector<2x128xf32> to vector<2x32xf32>
    %434 = arith.negf %433 : vector<2x32xf32>
    %435 = math.exp %434 : vector<2x32xf32>
    %cst_96 = arith.constant 1.000000e+00 : f32
    %436 = vector.broadcast %cst_96 : f32 to vector<2x32xf32>
    %437 = arith.addf %436, %435 : vector<2x32xf32>
    %438 = arith.divf %436, %437 : vector<2x32xf32>
    %439 = vector.extract_strided_slice %429 {offsets = [0, 32], sizes = [2, 32], strides = [1, 1]} : vector<2x128xf32> to vector<2x32xf32>
    %440 = arith.negf %439 : vector<2x32xf32>
    %441 = math.exp %440 : vector<2x32xf32>
    %cst_97 = arith.constant 1.000000e+00 : f32
    %442 = vector.broadcast %cst_97 : f32 to vector<2x32xf32>
    %443 = arith.addf %442, %441 : vector<2x32xf32>
    %444 = arith.divf %442, %443 : vector<2x32xf32>
    %445 = vector.extract_strided_slice %429 {offsets = [0, 64], sizes = [2, 32], strides = [1, 1]} : vector<2x128xf32> to vector<2x32xf32>
    %446 = math.tanh %445 : vector<2x32xf32>
    %447 = vector.extract_strided_slice %429 {offsets = [0, 96], sizes = [2, 32], strides = [1, 1]} : vector<2x128xf32> to vector<2x32xf32>
    %448 = arith.negf %447 : vector<2x32xf32>
    %449 = math.exp %448 : vector<2x32xf32>
    %cst_98 = arith.constant 1.000000e+00 : f32
    %450 = vector.broadcast %cst_98 : f32 to vector<2x32xf32>
    %451 = arith.addf %450, %449 : vector<2x32xf32>
    %452 = arith.divf %450, %451 : vector<2x32xf32>
    %453 = arith.mulf %444, %397 : vector<2x32xf32>
    %454 = arith.mulf %438, %446 : vector<2x32xf32>
    %455 = arith.addf %453, %454 : vector<2x32xf32>
    %456 = math.tanh %455 : vector<2x32xf32>
    %457 = arith.mulf %452, %456 : vector<2x32xf32>
    %458 = vector.extract_strided_slice %432 {offsets = [0, 0], sizes = [2, 32], strides = [1, 1]} : vector<2x128xf32> to vector<2x32xf32>
    %459 = arith.negf %458 : vector<2x32xf32>
    %460 = math.exp %459 : vector<2x32xf32>
    %cst_99 = arith.constant 1.000000e+00 : f32
    %461 = vector.broadcast %cst_99 : f32 to vector<2x32xf32>
    %462 = arith.addf %461, %460 : vector<2x32xf32>
    %463 = arith.divf %461, %462 : vector<2x32xf32>
    %464 = vector.extract_strided_slice %432 {offsets = [0, 32], sizes = [2, 32], strides = [1, 1]} : vector<2x128xf32> to vector<2x32xf32>
    %465 = arith.negf %464 : vector<2x32xf32>
    %466 = math.exp %465 : vector<2x32xf32>
    %cst_100 = arith.constant 1.000000e+00 : f32
    %467 = vector.broadcast %cst_100 : f32 to vector<2x32xf32>
    %468 = arith.addf %467, %466 : vector<2x32xf32>
    %469 = arith.divf %467, %468 : vector<2x32xf32>
    %470 = vector.extract_strided_slice %432 {offsets = [0, 64], sizes = [2, 32], strides = [1, 1]} : vector<2x128xf32> to vector<2x32xf32>
    %471 = math.tanh %470 : vector<2x32xf32>
    %472 = vector.extract_strided_slice %432 {offsets = [0, 96], sizes = [2, 32], strides = [1, 1]} : vector<2x128xf32> to vector<2x32xf32>
    %473 = arith.negf %472 : vector<2x32xf32>
    %474 = math.exp %473 : vector<2x32xf32>
    %cst_101 = arith.constant 1.000000e+00 : f32
    %475 = vector.broadcast %cst_101 : f32 to vector<2x32xf32>
    %476 = arith.addf %475, %474 : vector<2x32xf32>
    %477 = arith.divf %475, %476 : vector<2x32xf32>
    %478 = arith.mulf %469, %422 : vector<2x32xf32>
    %479 = arith.mulf %463, %471 : vector<2x32xf32>
    %480 = arith.addf %478, %479 : vector<2x32xf32>
    %481 = math.tanh %480 : vector<2x32xf32>
    %482 = arith.mulf %477, %481 : vector<2x32xf32>
    %c14_102 = arith.constant 14 : index
    %c0_103 = arith.constant 0 : index
    %483 = vector.load %arg21[%c14_102, %c0_103] : memref<16x64xf32, #tpu.memory_space<vmem>>, vector<2x32xf32>
    tpu.vector_store %arg21[%c14_102, %c0_103], %457 {strides = array<i32>} : memref<16x64xf32, #tpu.memory_space<vmem>>, vector<2x32xf32>,
    %c0_104 = arith.constant 0 : index
    %c32_105 = arith.constant 32 : index
    %484 = vector.load %arg21[%c0_104, %c32_105] : memref<16x64xf32, #tpu.memory_space<vmem>>, vector<2x32xf32>
    tpu.vector_store %arg21[%c0_104, %c32_105], %482 {strides = array<i32>} : memref<16x64xf32, #tpu.memory_space<vmem>>, vector<2x32xf32>,
    %c0_106 = arith.constant 0 : index
    %c0_107 = arith.constant 0 : index
    %485 = vector.load %arg21[%c0_106, %c0_107] : memref<16x64xf32, #tpu.memory_space<vmem>>, vector<16x64xf32>
    %c0_108 = arith.constant 0 : index
    %c0_109 = arith.constant 0 : index
    %486 = vector.load %arg8[%c0_108, %c0_109] : memref<64x128xf32, #tpu.memory_space<vmem>>, vector<64x128xf32>
    %cst_110 = arith.constant dense<0.000000e+00> : vector<16x128xf32>
    %487 = tpu.matmul %485, %486, %cst_110 {dimension_numbers = #tpu.dot_dimension_numbers<[1], [0], [0], [1], [0, 0, 1, 1], [], []>} : vector<16x64xf32>, vector<64x128xf32>, vector<16x128xf32> -> vector<16x128xf32>
    %c0_111 = arith.constant 0 : index
    %c0_112 = arith.constant 0 : index
    %488 = vector.load %arg10[%c0_111, %c0_112] : memref<1x128xf32, #tpu.memory_space<vmem>>, vector<1x128xf32>
    %489 = vector.broadcast %488 : vector<1x128xf32> to vector<16x128xf32>
    %490 = arith.addf %487, %489 : vector<16x128xf32>
    %c0_113 = arith.constant 0 : index
    %c0_114 = arith.constant 0 : index
    %491 = vector.load %arg11[%c0_113, %c0_114] : memref<64x128xf32, #tpu.memory_space<vmem>>, vector<64x128xf32>
    %cst_115 = arith.constant dense<0.000000e+00> : vector<16x128xf32>
    %492 = tpu.matmul %485, %491, %cst_115 {dimension_numbers = #tpu.dot_dimension_numbers<[1], [0], [0], [1], [0, 0, 1, 1], [], []>} : vector<16x64xf32>, vector<64x128xf32>, vector<16x128xf32> -> vector<16x128xf32>
    %c0_116 = arith.constant 0 : index
    %c0_117 = arith.constant 0 : index
    %493 = vector.load %arg13[%c0_116, %c0_117] : memref<1x128xf32, #tpu.memory_space<vmem>>, vector<1x128xf32>
    %494 = vector.broadcast %493 : vector<1x128xf32> to vector<16x128xf32>
    %495 = arith.addf %492, %494 : vector<16x128xf32>
    %c0_118 = arith.constant 0 : index
    %c0_119 = arith.constant 0 : index
    %496 = vector.load %arg9[%c0_118, %c0_119] : memref<32x128xf32, #tpu.memory_space<vmem>>, vector<32x128xf32>
    %c0_120 = arith.constant 0 : index
    %c0_121 = arith.constant 0 : index
    %497 = vector.load %arg12[%c0_120, %c0_121] : memref<32x128xf32, #tpu.memory_space<vmem>>, vector<32x128xf32>
    %cst_122 = arith.constant 0.000000e+00 : f32
    %498 = vector.broadcast %cst_122 : f32 to vector<2x32xf32>
    %499 = vector.extract_strided_slice %490 {offsets = [0, 0], sizes = [2, 128], strides = [1, 1]} : vector<16x128xf32> to vector<2x128xf32>
    %cst_123 = arith.constant dense<0.000000e+00> : vector<2x128xf32>
    %500 = tpu.matmul %498, %496, %cst_123 {dimension_numbers = #tpu.dot_dimension_numbers<[1], [0], [0], [1], [0, 0, 1, 1], [], []>} : vector<2x32xf32>, vector<32x128xf32>, vector<2x128xf32> -> vector<2x128xf32>
    %501 = arith.addf %499, %500 : vector<2x128xf32>
    %502 = vector.extract_strided_slice %495 {offsets = [14, 0], sizes = [2, 128], strides = [1, 1]} : vector<16x128xf32> to vector<2x128xf32>
    %cst_124 = arith.constant dense<0.000000e+00> : vector<2x128xf32>
    %503 = tpu.matmul %498, %497, %cst_124 {dimension_numbers = #tpu.dot_dimension_numbers<[1], [0], [0], [1], [0, 0, 1, 1], [], []>} : vector<2x32xf32>, vector<32x128xf32>, vector<2x128xf32> -> vector<2x128xf32>
    %504 = arith.addf %502, %503 : vector<2x128xf32>
    %505 = vector.extract_strided_slice %501 {offsets = [0, 0], sizes = [2, 32], strides = [1, 1]} : vector<2x128xf32> to vector<2x32xf32>
    %506 = arith.negf %505 : vector<2x32xf32>
    %507 = math.exp %506 : vector<2x32xf32>
    %cst_125 = arith.constant 1.000000e+00 : f32
    %508 = vector.broadcast %cst_125 : f32 to vector<2x32xf32>
    %509 = arith.addf %508, %507 : vector<2x32xf32>
    %510 = arith.divf %508, %509 : vector<2x32xf32>
    %511 = vector.extract_strided_slice %501 {offsets = [0, 32], sizes = [2, 32], strides = [1, 1]} : vector<2x128xf32> to vector<2x32xf32>
    %512 = arith.negf %511 : vector<2x32xf32>
    %513 = math.exp %512 : vector<2x32xf32>
    %cst_126 = arith.constant 1.000000e+00 : f32
    %514 = vector.broadcast %cst_126 : f32 to vector<2x32xf32>
    %515 = arith.addf %514, %513 : vector<2x32xf32>
    %516 = arith.divf %514, %515 : vector<2x32xf32>
    %517 = vector.extract_strided_slice %501 {offsets = [0, 64], sizes = [2, 32], strides = [1, 1]} : vector<2x128xf32> to vector<2x32xf32>
    %518 = math.tanh %517 : vector<2x32xf32>
    %519 = vector.extract_strided_slice %501 {offsets = [0, 96], sizes = [2, 32], strides = [1, 1]} : vector<2x128xf32> to vector<2x32xf32>
    %520 = arith.negf %519 : vector<2x32xf32>
    %521 = math.exp %520 : vector<2x32xf32>
    %cst_127 = arith.constant 1.000000e+00 : f32
    %522 = vector.broadcast %cst_127 : f32 to vector<2x32xf32>
    %523 = arith.addf %522, %521 : vector<2x32xf32>
    %524 = arith.divf %522, %523 : vector<2x32xf32>
    %525 = arith.mulf %516, %498 : vector<2x32xf32>
    %526 = arith.mulf %510, %518 : vector<2x32xf32>
    %527 = arith.addf %525, %526 : vector<2x32xf32>
    %528 = math.tanh %527 : vector<2x32xf32>
    %529 = arith.mulf %524, %528 : vector<2x32xf32>
    %530 = vector.extract_strided_slice %504 {offsets = [0, 0], sizes = [2, 32], strides = [1, 1]} : vector<2x128xf32> to vector<2x32xf32>
    %531 = arith.negf %530 : vector<2x32xf32>
    %532 = math.exp %531 : vector<2x32xf32>
    %cst_128 = arith.constant 1.000000e+00 : f32
    %533 = vector.broadcast %cst_128 : f32 to vector<2x32xf32>
    %534 = arith.addf %533, %532 : vector<2x32xf32>
    %535 = arith.divf %533, %534 : vector<2x32xf32>
    %536 = vector.extract_strided_slice %504 {offsets = [0, 32], sizes = [2, 32], strides = [1, 1]} : vector<2x128xf32> to vector<2x32xf32>
    %537 = arith.negf %536 : vector<2x32xf32>
    %538 = math.exp %537 : vector<2x32xf32>
    %cst_129 = arith.constant 1.000000e+00 : f32
    %539 = vector.broadcast %cst_129 : f32 to vector<2x32xf32>
    %540 = arith.addf %539, %538 : vector<2x32xf32>
    %541 = arith.divf %539, %540 : vector<2x32xf32>
    %542 = vector.extract_strided_slice %504 {offsets = [0, 64], sizes = [2, 32], strides = [1, 1]} : vector<2x128xf32> to vector<2x32xf32>
    %543 = math.tanh %542 : vector<2x32xf32>
    %544 = vector.extract_strided_slice %504 {offsets = [0, 96], sizes = [2, 32], strides = [1, 1]} : vector<2x128xf32> to vector<2x32xf32>
    %545 = arith.negf %544 : vector<2x32xf32>
    %546 = math.exp %545 : vector<2x32xf32>
    %cst_130 = arith.constant 1.000000e+00 : f32
    %547 = vector.broadcast %cst_130 : f32 to vector<2x32xf32>
    %548 = arith.addf %547, %546 : vector<2x32xf32>
    %549 = arith.divf %547, %548 : vector<2x32xf32>
    %550 = arith.mulf %541, %498 : vector<2x32xf32>
    %551 = arith.mulf %535, %543 : vector<2x32xf32>
    %552 = arith.addf %550, %551 : vector<2x32xf32>
    %553 = math.tanh %552 : vector<2x32xf32>
    %554 = arith.mulf %549, %553 : vector<2x32xf32>
    %555 = vector.extract_strided_slice %490 {offsets = [2, 0], sizes = [2, 128], strides = [1, 1]} : vector<16x128xf32> to vector<2x128xf32>
    %cst_131 = arith.constant dense<0.000000e+00> : vector<2x128xf32>
    %556 = tpu.matmul %529, %496, %cst_131 {dimension_numbers = #tpu.dot_dimension_numbers<[1], [0], [0], [1], [0, 0, 1, 1], [], []>} : vector<2x32xf32>, vector<32x128xf32>, vector<2x128xf32> -> vector<2x128xf32>
    %557 = arith.addf %555, %556 : vector<2x128xf32>
    %558 = vector.extract_strided_slice %495 {offsets = [12, 0], sizes = [2, 128], strides = [1, 1]} : vector<16x128xf32> to vector<2x128xf32>
    %cst_132 = arith.constant dense<0.000000e+00> : vector<2x128xf32>
    %559 = tpu.matmul %554, %497, %cst_132 {dimension_numbers = #tpu.dot_dimension_numbers<[1], [0], [0], [1], [0, 0, 1, 1], [], []>} : vector<2x32xf32>, vector<32x128xf32>, vector<2x128xf32> -> vector<2x128xf32>
    %560 = arith.addf %558, %559 : vector<2x128xf32>
    %561 = vector.extract_strided_slice %557 {offsets = [0, 0], sizes = [2, 32], strides = [1, 1]} : vector<2x128xf32> to vector<2x32xf32>
    %562 = arith.negf %561 : vector<2x32xf32>
    %563 = math.exp %562 : vector<2x32xf32>
    %cst_133 = arith.constant 1.000000e+00 : f32
    %564 = vector.broadcast %cst_133 : f32 to vector<2x32xf32>
    %565 = arith.addf %564, %563 : vector<2x32xf32>
    %566 = arith.divf %564, %565 : vector<2x32xf32>
    %567 = vector.extract_strided_slice %557 {offsets = [0, 32], sizes = [2, 32], strides = [1, 1]} : vector<2x128xf32> to vector<2x32xf32>
    %568 = arith.negf %567 : vector<2x32xf32>
    %569 = math.exp %568 : vector<2x32xf32>
    %cst_134 = arith.constant 1.000000e+00 : f32
    %570 = vector.broadcast %cst_134 : f32 to vector<2x32xf32>
    %571 = arith.addf %570, %569 : vector<2x32xf32>
    %572 = arith.divf %570, %571 : vector<2x32xf32>
    %573 = vector.extract_strided_slice %557 {offsets = [0, 64], sizes = [2, 32], strides = [1, 1]} : vector<2x128xf32> to vector<2x32xf32>
    %574 = math.tanh %573 : vector<2x32xf32>
    %575 = vector.extract_strided_slice %557 {offsets = [0, 96], sizes = [2, 32], strides = [1, 1]} : vector<2x128xf32> to vector<2x32xf32>
    %576 = arith.negf %575 : vector<2x32xf32>
    %577 = math.exp %576 : vector<2x32xf32>
    %cst_135 = arith.constant 1.000000e+00 : f32
    %578 = vector.broadcast %cst_135 : f32 to vector<2x32xf32>
    %579 = arith.addf %578, %577 : vector<2x32xf32>
    %580 = arith.divf %578, %579 : vector<2x32xf32>
    %581 = arith.mulf %572, %527 : vector<2x32xf32>
    %582 = arith.mulf %566, %574 : vector<2x32xf32>
    %583 = arith.addf %581, %582 : vector<2x32xf32>
    %584 = math.tanh %583 : vector<2x32xf32>
    %585 = arith.mulf %580, %584 : vector<2x32xf32>
    %586 = vector.extract_strided_slice %560 {offsets = [0, 0], sizes = [2, 32], strides = [1, 1]} : vector<2x128xf32> to vector<2x32xf32>
    %587 = arith.negf %586 : vector<2x32xf32>
    %588 = math.exp %587 : vector<2x32xf32>
    %cst_136 = arith.constant 1.000000e+00 : f32
    %589 = vector.broadcast %cst_136 : f32 to vector<2x32xf32>
    %590 = arith.addf %589, %588 : vector<2x32xf32>
    %591 = arith.divf %589, %590 : vector<2x32xf32>
    %592 = vector.extract_strided_slice %560 {offsets = [0, 32], sizes = [2, 32], strides = [1, 1]} : vector<2x128xf32> to vector<2x32xf32>
    %593 = arith.negf %592 : vector<2x32xf32>
    %594 = math.exp %593 : vector<2x32xf32>
    %cst_137 = arith.constant 1.000000e+00 : f32
    %595 = vector.broadcast %cst_137 : f32 to vector<2x32xf32>
    %596 = arith.addf %595, %594 : vector<2x32xf32>
    %597 = arith.divf %595, %596 : vector<2x32xf32>
    %598 = vector.extract_strided_slice %560 {offsets = [0, 64], sizes = [2, 32], strides = [1, 1]} : vector<2x128xf32> to vector<2x32xf32>
    %599 = math.tanh %598 : vector<2x32xf32>
    %600 = vector.extract_strided_slice %560 {offsets = [0, 96], sizes = [2, 32], strides = [1, 1]} : vector<2x128xf32> to vector<2x32xf32>
    %601 = arith.negf %600 : vector<2x32xf32>
    %602 = math.exp %601 : vector<2x32xf32>
    %cst_138 = arith.constant 1.000000e+00 : f32
    %603 = vector.broadcast %cst_138 : f32 to vector<2x32xf32>
    %604 = arith.addf %603, %602 : vector<2x32xf32>
    %605 = arith.divf %603, %604 : vector<2x32xf32>
    %606 = arith.mulf %597, %552 : vector<2x32xf32>
    %607 = arith.mulf %591, %599 : vector<2x32xf32>
    %608 = arith.addf %606, %607 : vector<2x32xf32>
    %609 = math.tanh %608 : vector<2x32xf32>
    %610 = arith.mulf %605, %609 : vector<2x32xf32>
    %611 = arith.maximumf %529, %585 : vector<2x32xf32>
    %612 = arith.maximumf %554, %610 : vector<2x32xf32>
    %613 = vector.extract_strided_slice %490 {offsets = [4, 0], sizes = [2, 128], strides = [1, 1]} : vector<16x128xf32> to vector<2x128xf32>
    %cst_139 = arith.constant dense<0.000000e+00> : vector<2x128xf32>
    %614 = tpu.matmul %585, %496, %cst_139 {dimension_numbers = #tpu.dot_dimension_numbers<[1], [0], [0], [1], [0, 0, 1, 1], [], []>} : vector<2x32xf32>, vector<32x128xf32>, vector<2x128xf32> -> vector<2x128xf32>
    %615 = arith.addf %613, %614 : vector<2x128xf32>
    %616 = vector.extract_strided_slice %495 {offsets = [10, 0], sizes = [2, 128], strides = [1, 1]} : vector<16x128xf32> to vector<2x128xf32>
    %cst_140 = arith.constant dense<0.000000e+00> : vector<2x128xf32>
    %617 = tpu.matmul %610, %497, %cst_140 {dimension_numbers = #tpu.dot_dimension_numbers<[1], [0], [0], [1], [0, 0, 1, 1], [], []>} : vector<2x32xf32>, vector<32x128xf32>, vector<2x128xf32> -> vector<2x128xf32>
    %618 = arith.addf %616, %617 : vector<2x128xf32>
    %619 = vector.extract_strided_slice %615 {offsets = [0, 0], sizes = [2, 32], strides = [1, 1]} : vector<2x128xf32> to vector<2x32xf32>
    %620 = arith.negf %619 : vector<2x32xf32>
    %621 = math.exp %620 : vector<2x32xf32>
    %cst_141 = arith.constant 1.000000e+00 : f32
    %622 = vector.broadcast %cst_141 : f32 to vector<2x32xf32>
    %623 = arith.addf %622, %621 : vector<2x32xf32>
    %624 = arith.divf %622, %623 : vector<2x32xf32>
    %625 = vector.extract_strided_slice %615 {offsets = [0, 32], sizes = [2, 32], strides = [1, 1]} : vector<2x128xf32> to vector<2x32xf32>
    %626 = arith.negf %625 : vector<2x32xf32>
    %627 = math.exp %626 : vector<2x32xf32>
    %cst_142 = arith.constant 1.000000e+00 : f32
    %628 = vector.broadcast %cst_142 : f32 to vector<2x32xf32>
    %629 = arith.addf %628, %627 : vector<2x32xf32>
    %630 = arith.divf %628, %629 : vector<2x32xf32>
    %631 = vector.extract_strided_slice %615 {offsets = [0, 64], sizes = [2, 32], strides = [1, 1]} : vector<2x128xf32> to vector<2x32xf32>
    %632 = math.tanh %631 : vector<2x32xf32>
    %633 = vector.extract_strided_slice %615 {offsets = [0, 96], sizes = [2, 32], strides = [1, 1]} : vector<2x128xf32> to vector<2x32xf32>
    %634 = arith.negf %633 : vector<2x32xf32>
    %635 = math.exp %634 : vector<2x32xf32>
    %cst_143 = arith.constant 1.000000e+00 : f32
    %636 = vector.broadcast %cst_143 : f32 to vector<2x32xf32>
    %637 = arith.addf %636, %635 : vector<2x32xf32>
    %638 = arith.divf %636, %637 : vector<2x32xf32>
    %639 = arith.mulf %630, %583 : vector<2x32xf32>
    %640 = arith.mulf %624, %632 : vector<2x32xf32>
    %641 = arith.addf %639, %640 : vector<2x32xf32>
    %642 = math.tanh %641 : vector<2x32xf32>
    %643 = arith.mulf %638, %642 : vector<2x32xf32>
    %644 = vector.extract_strided_slice %618 {offsets = [0, 0], sizes = [2, 32], strides = [1, 1]} : vector<2x128xf32> to vector<2x32xf32>
    %645 = arith.negf %644 : vector<2x32xf32>
    %646 = math.exp %645 : vector<2x32xf32>
    %cst_144 = arith.constant 1.000000e+00 : f32
    %647 = vector.broadcast %cst_144 : f32 to vector<2x32xf32>
    %648 = arith.addf %647, %646 : vector<2x32xf32>
    %649 = arith.divf %647, %648 : vector<2x32xf32>
    %650 = vector.extract_strided_slice %618 {offsets = [0, 32], sizes = [2, 32], strides = [1, 1]} : vector<2x128xf32> to vector<2x32xf32>
    %651 = arith.negf %650 : vector<2x32xf32>
    %652 = math.exp %651 : vector<2x32xf32>
    %cst_145 = arith.constant 1.000000e+00 : f32
    %653 = vector.broadcast %cst_145 : f32 to vector<2x32xf32>
    %654 = arith.addf %653, %652 : vector<2x32xf32>
    %655 = arith.divf %653, %654 : vector<2x32xf32>
    %656 = vector.extract_strided_slice %618 {offsets = [0, 64], sizes = [2, 32], strides = [1, 1]} : vector<2x128xf32> to vector<2x32xf32>
    %657 = math.tanh %656 : vector<2x32xf32>
    %658 = vector.extract_strided_slice %618 {offsets = [0, 96], sizes = [2, 32], strides = [1, 1]} : vector<2x128xf32> to vector<2x32xf32>
    %659 = arith.negf %658 : vector<2x32xf32>
    %660 = math.exp %659 : vector<2x32xf32>
    %cst_146 = arith.constant 1.000000e+00 : f32
    %661 = vector.broadcast %cst_146 : f32 to vector<2x32xf32>
    %662 = arith.addf %661, %660 : vector<2x32xf32>
    %663 = arith.divf %661, %662 : vector<2x32xf32>
    %664 = arith.mulf %655, %608 : vector<2x32xf32>
    %665 = arith.mulf %649, %657 : vector<2x32xf32>
    %666 = arith.addf %664, %665 : vector<2x32xf32>
    %667 = math.tanh %666 : vector<2x32xf32>
    %668 = arith.mulf %663, %667 : vector<2x32xf32>
    %669 = arith.maximumf %611, %643 : vector<2x32xf32>
    %670 = arith.maximumf %612, %668 : vector<2x32xf32>
    %671 = vector.extract_strided_slice %490 {offsets = [6, 0], sizes = [2, 128], strides = [1, 1]} : vector<16x128xf32> to vector<2x128xf32>
    %cst_147 = arith.constant dense<0.000000e+00> : vector<2x128xf32>
    %672 = tpu.matmul %643, %496, %cst_147 {dimension_numbers = #tpu.dot_dimension_numbers<[1], [0], [0], [1], [0, 0, 1, 1], [], []>} : vector<2x32xf32>, vector<32x128xf32>, vector<2x128xf32> -> vector<2x128xf32>
    %673 = arith.addf %671, %672 : vector<2x128xf32>
    %674 = vector.extract_strided_slice %495 {offsets = [8, 0], sizes = [2, 128], strides = [1, 1]} : vector<16x128xf32> to vector<2x128xf32>
    %cst_148 = arith.constant dense<0.000000e+00> : vector<2x128xf32>
    %675 = tpu.matmul %668, %497, %cst_148 {dimension_numbers = #tpu.dot_dimension_numbers<[1], [0], [0], [1], [0, 0, 1, 1], [], []>} : vector<2x32xf32>, vector<32x128xf32>, vector<2x128xf32> -> vector<2x128xf32>
    %676 = arith.addf %674, %675 : vector<2x128xf32>
    %677 = vector.extract_strided_slice %673 {offsets = [0, 0], sizes = [2, 32], strides = [1, 1]} : vector<2x128xf32> to vector<2x32xf32>
    %678 = arith.negf %677 : vector<2x32xf32>
    %679 = math.exp %678 : vector<2x32xf32>
    %cst_149 = arith.constant 1.000000e+00 : f32
    %680 = vector.broadcast %cst_149 : f32 to vector<2x32xf32>
    %681 = arith.addf %680, %679 : vector<2x32xf32>
    %682 = arith.divf %680, %681 : vector<2x32xf32>
    %683 = vector.extract_strided_slice %673 {offsets = [0, 32], sizes = [2, 32], strides = [1, 1]} : vector<2x128xf32> to vector<2x32xf32>
    %684 = arith.negf %683 : vector<2x32xf32>
    %685 = math.exp %684 : vector<2x32xf32>
    %cst_150 = arith.constant 1.000000e+00 : f32
    %686 = vector.broadcast %cst_150 : f32 to vector<2x32xf32>
    %687 = arith.addf %686, %685 : vector<2x32xf32>
    %688 = arith.divf %686, %687 : vector<2x32xf32>
    %689 = vector.extract_strided_slice %673 {offsets = [0, 64], sizes = [2, 32], strides = [1, 1]} : vector<2x128xf32> to vector<2x32xf32>
    %690 = math.tanh %689 : vector<2x32xf32>
    %691 = vector.extract_strided_slice %673 {offsets = [0, 96], sizes = [2, 32], strides = [1, 1]} : vector<2x128xf32> to vector<2x32xf32>
    %692 = arith.negf %691 : vector<2x32xf32>
    %693 = math.exp %692 : vector<2x32xf32>
    %cst_151 = arith.constant 1.000000e+00 : f32
    %694 = vector.broadcast %cst_151 : f32 to vector<2x32xf32>
    %695 = arith.addf %694, %693 : vector<2x32xf32>
    %696 = arith.divf %694, %695 : vector<2x32xf32>
    %697 = arith.mulf %688, %641 : vector<2x32xf32>
    %698 = arith.mulf %682, %690 : vector<2x32xf32>
    %699 = arith.addf %697, %698 : vector<2x32xf32>
    %700 = math.tanh %699 : vector<2x32xf32>
    %701 = arith.mulf %696, %700 : vector<2x32xf32>
    %702 = vector.extract_strided_slice %676 {offsets = [0, 0], sizes = [2, 32], strides = [1, 1]} : vector<2x128xf32> to vector<2x32xf32>
    %703 = arith.negf %702 : vector<2x32xf32>
    %704 = math.exp %703 : vector<2x32xf32>
    %cst_152 = arith.constant 1.000000e+00 : f32
    %705 = vector.broadcast %cst_152 : f32 to vector<2x32xf32>
    %706 = arith.addf %705, %704 : vector<2x32xf32>
    %707 = arith.divf %705, %706 : vector<2x32xf32>
    %708 = vector.extract_strided_slice %676 {offsets = [0, 32], sizes = [2, 32], strides = [1, 1]} : vector<2x128xf32> to vector<2x32xf32>
    %709 = arith.negf %708 : vector<2x32xf32>
    %710 = math.exp %709 : vector<2x32xf32>
    %cst_153 = arith.constant 1.000000e+00 : f32
    %711 = vector.broadcast %cst_153 : f32 to vector<2x32xf32>
    %712 = arith.addf %711, %710 : vector<2x32xf32>
    %713 = arith.divf %711, %712 : vector<2x32xf32>
    %714 = vector.extract_strided_slice %676 {offsets = [0, 64], sizes = [2, 32], strides = [1, 1]} : vector<2x128xf32> to vector<2x32xf32>
    %715 = math.tanh %714 : vector<2x32xf32>
    %716 = vector.extract_strided_slice %676 {offsets = [0, 96], sizes = [2, 32], strides = [1, 1]} : vector<2x128xf32> to vector<2x32xf32>
    %717 = arith.negf %716 : vector<2x32xf32>
    %718 = math.exp %717 : vector<2x32xf32>
    %cst_154 = arith.constant 1.000000e+00 : f32
    %719 = vector.broadcast %cst_154 : f32 to vector<2x32xf32>
    %720 = arith.addf %719, %718 : vector<2x32xf32>
    %721 = arith.divf %719, %720 : vector<2x32xf32>
    %722 = arith.mulf %713, %666 : vector<2x32xf32>
    %723 = arith.mulf %707, %715 : vector<2x32xf32>
    %724 = arith.addf %722, %723 : vector<2x32xf32>
    %725 = math.tanh %724 : vector<2x32xf32>
    %726 = arith.mulf %721, %725 : vector<2x32xf32>
    %727 = arith.maximumf %669, %701 : vector<2x32xf32>
    %728 = arith.maximumf %670, %726 : vector<2x32xf32>
    %729 = vector.extract_strided_slice %490 {offsets = [8, 0], sizes = [2, 128], strides = [1, 1]} : vector<16x128xf32> to vector<2x128xf32>
    %cst_155 = arith.constant dense<0.000000e+00> : vector<2x128xf32>
    %730 = tpu.matmul %701, %496, %cst_155 {dimension_numbers = #tpu.dot_dimension_numbers<[1], [0], [0], [1], [0, 0, 1, 1], [], []>} : vector<2x32xf32>, vector<32x128xf32>, vector<2x128xf32> -> vector<2x128xf32>
    %731 = arith.addf %729, %730 : vector<2x128xf32>
    %732 = vector.extract_strided_slice %495 {offsets = [6, 0], sizes = [2, 128], strides = [1, 1]} : vector<16x128xf32> to vector<2x128xf32>
    %cst_156 = arith.constant dense<0.000000e+00> : vector<2x128xf32>
    %733 = tpu.matmul %726, %497, %cst_156 {dimension_numbers = #tpu.dot_dimension_numbers<[1], [0], [0], [1], [0, 0, 1, 1], [], []>} : vector<2x32xf32>, vector<32x128xf32>, vector<2x128xf32> -> vector<2x128xf32>
    %734 = arith.addf %732, %733 : vector<2x128xf32>
    %735 = vector.extract_strided_slice %731 {offsets = [0, 0], sizes = [2, 32], strides = [1, 1]} : vector<2x128xf32> to vector<2x32xf32>
    %736 = arith.negf %735 : vector<2x32xf32>
    %737 = math.exp %736 : vector<2x32xf32>
    %cst_157 = arith.constant 1.000000e+00 : f32
    %738 = vector.broadcast %cst_157 : f32 to vector<2x32xf32>
    %739 = arith.addf %738, %737 : vector<2x32xf32>
    %740 = arith.divf %738, %739 : vector<2x32xf32>
    %741 = vector.extract_strided_slice %731 {offsets = [0, 32], sizes = [2, 32], strides = [1, 1]} : vector<2x128xf32> to vector<2x32xf32>
    %742 = arith.negf %741 : vector<2x32xf32>
    %743 = math.exp %742 : vector<2x32xf32>
    %cst_158 = arith.constant 1.000000e+00 : f32
    %744 = vector.broadcast %cst_158 : f32 to vector<2x32xf32>
    %745 = arith.addf %744, %743 : vector<2x32xf32>
    %746 = arith.divf %744, %745 : vector<2x32xf32>
    %747 = vector.extract_strided_slice %731 {offsets = [0, 64], sizes = [2, 32], strides = [1, 1]} : vector<2x128xf32> to vector<2x32xf32>
    %748 = math.tanh %747 : vector<2x32xf32>
    %749 = vector.extract_strided_slice %731 {offsets = [0, 96], sizes = [2, 32], strides = [1, 1]} : vector<2x128xf32> to vector<2x32xf32>
    %750 = arith.negf %749 : vector<2x32xf32>
    %751 = math.exp %750 : vector<2x32xf32>
    %cst_159 = arith.constant 1.000000e+00 : f32
    %752 = vector.broadcast %cst_159 : f32 to vector<2x32xf32>
    %753 = arith.addf %752, %751 : vector<2x32xf32>
    %754 = arith.divf %752, %753 : vector<2x32xf32>
    %755 = arith.mulf %746, %699 : vector<2x32xf32>
    %756 = arith.mulf %740, %748 : vector<2x32xf32>
    %757 = arith.addf %755, %756 : vector<2x32xf32>
    %758 = math.tanh %757 : vector<2x32xf32>
    %759 = arith.mulf %754, %758 : vector<2x32xf32>
    %760 = vector.extract_strided_slice %734 {offsets = [0, 0], sizes = [2, 32], strides = [1, 1]} : vector<2x128xf32> to vector<2x32xf32>
    %761 = arith.negf %760 : vector<2x32xf32>
    %762 = math.exp %761 : vector<2x32xf32>
    %cst_160 = arith.constant 1.000000e+00 : f32
    %763 = vector.broadcast %cst_160 : f32 to vector<2x32xf32>
    %764 = arith.addf %763, %762 : vector<2x32xf32>
    %765 = arith.divf %763, %764 : vector<2x32xf32>
    %766 = vector.extract_strided_slice %734 {offsets = [0, 32], sizes = [2, 32], strides = [1, 1]} : vector<2x128xf32> to vector<2x32xf32>
    %767 = arith.negf %766 : vector<2x32xf32>
    %768 = math.exp %767 : vector<2x32xf32>
    %cst_161 = arith.constant 1.000000e+00 : f32
    %769 = vector.broadcast %cst_161 : f32 to vector<2x32xf32>
    %770 = arith.addf %769, %768 : vector<2x32xf32>
    %771 = arith.divf %769, %770 : vector<2x32xf32>
    %772 = vector.extract_strided_slice %734 {offsets = [0, 64], sizes = [2, 32], strides = [1, 1]} : vector<2x128xf32> to vector<2x32xf32>
    %773 = math.tanh %772 : vector<2x32xf32>
    %774 = vector.extract_strided_slice %734 {offsets = [0, 96], sizes = [2, 32], strides = [1, 1]} : vector<2x128xf32> to vector<2x32xf32>
    %775 = arith.negf %774 : vector<2x32xf32>
    %776 = math.exp %775 : vector<2x32xf32>
    %cst_162 = arith.constant 1.000000e+00 : f32
    %777 = vector.broadcast %cst_162 : f32 to vector<2x32xf32>
    %778 = arith.addf %777, %776 : vector<2x32xf32>
    %779 = arith.divf %777, %778 : vector<2x32xf32>
    %780 = arith.mulf %771, %724 : vector<2x32xf32>
    %781 = arith.mulf %765, %773 : vector<2x32xf32>
    %782 = arith.addf %780, %781 : vector<2x32xf32>
    %783 = math.tanh %782 : vector<2x32xf32>
    %784 = arith.mulf %779, %783 : vector<2x32xf32>
    %785 = arith.maximumf %727, %759 : vector<2x32xf32>
    %786 = arith.maximumf %728, %784 : vector<2x32xf32>
    %787 = vector.extract_strided_slice %490 {offsets = [10, 0], sizes = [2, 128], strides = [1, 1]} : vector<16x128xf32> to vector<2x128xf32>
    %cst_163 = arith.constant dense<0.000000e+00> : vector<2x128xf32>
    %788 = tpu.matmul %759, %496, %cst_163 {dimension_numbers = #tpu.dot_dimension_numbers<[1], [0], [0], [1], [0, 0, 1, 1], [], []>} : vector<2x32xf32>, vector<32x128xf32>, vector<2x128xf32> -> vector<2x128xf32>
    %789 = arith.addf %787, %788 : vector<2x128xf32>
    %790 = vector.extract_strided_slice %495 {offsets = [4, 0], sizes = [2, 128], strides = [1, 1]} : vector<16x128xf32> to vector<2x128xf32>
    %cst_164 = arith.constant dense<0.000000e+00> : vector<2x128xf32>
    %791 = tpu.matmul %784, %497, %cst_164 {dimension_numbers = #tpu.dot_dimension_numbers<[1], [0], [0], [1], [0, 0, 1, 1], [], []>} : vector<2x32xf32>, vector<32x128xf32>, vector<2x128xf32> -> vector<2x128xf32>
    %792 = arith.addf %790, %791 : vector<2x128xf32>
    %793 = vector.extract_strided_slice %789 {offsets = [0, 0], sizes = [2, 32], strides = [1, 1]} : vector<2x128xf32> to vector<2x32xf32>
    %794 = arith.negf %793 : vector<2x32xf32>
    %795 = math.exp %794 : vector<2x32xf32>
    %cst_165 = arith.constant 1.000000e+00 : f32
    %796 = vector.broadcast %cst_165 : f32 to vector<2x32xf32>
    %797 = arith.addf %796, %795 : vector<2x32xf32>
    %798 = arith.divf %796, %797 : vector<2x32xf32>
    %799 = vector.extract_strided_slice %789 {offsets = [0, 32], sizes = [2, 32], strides = [1, 1]} : vector<2x128xf32> to vector<2x32xf32>
    %800 = arith.negf %799 : vector<2x32xf32>
    %801 = math.exp %800 : vector<2x32xf32>
    %cst_166 = arith.constant 1.000000e+00 : f32
    %802 = vector.broadcast %cst_166 : f32 to vector<2x32xf32>
    %803 = arith.addf %802, %801 : vector<2x32xf32>
    %804 = arith.divf %802, %803 : vector<2x32xf32>
    %805 = vector.extract_strided_slice %789 {offsets = [0, 64], sizes = [2, 32], strides = [1, 1]} : vector<2x128xf32> to vector<2x32xf32>
    %806 = math.tanh %805 : vector<2x32xf32>
    %807 = vector.extract_strided_slice %789 {offsets = [0, 96], sizes = [2, 32], strides = [1, 1]} : vector<2x128xf32> to vector<2x32xf32>
    %808 = arith.negf %807 : vector<2x32xf32>
    %809 = math.exp %808 : vector<2x32xf32>
    %cst_167 = arith.constant 1.000000e+00 : f32
    %810 = vector.broadcast %cst_167 : f32 to vector<2x32xf32>
    %811 = arith.addf %810, %809 : vector<2x32xf32>
    %812 = arith.divf %810, %811 : vector<2x32xf32>
    %813 = arith.mulf %804, %757 : vector<2x32xf32>
    %814 = arith.mulf %798, %806 : vector<2x32xf32>
    %815 = arith.addf %813, %814 : vector<2x32xf32>
    %816 = math.tanh %815 : vector<2x32xf32>
    %817 = arith.mulf %812, %816 : vector<2x32xf32>
    %818 = vector.extract_strided_slice %792 {offsets = [0, 0], sizes = [2, 32], strides = [1, 1]} : vector<2x128xf32> to vector<2x32xf32>
    %819 = arith.negf %818 : vector<2x32xf32>
    %820 = math.exp %819 : vector<2x32xf32>
    %cst_168 = arith.constant 1.000000e+00 : f32
    %821 = vector.broadcast %cst_168 : f32 to vector<2x32xf32>
    %822 = arith.addf %821, %820 : vector<2x32xf32>
    %823 = arith.divf %821, %822 : vector<2x32xf32>
    %824 = vector.extract_strided_slice %792 {offsets = [0, 32], sizes = [2, 32], strides = [1, 1]} : vector<2x128xf32> to vector<2x32xf32>
    %825 = arith.negf %824 : vector<2x32xf32>
    %826 = math.exp %825 : vector<2x32xf32>
    %cst_169 = arith.constant 1.000000e+00 : f32
    %827 = vector.broadcast %cst_169 : f32 to vector<2x32xf32>
    %828 = arith.addf %827, %826 : vector<2x32xf32>
    %829 = arith.divf %827, %828 : vector<2x32xf32>
    %830 = vector.extract_strided_slice %792 {offsets = [0, 64], sizes = [2, 32], strides = [1, 1]} : vector<2x128xf32> to vector<2x32xf32>
    %831 = math.tanh %830 : vector<2x32xf32>
    %832 = vector.extract_strided_slice %792 {offsets = [0, 96], sizes = [2, 32], strides = [1, 1]} : vector<2x128xf32> to vector<2x32xf32>
    %833 = arith.negf %832 : vector<2x32xf32>
    %834 = math.exp %833 : vector<2x32xf32>
    %cst_170 = arith.constant 1.000000e+00 : f32
    %835 = vector.broadcast %cst_170 : f32 to vector<2x32xf32>
    %836 = arith.addf %835, %834 : vector<2x32xf32>
    %837 = arith.divf %835, %836 : vector<2x32xf32>
    %838 = arith.mulf %829, %782 : vector<2x32xf32>
    %839 = arith.mulf %823, %831 : vector<2x32xf32>
    %840 = arith.addf %838, %839 : vector<2x32xf32>
    %841 = math.tanh %840 : vector<2x32xf32>
    %842 = arith.mulf %837, %841 : vector<2x32xf32>
    %843 = arith.maximumf %785, %817 : vector<2x32xf32>
    %844 = arith.maximumf %786, %842 : vector<2x32xf32>
    %845 = vector.extract_strided_slice %490 {offsets = [12, 0], sizes = [2, 128], strides = [1, 1]} : vector<16x128xf32> to vector<2x128xf32>
    %cst_171 = arith.constant dense<0.000000e+00> : vector<2x128xf32>
    %846 = tpu.matmul %817, %496, %cst_171 {dimension_numbers = #tpu.dot_dimension_numbers<[1], [0], [0], [1], [0, 0, 1, 1], [], []>} : vector<2x32xf32>, vector<32x128xf32>, vector<2x128xf32> -> vector<2x128xf32>
    %847 = arith.addf %845, %846 : vector<2x128xf32>
    %848 = vector.extract_strided_slice %495 {offsets = [2, 0], sizes = [2, 128], strides = [1, 1]} : vector<16x128xf32> to vector<2x128xf32>
    %cst_172 = arith.constant dense<0.000000e+00> : vector<2x128xf32>
    %849 = tpu.matmul %842, %497, %cst_172 {dimension_numbers = #tpu.dot_dimension_numbers<[1], [0], [0], [1], [0, 0, 1, 1], [], []>} : vector<2x32xf32>, vector<32x128xf32>, vector<2x128xf32> -> vector<2x128xf32>
    %850 = arith.addf %848, %849 : vector<2x128xf32>
    %851 = vector.extract_strided_slice %847 {offsets = [0, 0], sizes = [2, 32], strides = [1, 1]} : vector<2x128xf32> to vector<2x32xf32>
    %852 = arith.negf %851 : vector<2x32xf32>
    %853 = math.exp %852 : vector<2x32xf32>
    %cst_173 = arith.constant 1.000000e+00 : f32
    %854 = vector.broadcast %cst_173 : f32 to vector<2x32xf32>
    %855 = arith.addf %854, %853 : vector<2x32xf32>
    %856 = arith.divf %854, %855 : vector<2x32xf32>
    %857 = vector.extract_strided_slice %847 {offsets = [0, 32], sizes = [2, 32], strides = [1, 1]} : vector<2x128xf32> to vector<2x32xf32>
    %858 = arith.negf %857 : vector<2x32xf32>
    %859 = math.exp %858 : vector<2x32xf32>
    %cst_174 = arith.constant 1.000000e+00 : f32
    %860 = vector.broadcast %cst_174 : f32 to vector<2x32xf32>
    %861 = arith.addf %860, %859 : vector<2x32xf32>
    %862 = arith.divf %860, %861 : vector<2x32xf32>
    %863 = vector.extract_strided_slice %847 {offsets = [0, 64], sizes = [2, 32], strides = [1, 1]} : vector<2x128xf32> to vector<2x32xf32>
    %864 = math.tanh %863 : vector<2x32xf32>
    %865 = vector.extract_strided_slice %847 {offsets = [0, 96], sizes = [2, 32], strides = [1, 1]} : vector<2x128xf32> to vector<2x32xf32>
    %866 = arith.negf %865 : vector<2x32xf32>
    %867 = math.exp %866 : vector<2x32xf32>
    %cst_175 = arith.constant 1.000000e+00 : f32
    %868 = vector.broadcast %cst_175 : f32 to vector<2x32xf32>
    %869 = arith.addf %868, %867 : vector<2x32xf32>
    %870 = arith.divf %868, %869 : vector<2x32xf32>
    %871 = arith.mulf %862, %815 : vector<2x32xf32>
    %872 = arith.mulf %856, %864 : vector<2x32xf32>
    %873 = arith.addf %871, %872 : vector<2x32xf32>
    %874 = math.tanh %873 : vector<2x32xf32>
    %875 = arith.mulf %870, %874 : vector<2x32xf32>
    %876 = vector.extract_strided_slice %850 {offsets = [0, 0], sizes = [2, 32], strides = [1, 1]} : vector<2x128xf32> to vector<2x32xf32>
    %877 = arith.negf %876 : vector<2x32xf32>
    %878 = math.exp %877 : vector<2x32xf32>
    %cst_176 = arith.constant 1.000000e+00 : f32
    %879 = vector.broadcast %cst_176 : f32 to vector<2x32xf32>
    %880 = arith.addf %879, %878 : vector<2x32xf32>
    %881 = arith.divf %879, %880 : vector<2x32xf32>
    %882 = vector.extract_strided_slice %850 {offsets = [0, 32], sizes = [2, 32], strides = [1, 1]} : vector<2x128xf32> to vector<2x32xf32>
    %883 = arith.negf %882 : vector<2x32xf32>
    %884 = math.exp %883 : vector<2x32xf32>
    %cst_177 = arith.constant 1.000000e+00 : f32
    %885 = vector.broadcast %cst_177 : f32 to vector<2x32xf32>
    %886 = arith.addf %885, %884 : vector<2x32xf32>
    %887 = arith.divf %885, %886 : vector<2x32xf32>
    %888 = vector.extract_strided_slice %850 {offsets = [0, 64], sizes = [2, 32], strides = [1, 1]} : vector<2x128xf32> to vector<2x32xf32>
    %889 = math.tanh %888 : vector<2x32xf32>
    %890 = vector.extract_strided_slice %850 {offsets = [0, 96], sizes = [2, 32], strides = [1, 1]} : vector<2x128xf32> to vector<2x32xf32>
    %891 = arith.negf %890 : vector<2x32xf32>
    %892 = math.exp %891 : vector<2x32xf32>
    %cst_178 = arith.constant 1.000000e+00 : f32
    %893 = vector.broadcast %cst_178 : f32 to vector<2x32xf32>
    %894 = arith.addf %893, %892 : vector<2x32xf32>
    %895 = arith.divf %893, %894 : vector<2x32xf32>
    %896 = arith.mulf %887, %840 : vector<2x32xf32>
    %897 = arith.mulf %881, %889 : vector<2x32xf32>
    %898 = arith.addf %896, %897 : vector<2x32xf32>
    %899 = math.tanh %898 : vector<2x32xf32>
    %900 = arith.mulf %895, %899 : vector<2x32xf32>
    %901 = arith.maximumf %843, %875 : vector<2x32xf32>
    %902 = arith.maximumf %844, %900 : vector<2x32xf32>
    %903 = vector.extract_strided_slice %490 {offsets = [14, 0], sizes = [2, 128], strides = [1, 1]} : vector<16x128xf32> to vector<2x128xf32>
    %cst_179 = arith.constant dense<0.000000e+00> : vector<2x128xf32>
    %904 = tpu.matmul %875, %496, %cst_179 {dimension_numbers = #tpu.dot_dimension_numbers<[1], [0], [0], [1], [0, 0, 1, 1], [], []>} : vector<2x32xf32>, vector<32x128xf32>, vector<2x128xf32> -> vector<2x128xf32>
    %905 = arith.addf %903, %904 : vector<2x128xf32>
    %906 = vector.extract_strided_slice %495 {offsets = [0, 0], sizes = [2, 128], strides = [1, 1]} : vector<16x128xf32> to vector<2x128xf32>
    %cst_180 = arith.constant dense<0.000000e+00> : vector<2x128xf32>
    %907 = tpu.matmul %900, %497, %cst_180 {dimension_numbers = #tpu.dot_dimension_numbers<[1], [0], [0], [1], [0, 0, 1, 1], [], []>} : vector<2x32xf32>, vector<32x128xf32>, vector<2x128xf32> -> vector<2x128xf32>
    %908 = arith.addf %906, %907 : vector<2x128xf32>
    %909 = vector.extract_strided_slice %905 {offsets = [0, 0], sizes = [2, 32], strides = [1, 1]} : vector<2x128xf32> to vector<2x32xf32>
    %910 = arith.negf %909 : vector<2x32xf32>
    %911 = math.exp %910 : vector<2x32xf32>
    %cst_181 = arith.constant 1.000000e+00 : f32
    %912 = vector.broadcast %cst_181 : f32 to vector<2x32xf32>
    %913 = arith.addf %912, %911 : vector<2x32xf32>
    %914 = arith.divf %912, %913 : vector<2x32xf32>
    %915 = vector.extract_strided_slice %905 {offsets = [0, 32], sizes = [2, 32], strides = [1, 1]} : vector<2x128xf32> to vector<2x32xf32>
    %916 = arith.negf %915 : vector<2x32xf32>
    %917 = math.exp %916 : vector<2x32xf32>
    %cst_182 = arith.constant 1.000000e+00 : f32
    %918 = vector.broadcast %cst_182 : f32 to vector<2x32xf32>
    %919 = arith.addf %918, %917 : vector<2x32xf32>
    %920 = arith.divf %918, %919 : vector<2x32xf32>
    %921 = vector.extract_strided_slice %905 {offsets = [0, 64], sizes = [2, 32], strides = [1, 1]} : vector<2x128xf32> to vector<2x32xf32>
    %922 = math.tanh %921 : vector<2x32xf32>
    %923 = vector.extract_strided_slice %905 {offsets = [0, 96], sizes = [2, 32], strides = [1, 1]} : vector<2x128xf32> to vector<2x32xf32>
    %924 = arith.negf %923 : vector<2x32xf32>
    %925 = math.exp %924 : vector<2x32xf32>
    %cst_183 = arith.constant 1.000000e+00 : f32
    %926 = vector.broadcast %cst_183 : f32 to vector<2x32xf32>
    %927 = arith.addf %926, %925 : vector<2x32xf32>
    %928 = arith.divf %926, %927 : vector<2x32xf32>
    %929 = arith.mulf %920, %873 : vector<2x32xf32>
    %930 = arith.mulf %914, %922 : vector<2x32xf32>
    %931 = arith.addf %929, %930 : vector<2x32xf32>
    %932 = math.tanh %931 : vector<2x32xf32>
    %933 = arith.mulf %928, %932 : vector<2x32xf32>
    %934 = vector.extract_strided_slice %908 {offsets = [0, 0], sizes = [2, 32], strides = [1, 1]} : vector<2x128xf32> to vector<2x32xf32>
    %935 = arith.negf %934 : vector<2x32xf32>
    %936 = math.exp %935 : vector<2x32xf32>
    %cst_184 = arith.constant 1.000000e+00 : f32
    %937 = vector.broadcast %cst_184 : f32 to vector<2x32xf32>
    %938 = arith.addf %937, %936 : vector<2x32xf32>
    %939 = arith.divf %937, %938 : vector<2x32xf32>
    %940 = vector.extract_strided_slice %908 {offsets = [0, 32], sizes = [2, 32], strides = [1, 1]} : vector<2x128xf32> to vector<2x32xf32>
    %941 = arith.negf %940 : vector<2x32xf32>
    %942 = math.exp %941 : vector<2x32xf32>
    %cst_185 = arith.constant 1.000000e+00 : f32
    %943 = vector.broadcast %cst_185 : f32 to vector<2x32xf32>
    %944 = arith.addf %943, %942 : vector<2x32xf32>
    %945 = arith.divf %943, %944 : vector<2x32xf32>
    %946 = vector.extract_strided_slice %908 {offsets = [0, 64], sizes = [2, 32], strides = [1, 1]} : vector<2x128xf32> to vector<2x32xf32>
    %947 = math.tanh %946 : vector<2x32xf32>
    %948 = vector.extract_strided_slice %908 {offsets = [0, 96], sizes = [2, 32], strides = [1, 1]} : vector<2x128xf32> to vector<2x32xf32>
    %949 = arith.negf %948 : vector<2x32xf32>
    %950 = math.exp %949 : vector<2x32xf32>
    %cst_186 = arith.constant 1.000000e+00 : f32
    %951 = vector.broadcast %cst_186 : f32 to vector<2x32xf32>
    %952 = arith.addf %951, %950 : vector<2x32xf32>
    %953 = arith.divf %951, %952 : vector<2x32xf32>
    %954 = arith.mulf %945, %898 : vector<2x32xf32>
    %955 = arith.mulf %939, %947 : vector<2x32xf32>
    %956 = arith.addf %954, %955 : vector<2x32xf32>
    %957 = math.tanh %956 : vector<2x32xf32>
    %958 = arith.mulf %953, %957 : vector<2x32xf32>
    %959 = arith.maximumf %901, %933 : vector<2x32xf32>
    %960 = arith.maximumf %902, %958 : vector<2x32xf32>
    %961 = tpu.concatenate %959, %960 in 1 : vector<2x32xf32>, vector<2x32xf32> -> vector<2x64xf32>
    %c0_187 = arith.constant 0 : index
    %c0_188 = arith.constant 0 : index
    %962 = vector.load %arg14[%c0_187, %c0_188] : memref<64x32xf32, #tpu.memory_space<vmem>>, vector<64x32xf32>
    %cst_189 = arith.constant dense<0.000000e+00> : vector<2x32xf32>
    %963 = tpu.matmul %961, %962, %cst_189 {dimension_numbers = #tpu.dot_dimension_numbers<[1], [0], [0], [1], [0, 0, 1, 1], [], []>} : vector<2x64xf32>, vector<64x32xf32>, vector<2x32xf32> -> vector<2x32xf32>
    %c0_190 = arith.constant 0 : index
    %c0_191 = arith.constant 0 : index
    %964 = vector.load %arg15[%c0_190, %c0_191] : memref<1x32xf32, #tpu.memory_space<vmem>>, vector<1x32xf32>
    %965 = vector.broadcast %964 : vector<1x32xf32> to vector<2x32xf32>
    %966 = arith.addf %963, %965 : vector<2x32xf32>
    %cst_192 = arith.constant 0.000000e+00 : f32
    %967 = vector.broadcast %cst_192 : f32 to vector<2x32xf32>
    %968 = arith.maximumf %966, %967 : vector<2x32xf32>
    %c0_193 = arith.constant 0 : index
    %c0_194 = arith.constant 0 : index
    %969 = vector.load %arg16[%c0_193, %c0_194] : memref<32x32xf32, #tpu.memory_space<vmem>>, vector<32x32xf32>
    %cst_195 = arith.constant dense<0.000000e+00> : vector<2x32xf32>
    %970 = tpu.matmul %968, %969, %cst_195 {dimension_numbers = #tpu.dot_dimension_numbers<[1], [0], [0], [1], [0, 0, 1, 1], [], []>} : vector<2x32xf32>, vector<32x32xf32>, vector<2x32xf32> -> vector<2x32xf32>
    %c0_196 = arith.constant 0 : index
    %c0_197 = arith.constant 0 : index
    %971 = vector.load %arg17[%c0_196, %c0_197] : memref<1x32xf32, #tpu.memory_space<vmem>>, vector<1x32xf32>
    %972 = vector.broadcast %971 : vector<1x32xf32> to vector<2x32xf32>
    %973 = arith.addf %970, %972 : vector<2x32xf32>
    %cst_198 = arith.constant 0.000000e+00 : f32
    %974 = vector.broadcast %cst_198 : f32 to vector<2x32xf32>
    %975 = arith.maximumf %973, %974 : vector<2x32xf32>
    %c0_199 = arith.constant 0 : index
    %c0_200 = arith.constant 0 : index
    %976 = vector.load %arg18[%c0_199, %c0_200] : memref<32x2xf32, #tpu.memory_space<vmem>>, vector<32x2xf32>
    %cst_201 = arith.constant dense<0.000000e+00> : vector<2x2xf32>
    %977 = tpu.matmul %975, %976, %cst_201 {dimension_numbers = #tpu.dot_dimension_numbers<[1], [0], [0], [1], [0, 0, 1, 1], [], []>} : vector<2x32xf32>, vector<32x2xf32>, vector<2x2xf32> -> vector<2x2xf32>
    %c0_202 = arith.constant 0 : index
    %c0_203 = arith.constant 0 : index
    %978 = vector.load %arg19[%c0_202, %c0_203] : memref<1x2xf32, #tpu.memory_space<vmem>>, vector<1x2xf32>
    %979 = vector.broadcast %978 : vector<1x2xf32> to vector<2x2xf32>
    %980 = arith.addf %977, %979 : vector<2x2xf32>
    %c0_204 = arith.constant 0 : index
    %c0_205 = arith.constant 0 : index
    %981 = vector.load %arg20[%c0_204, %c0_205] : memref<2x2xf32, #tpu.memory_space<vmem>>, vector<2x2xf32>
    tpu.vector_store %arg20[%c0_204, %c0_205], %980 {strides = array<i32>} : memref<2x2xf32, #tpu.memory_space<vmem>>, vector<2x2xf32>,
    return
  }
}

</mosaic_0001>

<llo_original>
// kernel: lstm_score_forward.1
$region0: #{lstm_score_forward.1}
  #allocation0 [shape = 'u32[]', space=smem, size = 0x4, offset = 0x4, fixed_abs, tag = 'smem constant byte address 0x4 - core index']
  #allocation1 [shape = 'u32[144,128]{1,0:T(1,128)}', space=vmem, size = 0x12000, scoped, tag = 'internal scratch']
  #allocation2 [shape = 'f32[16,64]{1,0:T(8,128)}', space=vmem, size = 0x2000, scoped, tag = 'scratch operand']
  %s0 = inlined_call_operand.vmem [shape: s32[16,1], index: 0, kind: input, shape index: {}]
  %s1 = inlined_call_operand.vmem [shape: f32[56,32], index: 1, kind: input, shape index: {}]
  %s2 = inlined_call_operand.vmem [shape: f32[32,128], index: 2, kind: input, shape index: {}]
  %s3 = inlined_call_operand.vmem [shape: f32[32,128], index: 3, kind: input, shape index: {}]
  %s4 = inlined_call_operand.vmem [shape: f32[1,128], index: 4, kind: input, shape index: {}]
  %s5 = inlined_call_operand.vmem [shape: f32[32,128], index: 5, kind: input, shape index: {}]
  %s6 = inlined_call_operand.vmem [shape: f32[32,128], index: 6, kind: input, shape index: {}]
  %s7 = inlined_call_operand.hbm [shape: f32[1,128], index: 7, kind: input, shape index: {}]
  %s8 = inlined_call_operand.vmem [shape: f32[64,128], index: 8, kind: input, shape index: {}]
  %s9 = inlined_call_operand.vmem [shape: f32[32,128], index: 9, kind: input, shape index: {}]
  %s10 = inlined_call_operand.vmem [shape: f32[1,128], index: 10, kind: input, shape index: {}]
  %s11 = inlined_call_operand.vmem [shape: f32[64,128], index: 11, kind: input, shape index: {}]
  %s12 = inlined_call_operand.vmem [shape: f32[32,128], index: 12, kind: input, shape index: {}]
  %s13 = inlined_call_operand.vmem [shape: f32[1,128], index: 13, kind: input, shape index: {}]
  %s14 = inlined_call_operand.vmem [shape: f32[64,32], index: 14, kind: input, shape index: {}]
  %s15 = inlined_call_operand.vmem [shape: f32[1,32], index: 15, kind: input, shape index: {}]
  %s16 = inlined_call_operand.vmem [shape: f32[32,32], index: 16, kind: input, shape index: {}]
  %s17 = inlined_call_operand.vmem [shape: f32[1,32], index: 17, kind: input, shape index: {}]
  %s18 = inlined_call_operand.vmem [shape: f32[32,2], index: 18, kind: input, shape index: {}]
  %s19 = inlined_call_operand.vmem [shape: f32[1,2], index: 19, kind: input, shape index: {}]
  %s20 = inlined_call_operand.hbm [shape: f32[2,2], index: 20, kind: output, shape index: {}]
  %s21 = sld [smem:[#allocation0]]
  $region94: #{lstm_score_forward.1} parent=0
    _
  %s23 = ssub.s32 1, %s21
  %s24 = scalar_select 0, %s23, %s21
  $region1: #{lstm_score_forward.1} parent=0
    #allocation3 [shape = 'u8[512]{0}', space=vmem, size = 0x400, scoped, tag = 'input window, operand 7, single buffered']
    #allocation4 [shape = 's32[1]{0}', space=sflag, size = 0x4, scoped, tag = 'scoped memory for lstm_score_forward.1']
    #allocation5 [shape = 's32[1]{0}', space=sflag, size = 0x4, scoped, tag = 'scoped memory for lstm_score_forward.1']
    #allocation6 [shape = 'u8[1024]{0}', space=vmem, size = 0x400, scoped, tag = 'output window, operand 0, single buffered']
    %25 = vsyncpa [#allocation4], 0
    %26 = vsyncpa [#allocation5], 0
    // Predicated region
    $region2: #{lstm_score_forward.1} parent=1 // pred_check
      _
    $region3: #{lstm_score_forward.1} parent=1 // pred_check_branch
      %28 = sbr.rel (0) target = $region5
    $region4: #{lstm_score_forward.1} parent=1 // pred_region
      _
    $region5: #{lstm_score_forward.1} parent=1 // pred_fallthru
      _
    // Predicated region
    $region6: #{lstm_score_forward.1} parent=1 // pred_check
      _
    $region7: #{lstm_score_forward.1} parent=1 // pred_check_branch
      %30 = sbr.rel (0) target = $region9
    $region8: #{lstm_score_forward.1} parent=1 // pred_region
      _
    $region9: #{lstm_score_forward.1} parent=1 // pred_fallthru
      _
    // Predicated region
    $region10: #{lstm_score_forward.1} parent=1 // pred_check
      _
    $region11: #{lstm_score_forward.1} parent=1 // pred_check_branch
      %32 = sbr.rel (0) target = $region13
    $region12: #{lstm_score_forward.1} parent=1 // pred_region
      _
    $region13: #{lstm_score_forward.1} parent=1 // pred_fallthru
      _
    // Predicated region
    $region14: #{lstm_score_forward.1} parent=1 // pred_check
      _
    $region15: #{lstm_score_forward.1} parent=1 // pred_check_branch
      %34 = sbr.rel (0) target = $region17
    $region16: #{lstm_score_forward.1} parent=1 // pred_region
      _
    $region17: #{lstm_score_forward.1} parent=1 // pred_fallthru
      _
    // Predicated region
    $region18: #{lstm_score_forward.1} parent=1 // pred_check
      _
    $region19: #{lstm_score_forward.1} parent=1 // pred_check_branch
      %36 = sbr.rel (0) target = $region21
    $region20: #{lstm_score_forward.1} parent=1 // pred_region
      _
    $region21: #{lstm_score_forward.1} parent=1 // pred_fallthru
      _
    // Predicated region
    $region22: #{lstm_score_forward.1} parent=1 // pred_check
      _
    $region23: #{lstm_score_forward.1} parent=1 // pred_check_branch
      %38 = sbr.rel (0) target = $region25
    $region24: #{lstm_score_forward.1} parent=1 // pred_region
      _
    $region25: #{lstm_score_forward.1} parent=1 // pred_fallthru
      _
    // Predicated region
    $region26: #{lstm_score_forward.1} parent=1 // pred_check
      _
    $region27: #{lstm_score_forward.1} parent=1 // pred_check_branch
      %40 = sbr.rel (0) target = $region29
    $region28: #{lstm_score_forward.1} parent=1 // pred_region
      _
    $region29: #{lstm_score_forward.1} parent=1 // pred_fallthru
      _
    // Predicated region
    $region30: #{lstm_score_forward.1} parent=1 // pred_check
      _
    $region31: #{lstm_score_forward.1} parent=1 // pred_check_branch
      %42 = sbr.rel (0) target = $region33
    $region32: #{lstm_score_forward.1} parent=1 // pred_region
      %s44 = ssub.s32 16, 16
      %45 = vsyncadd [#allocation4], %s44
      %s47 = sshll.u32 [#allocation3], 4
      %s48 = int_to_ptr.vmem [resolvable:$true] %s47
      %50 = dma.hbm_to_vmem [thread:$0]  %s7, 16, %s48, [#allocation4]
    $region33: #{lstm_score_forward.1} parent=1 // pred_fallthru
      _
    // Predicated region
    $region34: #{lstm_score_forward.1} parent=1 // pred_check
      _
    $region35: #{lstm_score_forward.1} parent=1 // pred_check_branch
      %52 = sbr.rel (0) target = $region37
    $region36: #{lstm_score_forward.1} parent=1 // pred_region
      _
    $region37: #{lstm_score_forward.1} parent=1 // pred_fallthru
      _
    // Predicated region
    $region38: #{lstm_score_forward.1} parent=1 // pred_check
      _
    $region39: #{lstm_score_forward.1} parent=1 // pred_check_branch
      %54 = sbr.rel (0) target = $region41
    $region40: #{lstm_score_forward.1} parent=1 // pred_region
      _
    $region41: #{lstm_score_forward.1} parent=1 // pred_fallthru
      _
    // Predicated region
    $region42: #{lstm_score_forward.1} parent=1 // pred_check
      _
    $region43: #{lstm_score_forward.1} parent=1 // pred_check_branch
      %56 = sbr.rel (0) target = $region45
    $region44: #{lstm_score_forward.1} parent=1 // pred_region
      _
    $region45: #{lstm_score_forward.1} parent=1 // pred_fallthru
      _
    // Predicated region
    $region46: #{lstm_score_forward.1} parent=1 // pred_check
      _
    $region47: #{lstm_score_forward.1} parent=1 // pred_check_branch
      %58 = sbr.rel (0) target = $region49
    $region48: #{lstm_score_forward.1} parent=1 // pred_region
      _
    $region49: #{lstm_score_forward.1} parent=1 // pred_fallthru
      _
    // Predicated region
    $region50: #{lstm_score_forward.1} parent=1 // pred_check
      _
    $region51: #{lstm_score_forward.1} parent=1 // pred_check_branch
      %60 = sbr.rel (0) target = $region53
    $region52: #{lstm_score_forward.1} parent=1 // pred_region
      _
    $region53: #{lstm_score_forward.1} parent=1 // pred_fallthru
      _
    // Predicated region
    $region54: #{lstm_score_forward.1} parent=1 // pred_check
      _
    $region55: #{lstm_score_forward.1} parent=1 // pred_check_branch
      %62 = sbr.rel (0) target = $region57
    $region56: #{lstm_score_forward.1} parent=1 // pred_region
      _
    $region57: #{lstm_score_forward.1} parent=1 // pred_fallthru
      _
    // Predicated region
    $region58: #{lstm_score_forward.1} parent=1 // pred_check
      _
    $region59: #{lstm_score_forward.1} parent=1 // pred_check_branch
      %64 = sbr.rel (0) target = $region61
    $region60: #{lstm_score_forward.1} parent=1 // pred_region
      _
    $region61: #{lstm_score_forward.1} parent=1 // pred_fallthru
      _
    // Predicated region
    $region62: #{lstm_score_forward.1} parent=1 // pred_check
      _
    $region63: #{lstm_score_forward.1} parent=1 // pred_check_branch
      %66 = sbr.rel (0) target = $region65
    $region64: #{lstm_score_forward.1} parent=1 // pred_region
      _
    $region65: #{lstm_score_forward.1} parent=1 // pred_fallthru
      _
    // Predicated region
    $region66: #{lstm_score_forward.1} parent=1 // pred_check
      _
    $region67: #{lstm_score_forward.1} parent=1 // pred_check_branch
      %68 = sbr.rel (0) target = $region69
    $region68: #{lstm_score_forward.1} parent=1 // pred_region
      _
    $region69: #{lstm_score_forward.1} parent=1 // pred_fallthru
      _
    // Predicated region
    $region70: #{lstm_score_forward.1} parent=1 // pred_check
      _
    $region71: #{lstm_score_forward.1} parent=1 // pred_check_branch
      %70 = sbr.rel (0) target = $region73
    $region72: #{lstm_score_forward.1} parent=1 // pred_region
      _
    $region73: #{lstm_score_forward.1} parent=1 // pred_fallthru
      _
    // Predicated region
    $region74: #{lstm_score_forward.1} parent=1 // pred_check
      _
    $region75: #{lstm_score_forward.1} parent=1 // pred_check_branch
      %72 = sbr.rel (0) target = $region77
    $region76: #{lstm_score_forward.1} parent=1 // pred_region
      _
    $region77: #{lstm_score_forward.1} parent=1 // pred_fallthru
      _
    // Predicated region
    $region78: #{lstm_score_forward.1} parent=1 // pred_check
      _
    $region79: #{lstm_score_forward.1} parent=1 // pred_check_branch
      %74 = sbr.rel (0) target = $region81
    $region80: #{lstm_score_forward.1} parent=1 // pred_region
      _
    $region81: #{lstm_score_forward.1} parent=1 // pred_fallthru
      _
    // Predicated region
    $region82: #{lstm_score_forward.1} parent=1 // pred_check
      _
    $region83: #{lstm_score_forward.1} parent=1 // pred_check_branch
      %76 = sbr.rel (0) target = $region85
    $region84: #{lstm_score_forward.1} parent=1 // pred_region
      %77 = dma.done [#allocation4], 16
    $region85: #{lstm_score_forward.1} parent=1 // pred_fallthru
      _
    %v78 = vld [vmem:[%s0] sm:$0xff]
    %v79 = vld [vmem:[%s0 + $0x8] sm:$0xff]
    %v80 = vlaneseq
    %v81 = vand.u32 %v80, 127
    %82 = vset.pattern.permute.xlu0 0
    %83 = vperm.xlu0 %82, %v78
    %v84 = vpop.permute.xlu0 %83
    %85 = vset.pattern.permute.xlu0 0
    %86 = vperm.xlu0 %85, %v79
    %v87 = vpop.permute.xlu0 %86
    %vm88 = vcmp.eq.s32.totalorder %v84, %v81
    %vm89 = vcmp.eq.s32.totalorder %v87, %v81
    %v90 = vsel %vm88, 1, 0
    %v91 = vsel %vm89, 1, 0
    %v92 = vcvt.s32.f32 %v90
    %v93 = vcvt.s32.f32 %v91
    %v94 = vld [vmem:[%s1] sm:$0xff]
    %v95 = vld [vmem:[%s1 + $0x8] sm:$0xff]
    %v96 = vld [vmem:[%s1 + $0x10] sm:$0xff]
    %v97 = vld [vmem:[%s1 + $0x18] sm:$0xff]
    %v98 = vld [vmem:[%s1 + $0x20] sm:$0xff]
    %v99 = vld [vmem:[%s1 + $0x28] sm:$0xff]
    %v100 = vld [vmem:[%s1 + $0x30] sm:$0xff]
    %vm101 = vcmask 457728
    %v103 = vsel %vm101, %v92, 0
    %v106 = vsel %vm101, %v93, 0
    %108 = vmatprep.subr.mxu0 0.0
    %109 = vmatpush1.msra.mxu0 %v94
    %110 = vmatprep.subr.mxu0 0.0
    %111 = vmatpush1.msra.mxu0 %v95
    %112 = vmatprep.subr.mxu0 0.0
    %113 = vmatpush1.msra.mxu0 %v96
    %114 = vmatprep.subr.mxu0 0.0
    %115 = vmatpush1.msra.mxu0 %v97
    %116 = vmatprep.subr.mxu0 0.0
    %117 = vmatpush1.msra.mxu0 %v98
    %118 = vmatprep.subr.mxu0 0.0
    %119 = vmatpush1.msra.mxu0 %v99
    %120 = vmatprep.subr.mxu0 0.0
    %121 = vmatpush1.msra.mxu0 %v100
    %122 = vmatprep.subr.mxu0 0.0
    %123 = vmatpush1.msra.mxu0 0.0
    %124 = vmatprep.subr.mxu0 0.0
    %125 = vmatpush1.msra.mxu0 0.0
    %126 = vmatprep.subr.mxu0 0.0
    %127 = vmatpush1.msra.mxu0 0.0
    %128 = vmatprep.subr.mxu0 0.0
    %129 = vmatpush1.msra.mxu0 0.0
    %130 = vmatprep.subr.mxu0 0.0
    %131 = vmatpush1.msra.mxu0 0.0
    %132 = vmatprep.subr.mxu0 0.0
    %133 = vmatpush1.msra.mxu0 0.0
    %134 = vmatprep.subr.mxu0 0.0
    %135 = vmatpush1.msra.mxu0 0.0
    %136 = vmatprep.subr.mxu0 0.0
    %137 = vmatpush1.msra.mxu0 0.0
    %138 = vmatprep.subr.mxu0 0.0
    %139 = vmatpush1.msra.mxu0 0.0
    %140 = vmatprep.subr.mxu0 0.0
    %141 = vmatpush1.msra.mxu0 0.0
    %142 = vmatprep.subr.mxu0 0.0
    %143 = vmatpush1.msra.mxu0 0.0
    %144 = vmatprep.subr.mxu0 0.0
    %145 = vmatpush1.msra.mxu0 0.0
    %146 = vmatprep.subr.mxu0 0.0
    %147 = vmatpush1.msra.mxu0 0.0
    %148 = vmatprep.subr.mxu0 0.0
    %149 = vmatpush1.msra.mxu0 0.0
    %150 = vmatprep.subr.mxu0 0.0
    %151 = vmatpush1.msra.mxu0 0.0
    %152 = vmatprep.subr.mxu0 0.0
    %153 = vmatpush1.msra.mxu0 0.0
    %154 = vmatprep.subr.mxu0 0.0
    %155 = vmatpush1.msra.mxu0 0.0
    %156 = vmatprep.subr.mxu0 0.0
    %157 = vmatpush1.msra.mxu0 0.0
    %158 = vmatprep.subr.mxu0 0.0
    %159 = vmatpush1.msra.mxu0 0.0
    %160 = vmatprep.subr.mxu0 0.0
    %161 = vmatpush1.msra.mxu0 0.0
    %162 = vmatprep.subr.mxu0 0.0
    %163 = vmatpush1.msra.mxu0 0.0
    %164 = vmatprep.subr.mxu0 0.0
    %165 = vmatpush1.msra.mxu0 0.0
    %166 = vmatprep.subr.mxu0 0.0
    %167 = vmatpush1.msra.mxu0 0.0
    %168 = vmatprep.subr.mxu0 0.0
    %169 = vmatpush1.msra.mxu0 0.0
    %170 = vmatprep.subr.mxu0 0.0
    %171 = vmatpush1.msra.mxu0 0.0
    %172 = vmatprep.mubr.f32.mxu0 0.0
    %173 = vmatmul.mubr.f32.gmra.mrb[0].mxu0 %v103
    %v174 = vpop.f32.mrb[0].mxu0
    %v175 = vadd.f32 0.0, %v174
    %v176 = vpop.f32.mrb[0].mxu0
    %177 = vmatprep.mubr.f32.mxu0 0.0
    %178 = vmatmul.mubr.f32.gmra.mrb[0].mxu0 %v106
    %v179 = vpop.f32.mrb[0].mxu0
    %v180 = vadd.f32 0.0, %v179
    %v181 = vpop.f32.mrb[0].mxu0
    %182 = vdwg.mxu0
    %v183 = vld [vmem:[%s2] sm:$0xff]
    %v184 = vld [vmem:[%s2 + $0x8] sm:$0xff]
    %v185 = vld [vmem:[%s2 + $0x10] sm:$0xff]
    %v186 = vld [vmem:[%s2 + $0x18] sm:$0xff]
    %v187 = vld [vmem:[%s4] sm:$0x1]
    %v189 = vlaneseq
    %v190 = vshrl.u32 %v189, 7
    %v191 = vsub.s32 0, %v190
    %v192 = vrot.slane %v187, %v191
    %vm194 = vcmask 261120
    %v196 = vsel %vm194, %v175, 0
    %v199 = vsel %vm194, %v180, 0
    %201 = vmatprep.subr.mxu0 0.0
    %202 = vmatpush1.msra.mxu0 %v183
    %203 = vmatprep.subr.mxu0 0.0
    %204 = vmatpush1.msra.mxu0 %v184
    %205 = vmatprep.subr.mxu0 0.0
    %206 = vmatpush1.msra.mxu0 %v185
    %207 = vmatprep.subr.mxu0 0.0
    %208 = vmatpush1.msra.mxu0 %v186
    %209 = vmatprep.subr.mxu0 0.0
    %210 = vmatpush1.msra.mxu0 0.0
    %211 = vmatprep.subr.mxu0 0.0
    %212 = vmatpush1.msra.mxu0 0.0
    %213 = vmatprep.subr.mxu0 0.0
    %214 = vmatpush1.msra.mxu0 0.0
    %215 = vmatprep.subr.mxu0 0.0
    %216 = vmatpush1.msra.mxu0 0.0
    %217 = vmatprep.subr.mxu0 0.0
    %218 = vmatpush1.msra.mxu0 0.0
    %219 = vmatprep.subr.mxu0 0.0
    %220 = vmatpush1.msra.mxu0 0.0
    %221 = vmatprep.subr.mxu0 0.0
    %222 = vmatpush1.msra.mxu0 0.0
    %223 = vmatprep.subr.mxu0 0.0
    %224 = vmatpush1.msra.mxu0 0.0
    %225 = vmatprep.subr.mxu0 0.0
    %226 = vmatpush1.msra.mxu0 0.0
    %227 = vmatprep.subr.mxu0 0.0
    %228 = vmatpush1.msra.mxu0 0.0
    %229 = vmatprep.subr.mxu0 0.0
    %230 = vmatpush1.msra.mxu0 0.0
    %231 = vmatprep.subr.mxu0 0.0
    %232 = vmatpush1.msra.mxu0 0.0
    %233 = vmatprep.subr.mxu0 0.0
    %234 = vmatpush1.msra.mxu0 0.0
    %235 = vmatprep.subr.mxu0 0.0
    %236 = vmatpush1.msra.mxu0 0.0
    %237 = vmatprep.subr.mxu0 0.0
    %238 = vmatpush1.msra.mxu0 0.0
    %239 = vmatprep.subr.mxu0 0.0
    %240 = vmatpush1.msra.mxu0 0.0
    %241 = vmatprep.subr.mxu0 0.0
    %242 = vmatpush1.msra.mxu0 0.0
    %243 = vmatprep.subr.mxu0 0.0
    %244 = vmatpush1.msra.mxu0 0.0
    %245 = vmatprep.subr.mxu0 0.0
    %246 = vmatpush1.msra.mxu0 0.0
    %247 = vmatprep.subr.mxu0 0.0
    %248 = vmatpush1.msra.mxu0 0.0
    %249 = vmatprep.subr.mxu0 0.0
    %250 = vmatpush1.msra.mxu0 0.0
    %251 = vmatprep.subr.mxu0 0.0
    %252 = vmatpush1.msra.mxu0 0.0
    %253 = vmatprep.subr.mxu0 0.0
    %254 = vmatpush1.msra.mxu0 0.0
    %255 = vmatprep.subr.mxu0 0.0
    %256 = vmatpush1.msra.mxu0 0.0
    %257 = vmatprep.subr.mxu0 0.0
    %258 = vmatpush1.msra.mxu0 0.0
    %259 = vmatprep.subr.mxu0 0.0
    %260 = vmatpush1.msra.mxu0 0.0
    %261 = vmatprep.subr.mxu0 0.0
    %262 = vmatpush1.msra.mxu0 0.0
    %263 = vmatprep.subr.mxu0 0.0
    %264 = vmatpush1.msra.mxu0 0.0
    %265 = vmatprep.mubr.f32.mxu0 0.0
    %266 = vmatmul.mubr.f32.gmra.mrb[0].mxu0 %v196
    %v267 = vpop.f32.mrb[0].mxu0
    %v268 = vadd.f32 %v192, %v267
    %v269 = vpop.f32.mrb[0].mxu0
    %270 = vmatprep.mubr.f32.mxu0 0.0
    %271 = vmatmul.mubr.f32.gmra.mrb[0].mxu0 %v199
    %v272 = vpop.f32.mrb[0].mxu0
    %v273 = vadd.f32 %v192, %v272
    %v274 = vpop.f32.mrb[0].mxu0
    %275 = vdwg.mxu0
    %v276 = vld [vmem:[%s5] sm:$0xff]
    %v277 = vld [vmem:[%s5 + $0x8] sm:$0xff]
    %v278 = vld [vmem:[%s5 + $0x10] sm:$0xff]
    %v279 = vld [vmem:[%s5 + $0x18] sm:$0xff]
    %v280 = vld [vmem:[#allocation3] sm:$0x1]
    %v282 = vlaneseq
    %v283 = vshrl.u32 %v282, 7
    %v284 = vsub.s32 0, %v283
    %v285 = vrot.slane %v280, %v284
    %287 = vmatprep.subr.mxu0 0.0
    %288 = vmatpush1.msra.mxu0 %v276
    %289 = vmatprep.subr.mxu0 0.0
    %290 = vmatpush1.msra.mxu0 %v277
    %291 = vmatprep.subr.mxu0 0.0
    %292 = vmatpush1.msra.mxu0 %v278
    %293 = vmatprep.subr.mxu0 0.0
    %294 = vmatpush1.msra.mxu0 %v279
    %295 = vmatprep.subr.mxu0 0.0
    %296 = vmatpush1.msra.mxu0 0.0
    %297 = vmatprep.subr.mxu0 0.0
    %298 = vmatpush1.msra.mxu0 0.0
    %299 = vmatprep.subr.mxu0 0.0
    %300 = vmatpush1.msra.mxu0 0.0
    %301 = vmatprep.subr.mxu0 0.0
    %302 = vmatpush1.msra.mxu0 0.0
    %303 = vmatprep.subr.mxu0 0.0
    %304 = vmatpush1.msra.mxu0 0.0
    %305 = vmatprep.subr.mxu0 0.0
    %306 = vmatpush1.msra.mxu0 0.0
    %307 = vmatprep.subr.mxu0 0.0
    %308 = vmatpush1.msra.mxu0 0.0
    %309 = vmatprep.subr.mxu0 0.0
    %310 = vmatpush1.msra.mxu0 0.0
    %311 = vmatprep.subr.mxu0 0.0
    %312 = vmatpush1.msra.mxu0 0.0
    %313 = vmatprep.subr.mxu0 0.0
    %314 = vmatpush1.msra.mxu0 0.0
    %315 = vmatprep.subr.mxu0 0.0
    %316 = vmatpush1.msra.mxu0 0.0
    %317 = vmatprep.subr.mxu0 0.0
    %318 = vmatpush1.msra.mxu0 0.0
    %319 = vmatprep.subr.mxu0 0.0
    %320 = vmatpush1.msra.mxu0 0.0
    %321 = vmatprep.subr.mxu0 0.0
    %322 = vmatpush1.msra.mxu0 0.0
    %323 = vmatprep.subr.mxu0 0.0
    %324 = vmatpush1.msra.mxu0 0.0
    %325 = vmatprep.subr.mxu0 0.0
    %326 = vmatpush1.msra.mxu0 0.0
    %327 = vmatprep.subr.mxu0 0.0
    %328 = vmatpush1.msra.mxu0 0.0
    %329 = vmatprep.subr.mxu0 0.0
    %330 = vmatpush1.msra.mxu0 0.0
    %331 = vmatprep.subr.mxu0 0.0
    %332 = vmatpush1.msra.mxu0 0.0
    %333 = vmatprep.subr.mxu0 0.0
    %334 = vmatpush1.msra.mxu0 0.0
    %335 = vmatprep.subr.mxu0 0.0
    %336 = vmatpush1.msra.mxu0 0.0
    %337 = vmatprep.subr.mxu0 0.0
    %338 = vmatpush1.msra.mxu0 0.0
    %339 = vmatprep.subr.mxu0 0.0
    %340 = vmatpush1.msra.mxu0 0.0
    %341 = vmatprep.subr.mxu0 0.0
    %342 = vmatpush1.msra.mxu0 0.0
    %343 = vmatprep.subr.mxu0 0.0
    %344 = vmatpush1.msra.mxu0 0.0
    %345 = vmatprep.subr.mxu0 0.0
    %346 = vmatpush1.msra.mxu0 0.0
    %347 = vmatprep.subr.mxu0 0.0
    %348 = vmatpush1.msra.mxu0 0.0
    %349 = vmatprep.subr.mxu0 0.0
    %350 = vmatpush1.msra.mxu0 0.0
    %351 = vmatprep.mubr.f32.mxu0 0.0
    %352 = vmatmul.mubr.f32.gmra.mrb[0].mxu0 %v196
    %v353 = vpop.f32.mrb[0].mxu0
    %v354 = vadd.f32 %v285, %v353
    %v355 = vpop.f32.mrb[0].mxu0
    %356 = vmatprep.mubr.f32.mxu0 0.0
    %357 = vmatmul.mubr.f32.gmra.mrb[0].mxu0 %v199
    %v358 = vpop.f32.mrb[0].mxu0
    %v359 = vadd.f32 %v285, %v358
    %v360 = vpop.f32.mrb[0].mxu0
    %361 = vdwg.mxu0
    %v362 = vld [vmem:[%s3] sm:$0xff]
    %v363 = vld [vmem:[%s3 + $0x8] sm:$0xff]
    %v364 = vld [vmem:[%s3 + $0x10] sm:$0xff]
    %v365 = vld [vmem:[%s3 + $0x18] sm:$0xff]
    %v366 = vld [vmem:[%s6] sm:$0xff]
    %v367 = vld [vmem:[%s6 + $0x8] sm:$0xff]
    %v368 = vld [vmem:[%s6 + $0x10] sm:$0xff]
    %v369 = vld [vmem:[%s6 + $0x18] sm:$0xff]
    %v371 = vsel %vm194, 0.0, 0
    %373 = vmatprep.subr.mxu0 0.0
    %374 = vmatpush1.msra.mxu0 %v362
    %375 = vmatprep.subr.mxu0 0.0
    %376 = vmatpush1.msra.mxu0 %v363
    %377 = vmatprep.subr.mxu0 0.0
    %378 = vmatpush1.msra.mxu0 %v364
    %379 = vmatprep.subr.mxu0 0.0
    %380 = vmatpush1.msra.mxu0 %v365
    %381 = vmatprep.subr.mxu0 0.0
    %382 = vmatpush1.msra.mxu0 0.0
    %383 = vmatprep.subr.mxu0 0.0
    %384 = vmatpush1.msra.mxu0 0.0
    %385 = vmatprep.subr.mxu0 0.0
    %386 = vmatpush1.msra.mxu0 0.0
    %387 = vmatprep.subr.mxu0 0.0
    %388 = vmatpush1.msra.mxu0 0.0
    %389 = vmatprep.subr.mxu0 0.0
    %390 = vmatpush1.msra.mxu0 0.0
    %391 = vmatprep.subr.mxu0 0.0
    %392 = vmatpush1.msra.mxu0 0.0
    %393 = vmatprep.subr.mxu0 0.0
    %394 = vmatpush1.msra.mxu0 0.0
    %395 = vmatprep.subr.mxu0 0.0
    %396 = vmatpush1.msra.mxu0 0.0
    %397 = vmatprep.subr.mxu0 0.0
    %398 = vmatpush1.msra.mxu0 0.0
    %399 = vmatprep.subr.mxu0 0.0
    %400 = vmatpush1.msra.mxu0 0.0
    %401 = vmatprep.subr.mxu0 0.0
    %402 = vmatpush1.msra.mxu0 0.0
    %403 = vmatprep.subr.mxu0 0.0
    %404 = vmatpush1.msra.mxu0 0.0
    %405 = vmatprep.subr.mxu0 0.0
    %406 = vmatpush1.msra.mxu0 0.0
    %407 = vmatprep.subr.mxu0 0.0
    %408 = vmatpush1.msra.mxu0 0.0
    %409 = vmatprep.subr.mxu0 0.0
    %410 = vmatpush1.msra.mxu0 0.0
    %411 = vmatprep.subr.mxu0 0.0
    %412 = vmatpush1.msra.mxu0 0.0
    %413 = vmatprep.subr.mxu0 0.0
    %414 = vmatpush1.msra.mxu0 0.0
    %415 = vmatprep.subr.mxu0 0.0
    %416 = vmatpush1.msra.mxu0 0.0
    %417 = vmatprep.subr.mxu0 0.0
    %418 = vmatpush1.msra.mxu0 0.0
    %419 = vmatprep.subr.mxu0 0.0
    %420 = vmatpush1.msra.mxu0 0.0
    %421 = vmatprep.subr.mxu0 0.0
    %422 = vmatpush1.msra.mxu0 0.0
    %423 = vmatprep.subr.mxu0 0.0
    %424 = vmatpush1.msra.mxu0 0.0
    %425 = vmatprep.subr.mxu0 0.0
    %426 = vmatpush1.msra.mxu0 0.0
    %427 = vmatprep.subr.mxu0 0.0
    %428 = vmatpush1.msra.mxu0 0.0
    %429 = vmatprep.subr.mxu0 0.0
    %430 = vmatpush1.msra.mxu0 0.0
    %431 = vmatprep.subr.mxu0 0.0
    %432 = vmatpush1.msra.mxu0 0.0
    %433 = vmatprep.subr.mxu0 0.0
    %434 = vmatpush1.msra.mxu0 0.0
    %435 = vmatprep.subr.mxu0 0.0
    %436 = vmatpush1.msra.mxu0 0.0
    %437 = vmatprep.mubr.f32.mxu0 0.0
    %438 = vmatmul.mubr.f32.gmra.mrb[0].mxu0 %v371
    %v439 = vpop.f32.mrb[0].mxu0
    %v440 = vadd.f32 0.0, %v439
    %v441 = vpop.f32.mrb[0].mxu0
    %442 = vdwg.mxu0
    %v443 = vadd.f32 %v268, %v440
    %444 = vmatprep.subr.mxu0 0.0
    %445 = vmatpush1.msra.mxu0 %v366
    %446 = vmatprep.subr.mxu0 0.0
    %447 = vmatpush1.msra.mxu0 %v367
    %448 = vmatprep.subr.mxu0 0.0
    %449 = vmatpush1.msra.mxu0 %v368
    %450 = vmatprep.subr.mxu0 0.0
    %451 = vmatpush1.msra.mxu0 %v369
    %452 = vmatprep.subr.mxu0 0.0
    %453 = vmatpush1.msra.mxu0 0.0
    %454 = vmatprep.subr.mxu0 0.0
    %455 = vmatpush1.msra.mxu0 0.0
    %456 = vmatprep.subr.mxu0 0.0
    %457 = vmatpush1.msra.mxu0 0.0
    %458 = vmatprep.subr.mxu0 0.0
    %459 = vmatpush1.msra.mxu0 0.0
    %460 = vmatprep.subr.mxu0 0.0
    %461 = vmatpush1.msra.mxu0 0.0
    %462 = vmatprep.subr.mxu0 0.0
    %463 = vmatpush1.msra.mxu0 0.0
    %464 = vmatprep.subr.mxu0 0.0
    %465 = vmatpush1.msra.mxu0 0.0
    %466 = vmatprep.subr.mxu0 0.0
    %467 = vmatpush1.msra.mxu0 0.0
    %468 = vmatprep.subr.mxu0 0.0
    %469 = vmatpush1.msra.mxu0 0.0
    %470 = vmatprep.subr.mxu0 0.0
    %471 = vmatpush1.msra.mxu0 0.0
    %472 = vmatprep.subr.mxu0 0.0
    %473 = vmatpush1.msra.mxu0 0.0
    %474 = vmatprep.subr.mxu0 0.0
    %475 = vmatpush1.msra.mxu0 0.0
    %476 = vmatprep.subr.mxu0 0.0
    %477 = vmatpush1.msra.mxu0 0.0
    %478 = vmatprep.subr.mxu0 0.0
    %479 = vmatpush1.msra.mxu0 0.0
    %480 = vmatprep.subr.mxu0 0.0
    %481 = vmatpush1.msra.mxu0 0.0
    %482 = vmatprep.subr.mxu0 0.0
    %483 = vmatpush1.msra.mxu0 0.0
    %484 = vmatprep.subr.mxu0 0.0
    %485 = vmatpush1.msra.mxu0 0.0
    %486 = vmatprep.subr.mxu0 0.0
    %487 = vmatpush1.msra.mxu0 0.0
    %488 = vmatprep.subr.mxu0 0.0
    %489 = vmatpush1.msra.mxu0 0.0
    %490 = vmatprep.subr.mxu0 0.0
    %491 = vmatpush1.msra.mxu0 0.0
    %492 = vmatprep.subr.mxu0 0.0
    %493 = vmatpush1.msra.mxu0 0.0
    %494 = vmatprep.subr.mxu0 0.0
    %495 = vmatpush1.msra.mxu0 0.0
    %496 = vmatprep.subr.mxu0 0.0
    %497 = vmatpush1.msra.mxu0 0.0
    %498 = vmatprep.subr.mxu0 0.0
    %499 = vmatpush1.msra.mxu0 0.0
    %500 = vmatprep.subr.mxu0 0.0
    %501 = vmatpush1.msra.mxu0 0.0
    %502 = vmatprep.subr.mxu0 0.0
    %503 = vmatpush1.msra.mxu0 0.0
    %504 = vmatprep.subr.mxu0 0.0
    %505 = vmatpush1.msra.mxu0 0.0
    %506 = vmatprep.subr.mxu0 0.0
    %507 = vmatpush1.msra.mxu0 0.0
    %508 = vmatprep.mubr.f32.mxu0 0.0
    %509 = vmatmul.mubr.f32.gmra.mrb[0].mxu0 %v371
    %v510 = vpop.f32.mrb[0].mxu0
    %v511 = vadd.f32 0.0, %v510
    %v512 = vpop.f32.mrb[0].mxu0
    %513 = vdwg.mxu0
    %v515 = vrot.slane %v511, 2
    %v517 = vadd.f32 %v359, %v515
    %v518 = vxor.u32 %v443, 2147483648
    %v519 = vmul.f32 %v518, 1.442695
    %v520 = vpow.pop %v519
    %v521 = vadd.f32 %v520, 1.0
    %v522 = vrcp.pop %v521
    %v523 = vmul.f32 1.0, %v522
    %v524 = vtanh.pop %v443
    %v525 = vmul.f32 %v523, 0.0
    %527 = vrot.lane.b32.xlu0 %v524, 64
    %v528 = vpop.permute.xlu0 %527
    %v530 = vmul.f32 %v523, %v528
    %532 = vrot.lane.b32.xlu0 %v530, 32
    %v533 = vpop.permute.xlu0 %532
    %v535 = vadd.f32 %v525, %v533
    %v536 = vtanh.pop %v535
    %538 = vrot.lane.b32.xlu0 %v536, 64
    %v539 = vpop.permute.xlu0 %538
    %v541 = vmul.f32 %v523, %v539
    %v542 = vxor.u32 %v517, 2147483648
    %v543 = vmul.f32 %v542, 1.442695
    %v544 = vpow.pop %v543
    %v545 = vadd.f32 %v544, 1.0
    %v546 = vrcp.pop %v545
    %v547 = vmul.f32 1.0, %v546
    %v548 = vtanh.pop %v517
    %v549 = vmul.f32 %v547, 0.0
    %551 = vrot.lane.b32.xlu0 %v548, 64
    %v552 = vpop.permute.xlu0 %551
    %v554 = vmul.f32 %v547, %v552
    %556 = vrot.lane.b32.xlu0 %v554, 32
    %v557 = vpop.permute.xlu0 %556
    %v559 = vadd.f32 %v549, %v557
    %v560 = vtanh.pop %v559
    %562 = vrot.lane.b32.xlu0 %v560, 64
    %v563 = vpop.permute.xlu0 %562
    %v565 = vmul.f32 %v547, %v563
    %567 = vrot.lane.b32.xlu0 %v541, 32
    %v568 = vpop.permute.xlu0 %567
    %vm570 = vcmask 254976
    %571 = vst.msk [vmem:[#allocation2] sm:$0x3] %vm570, %v568
    %573 = vrot.lane.b32.xlu0 %v565, 64
    %v574 = vpop.permute.xlu0 %573
    %vm576 = vcmask 523526
    %577 = vst.msk [vmem:[#allocation2 + $0x8] sm:$0xc0] %vm576, %v574
    %v578 = vsel %vm194, %v568, 0
    %580 = vmatprep.subr.mxu0 0.0
    %581 = vmatpush1.msra.mxu0 %v362
    %582 = vmatprep.subr.mxu0 0.0
    %583 = vmatpush1.msra.mxu0 %v363
    %584 = vmatprep.subr.mxu0 0.0
    %585 = vmatpush1.msra.mxu0 %v364
    %586 = vmatprep.subr.mxu0 0.0
    %587 = vmatpush1.msra.mxu0 %v365
    %588 = vmatprep.subr.mxu0 0.0
    %589 = vmatpush1.msra.mxu0 0.0
    %590 = vmatprep.subr.mxu0 0.0
    %591 = vmatpush1.msra.mxu0 0.0
    %592 = vmatprep.subr.mxu0 0.0
    %593 = vmatpush1.msra.mxu0 0.0
    %594 = vmatprep.subr.mxu0 0.0
    %595 = vmatpush1.msra.mxu0 0.0
    %596 = vmatprep.subr.mxu0 0.0
    %597 = vmatpush1.msra.mxu0 0.0
    %598 = vmatprep.subr.mxu0 0.0
    %599 = vmatpush1.msra.mxu0 0.0
    %600 = vmatprep.subr.mxu0 0.0
    %601 = vmatpush1.msra.mxu0 0.0
    %602 = vmatprep.subr.mxu0 0.0
    %603 = vmatpush1.msra.mxu0 0.0
    %604 = vmatprep.subr.mxu0 0.0
    %605 = vmatpush1.msra.mxu0 0.0
    %606 = vmatprep.subr.mxu0 0.0
    %607 = vmatpush1.msra.mxu0 0.0
    %608 = vmatprep.subr.mxu0 0.0
    %609 = vmatpush1.msra.mxu0 0.0
    %610 = vmatprep.subr.mxu0 0.0
    %611 = vmatpush1.msra.mxu0 0.0
    %612 = vmatprep.subr.mxu0 0.0
    %613 = vmatpush1.msra.mxu0 0.0
    %614 = vmatprep.subr.mxu0 0.0
    %615 = vmatpush1.msra.mxu0 0.0
    %616 = vmatprep.subr.mxu0 0.0
    %617 = vmatpush1.msra.mxu0 0.0
    %618 = vmatprep.subr.mxu0 0.0
    %619 = vmatpush1.msra.mxu0 0.0
    %620 = vmatprep.subr.mxu0 0.0
    %621 = vmatpush1.msra.mxu0 0.0
    %622 = vmatprep.subr.mxu0 0.0
    %623 = vmatpush1.msra.mxu0 0.0
    %624 = vmatprep.subr.mxu0 0.0
    %625 = vmatpush1.msra.mxu0 0.0
    %626 = vmatprep.subr.mxu0 0.0
    %627 = vmatpush1.msra.mxu0 0.0
    %628 = vmatprep.subr.mxu0 0.0
    %629 = vmatpush1.msra.mxu0 0.0
    %630 = vmatprep.subr.mxu0 0.0
    %631 = vmatpush1.msra.mxu0 0.0
    %632 = vmatprep.subr.mxu0 0.0
    %633 = vmatpush1.msra.mxu0 0.0
    %634 = vmatprep.subr.mxu0 0.0
    %635 = vmatpush1.msra.mxu0 0.0
    %636 = vmatprep.subr.mxu0 0.0
    %637 = vmatpush1.msra.mxu0 0.0
    %638 = vmatprep.subr.mxu0 0.0
    %639 = vmatpush1.msra.mxu0 0.0
    %640 = vmatprep.subr.mxu0 0.0
    %641 = vmatpush1.msra.mxu0 0.0
    %642 = vmatprep.subr.mxu0 0.0
    %643 = vmatpush1.msra.mxu0 0.0
    %644 = vmatprep.mubr.f32.mxu0 0.0
    %645 = vmatmul.mubr.f32.gmra.mrb[0].mxu0 %v578
    %v646 = vpop.f32.mrb[0].mxu0
    %v647 = vadd.f32 0.0, %v646
    %v648 = vpop.f32.mrb[0].mxu0
    %649 = vdwg.mxu0
    %v651 = vrot.slane %v647, 6
    %v653 = vadd.f32 %v268, %v651
    %v654 = vrot.slane %v565, 6
    %655 = vrot.lane.b32.xlu0 %v654, 32
    %v656 = vpop.permute.xlu0 %655
    %v657 = vsel %vm194, %v656, 0
    %659 = vmatprep.subr.mxu0 0.0
    %660 = vmatpush1.msra.mxu0 %v366
    %661 = vmatprep.subr.mxu0 0.0
    %662 = vmatpush1.msra.mxu0 %v367
    %663 = vmatprep.subr.mxu0 0.0
    %664 = vmatpush1.msra.mxu0 %v368
    %665 = vmatprep.subr.mxu0 0.0
    %666 = vmatpush1.msra.mxu0 %v369
    %667 = vmatprep.subr.mxu0 0.0
    %668 = vmatpush1.msra.mxu0 0.0
    %669 = vmatprep.subr.mxu0 0.0
    %670 = vmatpush1.msra.mxu0 0.0
    %671 = vmatprep.subr.mxu0 0.0
    %672 = vmatpush1.msra.mxu0 0.0
    %673 = vmatprep.subr.mxu0 0.0
    %674 = vmatpush1.msra.mxu0 0.0
    %675 = vmatprep.subr.mxu0 0.0
    %676 = vmatpush1.msra.mxu0 0.0
    %677 = vmatprep.subr.mxu0 0.0
    %678 = vmatpush1.msra.mxu0 0.0
    %679 = vmatprep.subr.mxu0 0.0
    %680 = vmatpush1.msra.mxu0 0.0
    %681 = vmatprep.subr.mxu0 0.0
    %682 = vmatpush1.msra.mxu0 0.0
    %683 = vmatprep.subr.mxu0 0.0
    %684 = vmatpush1.msra.mxu0 0.0
    %685 = vmatprep.subr.mxu0 0.0
    %686 = vmatpush1.msra.mxu0 0.0
    %687 = vmatprep.subr.mxu0 0.0
    %688 = vmatpush1.msra.mxu0 0.0
    %689 = vmatprep.subr.mxu0 0.0
    %690 = vmatpush1.msra.mxu0 0.0
    %691 = vmatprep.subr.mxu0 0.0
    %692 = vmatpush1.msra.mxu0 0.0
    %693 = vmatprep.subr.mxu0 0.0
    %694 = vmatpush1.msra.mxu0 0.0
    %695 = vmatprep.subr.mxu0 0.0
    %696 = vmatpush1.msra.mxu0 0.0
    %697 = vmatprep.subr.mxu0 0.0
    %698 = vmatpush1.msra.mxu0 0.0
    %699 = vmatprep.subr.mxu0 0.0
    %700 = vmatpush1.msra.mxu0 0.0
    %701 = vmatprep.subr.mxu0 0.0
    %702 = vmatpush1.msra.mxu0 0.0
    %703 = vmatprep.subr.mxu0 0.0
    %704 = vmatpush1.msra.mxu0 0.0
    %705 = vmatprep.subr.mxu0 0.0
    %706 = vmatpush1.msra.mxu0 0.0
    %707 = vmatprep.subr.mxu0 0.0
    %708 = vmatpush1.msra.mxu0 0.0
    %709 = vmatprep.subr.mxu0 0.0
    %710 = vmatpush1.msra.mxu0 0.0
    %711 = vmatprep.subr.mxu0 0.0
    %712 = vmatpush1.msra.mxu0 0.0
    %713 = vmatprep.subr.mxu0 0.0
    %714 = vmatpush1.msra.mxu0 0.0
    %715 = vmatprep.subr.mxu0 0.0
    %716 = vmatpush1.msra.mxu0 0.0
    %717 = vmatprep.subr.mxu0 0.0
    %718 = vmatpush1.msra.mxu0 0.0
    %719 = vmatprep.subr.mxu0 0.0
    %720 = vmatpush1.msra.mxu0 0.0
    %721 = vmatprep.subr.mxu0 0.0
    %722 = vmatpush1.msra.mxu0 0.0
    %723 = vmatprep.mubr.f32.mxu0 0.0
    %724 = vmatmul.mubr.f32.gmra.mrb[0].mxu0 %v657
    %v725 = vpop.f32.mrb[0].mxu0
    %v726 = vadd.f32 0.0, %v725
    %v727 = vpop.f32.mrb[0].mxu0
    %728 = vdwg.mxu0
    %v730 = vrot.slane %v726, 4
    %v732 = vadd.f32 %v359, %v730
    %v733 = vxor.u32 %v653, 2147483648
    %v734 = vmul.f32 %v733, 1.442695
    %v735 = vpow.pop %v734
    %v736 = vadd.f32 %v735, 1.0
    %v737 = vrcp.pop %v736
    %v738 = vmul.f32 1.0, %v737
    %v739 = vtanh.pop %v653
    %v741 = vrot.slane %v535, 6
    %v743 = vmul.f32 %v738, %v741
    %745 = vrot.lane.b32.xlu0 %v739, 64
    %v746 = vpop.permute.xlu0 %745
    %v748 = vmul.f32 %v738, %v746
    %750 = vrot.lane.b32.xlu0 %v748, 32
    %v751 = vpop.permute.xlu0 %750
    %v753 = vadd.f32 %v743, %v751
    %v754 = vtanh.pop %v753
    %756 = vrot.lane.b32.xlu0 %v754, 64
    %v757 = vpop.permute.xlu0 %756
    %v759 = vmul.f32 %v738, %v757
    %v760 = vxor.u32 %v732, 2147483648
    %v761 = vmul.f32 %v760, 1.442695
    %v762 = vpow.pop %v761
    %v763 = vadd.f32 %v762, 1.0
    %v764 = vrcp.pop %v763
    %v765 = vmul.f32 1.0, %v764
    %v766 = vtanh.pop %v732
    %v768 = vrot.slane %v559, 2
    %v770 = vmul.f32 %v765, %v768
    %772 = vrot.lane.b32.xlu0 %v766, 64
    %v773 = vpop.permute.xlu0 %772
    %v775 = vmul.f32 %v765, %v773
    %777 = vrot.lane.b32.xlu0 %v775, 32
    %v778 = vpop.permute.xlu0 %777
    %v780 = vadd.f32 %v770, %v778
    %v781 = vtanh.pop %v780
    %783 = vrot.lane.b32.xlu0 %v781, 64
    %v784 = vpop.permute.xlu0 %783
    %v786 = vmul.f32 %v765, %v784
    %788 = vrot.lane.b32.xlu0 %v759, 32
    %v789 = vpop.permute.xlu0 %788
    %vm791 = vcmask 257026
    %792 = vst.msk [vmem:[#allocation2] sm:$0xc] %vm791, %v789
    %794 = vrot.lane.b32.xlu0 %v786, 64
    %v795 = vpop.permute.xlu0 %794
    %vm797 = vcmask 521476
    %798 = vst.msk [vmem:[#allocation2 + $0x8] sm:$0x30] %vm797, %v795
    %v799 = vrot.slane %v759, 2
    %800 = vrot.lane.b32.xlu0 %v799, 32
    %v801 = vpop.permute.xlu0 %800
    %v802 = vsel %vm194, %v801, 0
    %804 = vmatprep.subr.mxu0 0.0
    %805 = vmatpush1.msra.mxu0 %v362
    %806 = vmatprep.subr.mxu0 0.0
    %807 = vmatpush1.msra.mxu0 %v363
    %808 = vmatprep.subr.mxu0 0.0
    %809 = vmatpush1.msra.mxu0 %v364
    %810 = vmatprep.subr.mxu0 0.0
    %811 = vmatpush1.msra.mxu0 %v365
    %812 = vmatprep.subr.mxu0 0.0
    %813 = vmatpush1.msra.mxu0 0.0
    %814 = vmatprep.subr.mxu0 0.0
    %815 = vmatpush1.msra.mxu0 0.0
    %816 = vmatprep.subr.mxu0 0.0
    %817 = vmatpush1.msra.mxu0 0.0
    %818 = vmatprep.subr.mxu0 0.0
    %819 = vmatpush1.msra.mxu0 0.0
    %820 = vmatprep.subr.mxu0 0.0
    %821 = vmatpush1.msra.mxu0 0.0
    %822 = vmatprep.subr.mxu0 0.0
    %823 = vmatpush1.msra.mxu0 0.0
    %824 = vmatprep.subr.mxu0 0.0
    %825 = vmatpush1.msra.mxu0 0.0
    %826 = vmatprep.subr.mxu0 0.0
    %827 = vmatpush1.msra.mxu0 0.0
    %828 = vmatprep.subr.mxu0 0.0
    %829 = vmatpush1.msra.mxu0 0.0
    %830 = vmatprep.subr.mxu0 0.0
    %831 = vmatpush1.msra.mxu0 0.0
    %832 = vmatprep.subr.mxu0 0.0
    %833 = vmatpush1.msra.mxu0 0.0
    %834 = vmatprep.subr.mxu0 0.0
    %835 = vmatpush1.msra.mxu0 0.0
    %836 = vmatprep.subr.mxu0 0.0
    %837 = vmatpush1.msra.mxu0 0.0
    %838 = vmatprep.subr.mxu0 0.0
    %839 = vmatpush1.msra.mxu0 0.0
    %840 = vmatprep.subr.mxu0 0.0
    %841 = vmatpush1.msra.mxu0 0.0
    %842 = vmatprep.subr.mxu0 0.0
    %843 = vmatpush1.msra.mxu0 0.0
    %844 = vmatprep.subr.mxu0 0.0
    %845 = vmatpush1.msra.mxu0 0.0
    %846 = vmatprep.subr.mxu0 0.0
    %847 = vmatpush1.msra.mxu0 0.0
    %848 = vmatprep.subr.mxu0 0.0
    %849 = vmatpush1.msra.mxu0 0.0
    %850 = vmatprep.subr.mxu0 0.0
    %851 = vmatpush1.msra.mxu0 0.0
    %852 = vmatprep.subr.mxu0 0.0
    %853 = vmatpush1.msra.mxu0 0.0
    %854 = vmatprep.subr.mxu0 0.0
    %855 = vmatpush1.msra.mxu0 0.0
    %856 = vmatprep.subr.mxu0 0.0
    %857 = vmatpush1.msra.mxu0 0.0
    %858 = vmatprep.subr.mxu0 0.0
    %859 = vmatpush1.msra.mxu0 0.0
    %860 = vmatprep.subr.mxu0 0.0
    %861 = vmatpush1.msra.mxu0 0.0
    %862 = vmatprep.subr.mxu0 0.0
    %863 = vmatpush1.msra.mxu0 0.0
    %864 = vmatprep.subr.mxu0 0.0
    %865 = vmatpush1.msra.mxu0 0.0
    %866 = vmatprep.subr.mxu0 0.0
    %867 = vmatpush1.msra.mxu0 0.0
    %868 = vmatprep.mubr.f32.mxu0 0.0
    %869 = vmatmul.mubr.f32.gmra.mrb[0].mxu0 %v802
    %v870 = vpop.f32.mrb[0].mxu0
    %v871 = vadd.f32 0.0, %v870
    %v872 = vpop.f32.mrb[0].mxu0
    %873 = vdwg.mxu0
    %v875 = vrot.slane %v871, 4
    %v877 = vadd.f32 %v268, %v875
    %v878 = vrot.slane %v786, 4
    %879 = vrot.lane.b32.xlu0 %v878, 32
    %v880 = vpop.permute.xlu0 %879
    %v881 = vsel %vm194, %v880, 0
    %883 = vmatprep.subr.mxu0 0.0
    %884 = vmatpush1.msra.mxu0 %v366
    %885 = vmatprep.subr.mxu0 0.0
    %886 = vmatpush1.msra.mxu0 %v367
    %887 = vmatprep.subr.mxu0 0.0
    %888 = vmatpush1.msra.mxu0 %v368
    %889 = vmatprep.subr.mxu0 0.0
    %890 = vmatpush1.msra.mxu0 %v369
    %891 = vmatprep.subr.mxu0 0.0
    %892 = vmatpush1.msra.mxu0 0.0
    %893 = vmatprep.subr.mxu0 0.0
    %894 = vmatpush1.msra.mxu0 0.0
    %895 = vmatprep.subr.mxu0 0.0
    %896 = vmatpush1.msra.mxu0 0.0
    %897 = vmatprep.subr.mxu0 0.0
    %898 = vmatpush1.msra.mxu0 0.0
    %899 = vmatprep.subr.mxu0 0.0
    %900 = vmatpush1.msra.mxu0 0.0
    %901 = vmatprep.subr.mxu0 0.0
    %902 = vmatpush1.msra.mxu0 0.0
    %903 = vmatprep.subr.mxu0 0.0
    %904 = vmatpush1.msra.mxu0 0.0
    %905 = vmatprep.subr.mxu0 0.0
    %906 = vmatpush1.msra.mxu0 0.0
    %907 = vmatprep.subr.mxu0 0.0
    %908 = vmatpush1.msra.mxu0 0.0
    %909 = vmatprep.subr.mxu0 0.0
    %910 = vmatpush1.msra.mxu0 0.0
    %911 = vmatprep.subr.mxu0 0.0
    %912 = vmatpush1.msra.mxu0 0.0
    %913 = vmatprep.subr.mxu0 0.0
    %914 = vmatpush1.msra.mxu0 0.0
    %915 = vmatprep.subr.mxu0 0.0
    %916 = vmatpush1.msra.mxu0 0.0
    %917 = vmatprep.subr.mxu0 0.0
    %918 = vmatpush1.msra.mxu0 0.0
    %919 = vmatprep.subr.mxu0 0.0
    %920 = vmatpush1.msra.mxu0 0.0
    %921 = vmatprep.subr.mxu0 0.0
    %922 = vmatpush1.msra.mxu0 0.0
    %923 = vmatprep.subr.mxu0 0.0
    %924 = vmatpush1.msra.mxu0 0.0
    %925 = vmatprep.subr.mxu0 0.0
    %926 = vmatpush1.msra.mxu0 0.0
    %927 = vmatprep.subr.mxu0 0.0
    %928 = vmatpush1.msra.mxu0 0.0
    %929 = vmatprep.subr.mxu0 0.0
    %930 = vmatpush1.msra.mxu0 0.0
    %931 = vmatprep.subr.mxu0 0.0
    %932 = vmatpush1.msra.mxu0 0.0
    %933 = vmatprep.subr.mxu0 0.0
    %934 = vmatpush1.msra.mxu0 0.0
    %935 = vmatprep.subr.mxu0 0.0
    %936 = vmatpush1.msra.mxu0 0.0
    %937 = vmatprep.subr.mxu0 0.0
    %938 = vmatpush1.msra.mxu0 0.0
    %939 = vmatprep.subr.mxu0 0.0
    %940 = vmatpush1.msra.mxu0 0.0
    %941 = vmatprep.subr.mxu0 0.0
    %942 = vmatpush1.msra.mxu0 0.0
    %943 = vmatprep.subr.mxu0 0.0
    %944 = vmatpush1.msra.mxu0 0.0
    %945 = vmatprep.subr.mxu0 0.0
    %946 = vmatpush1.msra.mxu0 0.0
    %947 = vmatprep.mubr.f32.mxu0 0.0
    %948 = vmatmul.mubr.f32.gmra.mrb[0].mxu0 %v881
    %v949 = vpop.f32.mrb[0].mxu0
    %v950 = vadd.f32 0.0, %v949
    %v951 = vpop.f32.mrb[0].mxu0
    %952 = vdwg.mxu0
    %v954 = vrot.slane %v950, 6
    %v956 = vadd.f32 %v359, %v954
    %v957 = vxor.u32 %v877, 2147483648
    %v958 = vmul.f32 %v957, 1.442695
    %v959 = vpow.pop %v958
    %v960 = vadd.f32 %v959, 1.0
    %v961 = vrcp.pop %v960
    %v962 = vmul.f32 1.0, %v961
    %v963 = vtanh.pop %v877
    %v965 = vrot.slane %v753, 6
    %v967 = vmul.f32 %v962, %v965
    %969 = vrot.lane.b32.xlu0 %v963, 64
    %v970 = vpop.permute.xlu0 %969
    %v972 = vmul.f32 %v962, %v970
    %974 = vrot.lane.b32.xlu0 %v972, 32
    %v975 = vpop.permute.xlu0 %974
    %v977 = vadd.f32 %v967, %v975
    %v978 = vtanh.pop %v977
    %980 = vrot.lane.b32.xlu0 %v978, 64
    %v981 = vpop.permute.xlu0 %980
    %v983 = vmul.f32 %v962, %v981
    %v984 = vxor.u32 %v956, 2147483648
    %v985 = vmul.f32 %v984, 1.442695
    %v986 = vpow.pop %v985
    %v987 = vadd.f32 %v986, 1.0
    %v988 = vrcp.pop %v987
    %v989 = vmul.f32 1.0, %v988
    %v990 = vtanh.pop %v956
    %v992 = vrot.slane %v780, 2
    %v994 = vmul.f32 %v989, %v992
    %996 = vrot.lane.b32.xlu0 %v990, 64
    %v997 = vpop.permute.xlu0 %996
    %v999 = vmul.f32 %v989, %v997
    %1001 = vrot.lane.b32.xlu0 %v999, 32
    %v1002 = vpop.permute.xlu0 %1001
    %v1004 = vadd.f32 %v994, %v1002
    %v1005 = vtanh.pop %v1004
    %1007 = vrot.lane.b32.xlu0 %v1005, 64
    %v1008 = vpop.permute.xlu0 %1007
    %v1010 = vmul.f32 %v989, %v1008
    %1012 = vrot.lane.b32.xlu0 %v983, 32
    %v1013 = vpop.permute.xlu0 %1012
    %vm1015 = vcmask 259076
    %1016 = vst.msk [vmem:[#allocation2] sm:$0x30] %vm1015, %v1013
    %1018 = vrot.lane.b32.xlu0 %v1010, 64
    %v1019 = vpop.permute.xlu0 %1018
    %vm1021 = vcmask 519426
    %1022 = vst.msk [vmem:[#allocation2 + $0x8] sm:$0xc] %vm1021, %v1019
    %v1023 = vrot.slane %v983, 4
    %1024 = vrot.lane.b32.xlu0 %v1023, 32
    %v1025 = vpop.permute.xlu0 %1024
    %v1026 = vsel %vm194, %v1025, 0
    %1028 = vmatprep.subr.mxu0 0.0
    %1029 = vmatpush1.msra.mxu0 %v362
    %1030 = vmatprep.subr.mxu0 0.0
    %1031 = vmatpush1.msra.mxu0 %v363
    %1032 = vmatprep.subr.mxu0 0.0
    %1033 = vmatpush1.msra.mxu0 %v364
    %1034 = vmatprep.subr.mxu0 0.0
    %1035 = vmatpush1.msra.mxu0 %v365
    %1036 = vmatprep.subr.mxu0 0.0
    %1037 = vmatpush1.msra.mxu0 0.0
    %1038 = vmatprep.subr.mxu0 0.0
    %1039 = vmatpush1.msra.mxu0 0.0
    %1040 = vmatprep.subr.mxu0 0.0
    %1041 = vmatpush1.msra.mxu0 0.0
    %1042 = vmatprep.subr.mxu0 0.0
    %1043 = vmatpush1.msra.mxu0 0.0
    %1044 = vmatprep.subr.mxu0 0.0
    %1045 = vmatpush1.msra.mxu0 0.0
    %1046 = vmatprep.subr.mxu0 0.0
    %1047 = vmatpush1.msra.mxu0 0.0
    %1048 = vmatprep.subr.mxu0 0.0
    %1049 = vmatpush1.msra.mxu0 0.0
    %1050 = vmatprep.subr.mxu0 0.0
    %1051 = vmatpush1.msra.mxu0 0.0
    %1052 = vmatprep.subr.mxu0 0.0
    %1053 = vmatpush1.msra.mxu0 0.0
    %1054 = vmatprep.subr.mxu0 0.0
    %1055 = vmatpush1.msra.mxu0 0.0
    %1056 = vmatprep.subr.mxu0 0.0
    %1057 = vmatpush1.msra.mxu0 0.0
    %1058 = vmatprep.subr.mxu0 0.0
    %1059 = vmatpush1.msra.mxu0 0.0
    %1060 = vmatprep.subr.mxu0 0.0
    %1061 = vmatpush1.msra.mxu0 0.0
    %1062 = vmatprep.subr.mxu0 0.0
    %1063 = vmatpush1.msra.mxu0 0.0
    %1064 = vmatprep.subr.mxu0 0.0
    %1065 = vmatpush1.msra.mxu0 0.0
    %1066 = vmatprep.subr.mxu0 0.0
    %1067 = vmatpush1.msra.mxu0 0.0
    %1068 = vmatprep.subr.mxu0 0.0
    %1069 = vmatpush1.msra.mxu0 0.0
    %1070 = vmatprep.subr.mxu0 0.0
    %1071 = vmatpush1.msra.mxu0 0.0
    %1072 = vmatprep.subr.mxu0 0.0
    %1073 = vmatpush1.msra.mxu0 0.0
    %1074 = vmatprep.subr.mxu0 0.0
    %1075 = vmatpush1.msra.mxu0 0.0
    %1076 = vmatprep.subr.mxu0 0.0
    %1077 = vmatpush1.msra.mxu0 0.0
    %1078 = vmatprep.subr.mxu0 0.0
    %1079 = vmatpush1.msra.mxu0 0.0
    %1080 = vmatprep.subr.mxu0 0.0
    %1081 = vmatpush1.msra.mxu0 0.0
    %1082 = vmatprep.subr.mxu0 0.0
    %1083 = vmatpush1.msra.mxu0 0.0
    %1084 = vmatprep.subr.mxu0 0.0
    %1085 = vmatpush1.msra.mxu0 0.0
    %1086 = vmatprep.subr.mxu0 0.0
    %1087 = vmatpush1.msra.mxu0 0.0
    %1088 = vmatprep.subr.mxu0 0.0
    %1089 = vmatpush1.msra.mxu0 0.0
    %1090 = vmatprep.subr.mxu0 0.0
    %1091 = vmatpush1.msra.mxu0 0.0
    %1092 = vmatprep.mubr.f32.mxu0 0.0
    %1093 = vmatmul.mubr.f32.gmra.mrb[0].mxu0 %v1026
    %v1094 = vpop.f32.mrb[0].mxu0
    %v1095 = vadd.f32 0.0, %v1094
    %v1096 = vpop.f32.mrb[0].mxu0
    %1097 = vdwg.mxu0
    %v1099 = vrot.slane %v1095, 2
    %v1101 = vadd.f32 %v268, %v1099
    %v1102 = vrot.slane %v1010, 2
    %1103 = vrot.lane.b32.xlu0 %v1102, 32
    %v1104 = vpop.permute.xlu0 %1103
    %v1105 = vsel %vm194, %v1104, 0
    %1107 = vmatprep.subr.mxu0 0.0
    %1108 = vmatpush1.msra.mxu0 %v366
    %1109 = vmatprep.subr.mxu0 0.0
    %1110 = vmatpush1.msra.mxu0 %v367
    %1111 = vmatprep.subr.mxu0 0.0
    %1112 = vmatpush1.msra.mxu0 %v368
    %1113 = vmatprep.subr.mxu0 0.0
    %1114 = vmatpush1.msra.mxu0 %v369
    %1115 = vmatprep.subr.mxu0 0.0
    %1116 = vmatpush1.msra.mxu0 0.0
    %1117 = vmatprep.subr.mxu0 0.0
    %1118 = vmatpush1.msra.mxu0 0.0
    %1119 = vmatprep.subr.mxu0 0.0
    %1120 = vmatpush1.msra.mxu0 0.0
    %1121 = vmatprep.subr.mxu0 0.0
    %1122 = vmatpush1.msra.mxu0 0.0
    %1123 = vmatprep.subr.mxu0 0.0
    %1124 = vmatpush1.msra.mxu0 0.0
    %1125 = vmatprep.subr.mxu0 0.0
    %1126 = vmatpush1.msra.mxu0 0.0
    %1127 = vmatprep.subr.mxu0 0.0
    %1128 = vmatpush1.msra.mxu0 0.0
    %1129 = vmatprep.subr.mxu0 0.0
    %1130 = vmatpush1.msra.mxu0 0.0
    %1131 = vmatprep.subr.mxu0 0.0
    %1132 = vmatpush1.msra.mxu0 0.0
    %1133 = vmatprep.subr.mxu0 0.0
    %1134 = vmatpush1.msra.mxu0 0.0
    %1135 = vmatprep.subr.mxu0 0.0
    %1136 = vmatpush1.msra.mxu0 0.0
    %1137 = vmatprep.subr.mxu0 0.0
    %1138 = vmatpush1.msra.mxu0 0.0
    %1139 = vmatprep.subr.mxu0 0.0
    %1140 = vmatpush1.msra.mxu0 0.0
    %1141 = vmatprep.subr.mxu0 0.0
    %1142 = vmatpush1.msra.mxu0 0.0
    %1143 = vmatprep.subr.mxu0 0.0
    %1144 = vmatpush1.msra.mxu0 0.0
    %1145 = vmatprep.subr.mxu0 0.0
    %1146 = vmatpush1.msra.mxu0 0.0
    %1147 = vmatprep.subr.mxu0 0.0
    %1148 = vmatpush1.msra.mxu0 0.0
    %1149 = vmatprep.subr.mxu0 0.0
    %1150 = vmatpush1.msra.mxu0 0.0
    %1151 = vmatprep.subr.mxu0 0.0
    %1152 = vmatpush1.msra.mxu0 0.0
    %1153 = vmatprep.subr.mxu0 0.0
    %1154 = vmatpush1.msra.mxu0 0.0
    %1155 = vmatprep.subr.mxu0 0.0
    %1156 = vmatpush1.msra.mxu0 0.0
    %1157 = vmatprep.subr.mxu0 0.0
    %1158 = vmatpush1.msra.mxu0 0.0
    %1159 = vmatprep.subr.mxu0 0.0
    %1160 = vmatpush1.msra.mxu0 0.0
    %1161 = vmatprep.subr.mxu0 0.0
    %1162 = vmatpush1.msra.mxu0 0.0
    %1163 = vmatprep.subr.mxu0 0.0
    %1164 = vmatpush1.msra.mxu0 0.0
    %1165 = vmatprep.subr.mxu0 0.0
    %1166 = vmatpush1.msra.mxu0 0.0
    %1167 = vmatprep.subr.mxu0 0.0
    %1168 = vmatpush1.msra.mxu0 0.0
    %1169 = vmatprep.subr.mxu0 0.0
    %1170 = vmatpush1.msra.mxu0 0.0
    %1171 = vmatprep.mubr.f32.mxu0 0.0
    %1172 = vmatmul.mubr.f32.gmra.mrb[0].mxu0 %v1105
    %v1173 = vpop.f32.mrb[0].mxu0
    %v1174 = vadd.f32 0.0, %v1173
    %v1175 = vpop.f32.mrb[0].mxu0
    %1176 = vdwg.mxu0
    %v1177 = vadd.f32 %v359, %v1174
    %v1178 = vxor.u32 %v1101, 2147483648
    %v1179 = vmul.f32 %v1178, 1.442695
    %v1180 = vpow.pop %v1179
    %v1181 = vadd.f32 %v1180, 1.0
    %v1182 = vrcp.pop %v1181
    %v1183 = vmul.f32 1.0, %v1182
    %v1184 = vtanh.pop %v1101
    %v1186 = vrot.slane %v977, 6
    %v1188 = vmul.f32 %v1183, %v1186
    %1190 = vrot.lane.b32.xlu0 %v1184, 64
    %v1191 = vpop.permute.xlu0 %1190
    %v1193 = vmul.f32 %v1183, %v1191
    %1195 = vrot.lane.b32.xlu0 %v1193, 32
    %v1196 = vpop.permute.xlu0 %1195
    %v1198 = vadd.f32 %v1188, %v1196
    %v1199 = vtanh.pop %v1198
    %1201 = vrot.lane.b32.xlu0 %v1199, 64
    %v1202 = vpop.permute.xlu0 %1201
    %v1204 = vmul.f32 %v1183, %v1202
    %v1205 = vxor.u32 %v1177, 2147483648
    %v1206 = vmul.f32 %v1205, 1.442695
    %v1207 = vpow.pop %v1206
    %v1208 = vadd.f32 %v1207, 1.0
    %v1209 = vrcp.pop %v1208
    %v1210 = vmul.f32 1.0, %v1209
    %v1211 = vtanh.pop %v1177
    %v1213 = vrot.slane %v1004, 2
    %v1215 = vmul.f32 %v1210, %v1213
    %1217 = vrot.lane.b32.xlu0 %v1211, 64
    %v1218 = vpop.permute.xlu0 %1217
    %v1220 = vmul.f32 %v1210, %v1218
    %1222 = vrot.lane.b32.xlu0 %v1220, 32
    %v1223 = vpop.permute.xlu0 %1222
    %v1225 = vadd.f32 %v1215, %v1223
    %v1226 = vtanh.pop %v1225
    %1228 = vrot.lane.b32.xlu0 %v1226, 64
    %v1229 = vpop.permute.xlu0 %1228
    %v1231 = vmul.f32 %v1210, %v1229
    %1233 = vrot.lane.b32.xlu0 %v1204, 32
    %v1234 = vpop.permute.xlu0 %1233
    %vm1236 = vcmask 261126
    %1237 = vst.msk [vmem:[#allocation2] sm:$0xc0] %vm1236, %v1234
    %1239 = vrot.lane.b32.xlu0 %v1231, 64
    %v1240 = vpop.permute.xlu0 %1239
    %vm1242 = vcmask 517376
    %1243 = vst.msk [vmem:[#allocation2 + $0x8] sm:$0x3] %vm1242, %v1240
    %v1244 = vrot.slane %v1204, 6
    %1245 = vrot.lane.b32.xlu0 %v1244, 32
    %v1246 = vpop.permute.xlu0 %1245
    %v1247 = vsel %vm194, %v1246, 0
    %1249 = vmatprep.subr.mxu0 0.0
    %1250 = vmatpush1.msra.mxu0 %v362
    %1251 = vmatprep.subr.mxu0 0.0
    %1252 = vmatpush1.msra.mxu0 %v363
    %1253 = vmatprep.subr.mxu0 0.0
    %1254 = vmatpush1.msra.mxu0 %v364
    %1255 = vmatprep.subr.mxu0 0.0
    %1256 = vmatpush1.msra.mxu0 %v365
    %1257 = vmatprep.subr.mxu0 0.0
    %1258 = vmatpush1.msra.mxu0 0.0
    %1259 = vmatprep.subr.mxu0 0.0
    %1260 = vmatpush1.msra.mxu0 0.0
    %1261 = vmatprep.subr.mxu0 0.0
    %1262 = vmatpush1.msra.mxu0 0.0
    %1263 = vmatprep.subr.mxu0 0.0
    %1264 = vmatpush1.msra.mxu0 0.0
    %1265 = vmatprep.subr.mxu0 0.0
    %1266 = vmatpush1.msra.mxu0 0.0
    %1267 = vmatprep.subr.mxu0 0.0
    %1268 = vmatpush1.msra.mxu0 0.0
    %1269 = vmatprep.subr.mxu0 0.0
    %1270 = vmatpush1.msra.mxu0 0.0
    %1271 = vmatprep.subr.mxu0 0.0
    %1272 = vmatpush1.msra.mxu0 0.0
    %1273 = vmatprep.subr.mxu0 0.0
    %1274 = vmatpush1.msra.mxu0 0.0
    %1275 = vmatprep.subr.mxu0 0.0
    %1276 = vmatpush1.msra.mxu0 0.0
    %1277 = vmatprep.subr.mxu0 0.0
    %1278 = vmatpush1.msra.mxu0 0.0
    %1279 = vmatprep.subr.mxu0 0.0
    %1280 = vmatpush1.msra.mxu0 0.0
    %1281 = vmatprep.subr.mxu0 0.0
    %1282 = vmatpush1.msra.mxu0 0.0
    %1283 = vmatprep.subr.mxu0 0.0
    %1284 = vmatpush1.msra.mxu0 0.0
    %1285 = vmatprep.subr.mxu0 0.0
    %1286 = vmatpush1.msra.mxu0 0.0
    %1287 = vmatprep.subr.mxu0 0.0
    %1288 = vmatpush1.msra.mxu0 0.0
    %1289 = vmatprep.subr.mxu0 0.0
    %1290 = vmatpush1.msra.mxu0 0.0
    %1291 = vmatprep.subr.mxu0 0.0
    %1292 = vmatpush1.msra.mxu0 0.0
    %1293 = vmatprep.subr.mxu0 0.0
    %1294 = vmatpush1.msra.mxu0 0.0
    %1295 = vmatprep.subr.mxu0 0.0
    %1296 = vmatpush1.msra.mxu0 0.0
    %1297 = vmatprep.subr.mxu0 0.0
    %1298 = vmatpush1.msra.mxu0 0.0
    %1299 = vmatprep.subr.mxu0 0.0
    %1300 = vmatpush1.msra.mxu0 0.0
    %1301 = vmatprep.subr.mxu0 0.0
    %1302 = vmatpush1.msra.mxu0 0.0
    %1303 = vmatprep.subr.mxu0 0.0
    %1304 = vmatpush1.msra.mxu0 0.0
    %1305 = vmatprep.subr.mxu0 0.0
    %1306 = vmatpush1.msra.mxu0 0.0
    %1307 = vmatprep.subr.mxu0 0.0
    %1308 = vmatpush1.msra.mxu0 0.0
    %1309 = vmatprep.subr.mxu0 0.0
    %1310 = vmatpush1.msra.mxu0 0.0
    %1311 = vmatprep.subr.mxu0 0.0
    %1312 = vmatpush1.msra.mxu0 0.0
    %1313 = vmatprep.mubr.f32.mxu0 0.0
    %1314 = vmatmul.mubr.f32.gmra.mrb[0].mxu0 %v1247
    %v1315 = vpop.f32.mrb[0].mxu0
    %v1316 = vadd.f32 0.0, %v1315
    %v1317 = vpop.f32.mrb[0].mxu0
    %1318 = vdwg.mxu0
    %v1319 = vadd.f32 %v273, %v1316
    %1320 = vrot.lane.b32.xlu0 %v1231, 32
    %v1321 = vpop.permute.xlu0 %1320
    %v1322 = vsel %vm194, %v1321, 0
    %1324 = vmatprep.subr.mxu0 0.0
    %1325 = vmatpush1.msra.mxu0 %v366
    %1326 = vmatprep.subr.mxu0 0.0
    %1327 = vmatpush1.msra.mxu0 %v367
    %1328 = vmatprep.subr.mxu0 0.0
    %1329 = vmatpush1.msra.mxu0 %v368
    %1330 = vmatprep.subr.mxu0 0.0
    %1331 = vmatpush1.msra.mxu0 %v369
    %1332 = vmatprep.subr.mxu0 0.0
    %1333 = vmatpush1.msra.mxu0 0.0
    %1334 = vmatprep.subr.mxu0 0.0
    %1335 = vmatpush1.msra.mxu0 0.0
    %1336 = vmatprep.subr.mxu0 0.0
    %1337 = vmatpush1.msra.mxu0 0.0
    %1338 = vmatprep.subr.mxu0 0.0
    %1339 = vmatpush1.msra.mxu0 0.0
    %1340 = vmatprep.subr.mxu0 0.0
    %1341 = vmatpush1.msra.mxu0 0.0
    %1342 = vmatprep.subr.mxu0 0.0
    %1343 = vmatpush1.msra.mxu0 0.0
    %1344 = vmatprep.subr.mxu0 0.0
    %1345 = vmatpush1.msra.mxu0 0.0
    %1346 = vmatprep.subr.mxu0 0.0
    %1347 = vmatpush1.msra.mxu0 0.0
    %1348 = vmatprep.subr.mxu0 0.0
    %1349 = vmatpush1.msra.mxu0 0.0
    %1350 = vmatprep.subr.mxu0 0.0
    %1351 = vmatpush1.msra.mxu0 0.0
    %1352 = vmatprep.subr.mxu0 0.0
    %1353 = vmatpush1.msra.mxu0 0.0
    %1354 = vmatprep.subr.mxu0 0.0
    %1355 = vmatpush1.msra.mxu0 0.0
    %1356 = vmatprep.subr.mxu0 0.0
    %1357 = vmatpush1.msra.mxu0 0.0
    %1358 = vmatprep.subr.mxu0 0.0
    %1359 = vmatpush1.msra.mxu0 0.0
    %1360 = vmatprep.subr.mxu0 0.0
    %1361 = vmatpush1.msra.mxu0 0.0
    %1362 = vmatprep.subr.mxu0 0.0
    %1363 = vmatpush1.msra.mxu0 0.0
    %1364 = vmatprep.subr.mxu0 0.0
    %1365 = vmatpush1.msra.mxu0 0.0
    %1366 = vmatprep.subr.mxu0 0.0
    %1367 = vmatpush1.msra.mxu0 0.0
    %1368 = vmatprep.subr.mxu0 0.0
    %1369 = vmatpush1.msra.mxu0 0.0
    %1370 = vmatprep.subr.mxu0 0.0
    %1371 = vmatpush1.msra.mxu0 0.0
    %1372 = vmatprep.subr.mxu0 0.0
    %1373 = vmatpush1.msra.mxu0 0.0
    %1374 = vmatprep.subr.mxu0 0.0
    %1375 = vmatpush1.msra.mxu0 0.0
    %1376 = vmatprep.subr.mxu0 0.0
    %1377 = vmatpush1.msra.mxu0 0.0
    %1378 = vmatprep.subr.mxu0 0.0
    %1379 = vmatpush1.msra.mxu0 0.0
    %1380 = vmatprep.subr.mxu0 0.0
    %1381 = vmatpush1.msra.mxu0 0.0
    %1382 = vmatprep.subr.mxu0 0.0
    %1383 = vmatpush1.msra.mxu0 0.0
    %1384 = vmatprep.subr.mxu0 0.0
    %1385 = vmatpush1.msra.mxu0 0.0
    %1386 = vmatprep.subr.mxu0 0.0
    %1387 = vmatpush1.msra.mxu0 0.0
    %1388 = vmatprep.mubr.f32.mxu0 0.0
    %1389 = vmatmul.mubr.f32.gmra.mrb[0].mxu0 %v1322
    %v1390 = vpop.f32.mrb[0].mxu0
    %v1391 = vadd.f32 0.0, %v1390
    %v1392 = vpop.f32.mrb[0].mxu0
    %1393 = vdwg.mxu0
    %v1395 = vrot.slane %v1391, 2
    %v1397 = vadd.f32 %v354, %v1395
    %v1398 = vxor.u32 %v1319, 2147483648
    %v1399 = vmul.f32 %v1398, 1.442695
    %v1400 = vpow.pop %v1399
    %v1401 = vadd.f32 %v1400, 1.0
    %v1402 = vrcp.pop %v1401
    %v1403 = vmul.f32 1.0, %v1402
    %v1404 = vtanh.pop %v1319
    %v1406 = vrot.slane %v1198, 6
    %v1408 = vmul.f32 %v1403, %v1406
    %1410 = vrot.lane.b32.xlu0 %v1404, 64
    %v1411 = vpop.permute.xlu0 %1410
    %v1413 = vmul.f32 %v1403, %v1411
    %1415 = vrot.lane.b32.xlu0 %v1413, 32
    %v1416 = vpop.permute.xlu0 %1415
    %v1418 = vadd.f32 %v1408, %v1416
    %v1419 = vtanh.pop %v1418
    %1421 = vrot.lane.b32.xlu0 %v1419, 64
    %v1422 = vpop.permute.xlu0 %1421
    %v1424 = vmul.f32 %v1403, %v1422
    %v1425 = vxor.u32 %v1397, 2147483648
    %v1426 = vmul.f32 %v1425, 1.442695
    %v1427 = vpow.pop %v1426
    %v1428 = vadd.f32 %v1427, 1.0
    %v1429 = vrcp.pop %v1428
    %v1430 = vmul.f32 1.0, %v1429
    %v1431 = vtanh.pop %v1397
    %v1433 = vrot.slane %v1225, 2
    %v1435 = vmul.f32 %v1430, %v1433
    %1437 = vrot.lane.b32.xlu0 %v1431, 64
    %v1438 = vpop.permute.xlu0 %1437
    %v1440 = vmul.f32 %v1430, %v1438
    %1442 = vrot.lane.b32.xlu0 %v1440, 32
    %v1443 = vpop.permute.xlu0 %1442
    %v1445 = vadd.f32 %v1435, %v1443
    %v1446 = vtanh.pop %v1445
    %1448 = vrot.lane.b32.xlu0 %v1446, 64
    %v1449 = vpop.permute.xlu0 %1448
    %v1451 = vmul.f32 %v1430, %v1449
    %1453 = vrot.lane.b32.xlu0 %v1424, 32
    %v1454 = vpop.permute.xlu0 %1453
    %1456 = vst.msk [vmem:[#allocation2 + $0x8] sm:$0x3] %vm570, %v1454
    %1458 = vrot.lane.b32.xlu0 %v1451, 64
    %v1459 = vpop.permute.xlu0 %1458
    %1461 = vst.msk [vmem:[#allocation2] sm:$0xc0] %vm576, %v1459
    %v1462 = vsel %vm194, %v1454, 0
    %1464 = vmatprep.subr.mxu0 0.0
    %1465 = vmatpush1.msra.mxu0 %v362
    %1466 = vmatprep.subr.mxu0 0.0
    %1467 = vmatpush1.msra.mxu0 %v363
    %1468 = vmatprep.subr.mxu0 0.0
    %1469 = vmatpush1.msra.mxu0 %v364
    %1470 = vmatprep.subr.mxu0 0.0
    %1471 = vmatpush1.msra.mxu0 %v365
    %1472 = vmatprep.subr.mxu0 0.0
    %1473 = vmatpush1.msra.mxu0 0.0
    %1474 = vmatprep.subr.mxu0 0.0
    %1475 = vmatpush1.msra.mxu0 0.0
    %1476 = vmatprep.subr.mxu0 0.0
    %1477 = vmatpush1.msra.mxu0 0.0
    %1478 = vmatprep.subr.mxu0 0.0
    %1479 = vmatpush1.msra.mxu0 0.0
    %1480 = vmatprep.subr.mxu0 0.0
    %1481 = vmatpush1.msra.mxu0 0.0
    %1482 = vmatprep.subr.mxu0 0.0
    %1483 = vmatpush1.msra.mxu0 0.0
    %1484 = vmatprep.subr.mxu0 0.0
    %1485 = vmatpush1.msra.mxu0 0.0
    %1486 = vmatprep.subr.mxu0 0.0
    %1487 = vmatpush1.msra.mxu0 0.0
    %1488 = vmatprep.subr.mxu0 0.0
    %1489 = vmatpush1.msra.mxu0 0.0
    %1490 = vmatprep.subr.mxu0 0.0
    %1491 = vmatpush1.msra.mxu0 0.0
    %1492 = vmatprep.subr.mxu0 0.0
    %1493 = vmatpush1.msra.mxu0 0.0
    %1494 = vmatprep.subr.mxu0 0.0
    %1495 = vmatpush1.msra.mxu0 0.0
    %1496 = vmatprep.subr.mxu0 0.0
    %1497 = vmatpush1.msra.mxu0 0.0
    %1498 = vmatprep.subr.mxu0 0.0
    %1499 = vmatpush1.msra.mxu0 0.0
    %1500 = vmatprep.subr.mxu0 0.0
    %1501 = vmatpush1.msra.mxu0 0.0
    %1502 = vmatprep.subr.mxu0 0.0
    %1503 = vmatpush1.msra.mxu0 0.0
    %1504 = vmatprep.subr.mxu0 0.0
    %1505 = vmatpush1.msra.mxu0 0.0
    %1506 = vmatprep.subr.mxu0 0.0
    %1507 = vmatpush1.msra.mxu0 0.0
    %1508 = vmatprep.subr.mxu0 0.0
    %1509 = vmatpush1.msra.mxu0 0.0
    %1510 = vmatprep.subr.mxu0 0.0
    %1511 = vmatpush1.msra.mxu0 0.0
    %1512 = vmatprep.subr.mxu0 0.0
    %1513 = vmatpush1.msra.mxu0 0.0
    %1514 = vmatprep.subr.mxu0 0.0
    %1515 = vmatpush1.msra.mxu0 0.0
    %1516 = vmatprep.subr.mxu0 0.0
    %1517 = vmatpush1.msra.mxu0 0.0
    %1518 = vmatprep.subr.mxu0 0.0
    %1519 = vmatpush1.msra.mxu0 0.0
    %1520 = vmatprep.subr.mxu0 0.0
    %1521 = vmatpush1.msra.mxu0 0.0
    %1522 = vmatprep.subr.mxu0 0.0
    %1523 = vmatpush1.msra.mxu0 0.0
    %1524 = vmatprep.subr.mxu0 0.0
    %1525 = vmatpush1.msra.mxu0 0.0
    %1526 = vmatprep.subr.mxu0 0.0
    %1527 = vmatpush1.msra.mxu0 0.0
    %1528 = vmatprep.mubr.f32.mxu0 0.0
    %1529 = vmatmul.mubr.f32.gmra.mrb[0].mxu0 %v1462
    %v1530 = vpop.f32.mrb[0].mxu0
    %v1531 = vadd.f32 0.0, %v1530
    %v1532 = vpop.f32.mrb[0].mxu0
    %1533 = vdwg.mxu0
    %v1535 = vrot.slane %v1531, 6
    %v1537 = vadd.f32 %v273, %v1535
    %v1538 = vrot.slane %v1451, 6
    %1539 = vrot.lane.b32.xlu0 %v1538, 32
    %v1540 = vpop.permute.xlu0 %1539
    %v1541 = vsel %vm194, %v1540, 0
    %1543 = vmatprep.subr.mxu0 0.0
    %1544 = vmatpush1.msra.mxu0 %v366
    %1545 = vmatprep.subr.mxu0 0.0
    %1546 = vmatpush1.msra.mxu0 %v367
    %1547 = vmatprep.subr.mxu0 0.0
    %1548 = vmatpush1.msra.mxu0 %v368
    %1549 = vmatprep.subr.mxu0 0.0
    %1550 = vmatpush1.msra.mxu0 %v369
    %1551 = vmatprep.subr.mxu0 0.0
    %1552 = vmatpush1.msra.mxu0 0.0
    %1553 = vmatprep.subr.mxu0 0.0
    %1554 = vmatpush1.msra.mxu0 0.0
    %1555 = vmatprep.subr.mxu0 0.0
    %1556 = vmatpush1.msra.mxu0 0.0
    %1557 = vmatprep.subr.mxu0 0.0
    %1558 = vmatpush1.msra.mxu0 0.0
    %1559 = vmatprep.subr.mxu0 0.0
    %1560 = vmatpush1.msra.mxu0 0.0
    %1561 = vmatprep.subr.mxu0 0.0
    %1562 = vmatpush1.msra.mxu0 0.0
    %1563 = vmatprep.subr.mxu0 0.0
    %1564 = vmatpush1.msra.mxu0 0.0
    %1565 = vmatprep.subr.mxu0 0.0
    %1566 = vmatpush1.msra.mxu0 0.0
    %1567 = vmatprep.subr.mxu0 0.0
    %1568 = vmatpush1.msra.mxu0 0.0
    %1569 = vmatprep.subr.mxu0 0.0
    %1570 = vmatpush1.msra.mxu0 0.0
    %1571 = vmatprep.subr.mxu0 0.0
    %1572 = vmatpush1.msra.mxu0 0.0
    %1573 = vmatprep.subr.mxu0 0.0
    %1574 = vmatpush1.msra.mxu0 0.0
    %1575 = vmatprep.subr.mxu0 0.0
    %1576 = vmatpush1.msra.mxu0 0.0
    %1577 = vmatprep.subr.mxu0 0.0
    %1578 = vmatpush1.msra.mxu0 0.0
    %1579 = vmatprep.subr.mxu0 0.0
    %1580 = vmatpush1.msra.mxu0 0.0
    %1581 = vmatprep.subr.mxu0 0.0
    %1582 = vmatpush1.msra.mxu0 0.0
    %1583 = vmatprep.subr.mxu0 0.0
    %1584 = vmatpush1.msra.mxu0 0.0
    %1585 = vmatprep.subr.mxu0 0.0
    %1586 = vmatpush1.msra.mxu0 0.0
    %1587 = vmatprep.subr.mxu0 0.0
    %1588 = vmatpush1.msra.mxu0 0.0
    %1589 = vmatprep.subr.mxu0 0.0
    %1590 = vmatpush1.msra.mxu0 0.0
    %1591 = vmatprep.subr.mxu0 0.0
    %1592 = vmatpush1.msra.mxu0 0.0
    %1593 = vmatprep.subr.mxu0 0.0
    %1594 = vmatpush1.msra.mxu0 0.0
    %1595 = vmatprep.subr.mxu0 0.0
    %1596 = vmatpush1.msra.mxu0 0.0
    %1597 = vmatprep.subr.mxu0 0.0
    %1598 = vmatpush1.msra.mxu0 0.0
    %1599 = vmatprep.subr.mxu0 0.0
    %1600 = vmatpush1.msra.mxu0 0.0
    %1601 = vmatprep.subr.mxu0 0.0
    %1602 = vmatpush1.msra.mxu0 0.0
    %1603 = vmatprep.subr.mxu0 0.0
    %1604 = vmatpush1.msra.mxu0 0.0
    %1605 = vmatprep.subr.mxu0 0.0
    %1606 = vmatpush1.msra.mxu0 0.0
    %1607 = vmatprep.mubr.f32.mxu0 0.0
    %1608 = vmatmul.mubr.f32.gmra.mrb[0].mxu0 %v1541
    %v1609 = vpop.f32.mrb[0].mxu0
    %v1610 = vadd.f32 0.0, %v1609
    %v1611 = vpop.f32.mrb[0].mxu0
    %1612 = vdwg.mxu0
    %v1614 = vrot.slane %v1610, 4
    %v1616 = vadd.f32 %v354, %v1614
    %v1617 = vxor.u32 %v1537, 2147483648
    %v1618 = vmul.f32 %v1617, 1.442695
    %v1619 = vpow.pop %v1618
    %v1620 = vadd.f32 %v1619, 1.0
    %v1621 = vrcp.pop %v1620
    %v1622 = vmul.f32 1.0, %v1621
    %v1623 = vtanh.pop %v1537
    %v1625 = vrot.slane %v1418, 6
    %v1627 = vmul.f32 %v1622, %v1625
    %1629 = vrot.lane.b32.xlu0 %v1623, 64
    %v1630 = vpop.permute.xlu0 %1629
    %v1632 = vmul.f32 %v1622, %v1630
    %1634 = vrot.lane.b32.xlu0 %v1632, 32
    %v1635 = vpop.permute.xlu0 %1634
    %v1637 = vadd.f32 %v1627, %v1635
    %v1638 = vtanh.pop %v1637
    %1640 = vrot.lane.b32.xlu0 %v1638, 64
    %v1641 = vpop.permute.xlu0 %1640
    %v1643 = vmul.f32 %v1622, %v1641
    %v1644 = vxor.u32 %v1616, 2147483648
    %v1645 = vmul.f32 %v1644, 1.442695
    %v1646 = vpow.pop %v1645
    %v1647 = vadd.f32 %v1646, 1.0
    %v1648 = vrcp.pop %v1647
    %v1649 = vmul.f32 1.0, %v1648
    %v1650 = vtanh.pop %v1616
    %v1652 = vrot.slane %v1445, 2
    %v1654 = vmul.f32 %v1649, %v1652
    %1656 = vrot.lane.b32.xlu0 %v1650, 64
    %v1657 = vpop.permute.xlu0 %1656
    %v1659 = vmul.f32 %v1649, %v1657
    %1661 = vrot.lane.b32.xlu0 %v1659, 32
    %v1662 = vpop.permute.xlu0 %1661
    %v1664 = vadd.f32 %v1654, %v1662
    %v1665 = vtanh.pop %v1664
    %1667 = vrot.lane.b32.xlu0 %v1665, 64
    %v1668 = vpop.permute.xlu0 %1667
    %v1670 = vmul.f32 %v1649, %v1668
    %1672 = vrot.lane.b32.xlu0 %v1643, 32
    %v1673 = vpop.permute.xlu0 %1672
    %1675 = vst.msk [vmem:[#allocation2 + $0x8] sm:$0xc] %vm791, %v1673
    %1677 = vrot.lane.b32.xlu0 %v1670, 64
    %v1678 = vpop.permute.xlu0 %1677
    %1680 = vst.msk [vmem:[#allocation2] sm:$0x30] %vm797, %v1678
    %v1681 = vrot.slane %v1643, 2
    %1682 = vrot.lane.b32.xlu0 %v1681, 32
    %v1683 = vpop.permute.xlu0 %1682
    %v1684 = vsel %vm194, %v1683, 0
    %1686 = vmatprep.subr.mxu0 0.0
    %1687 = vmatpush1.msra.mxu0 %v362
    %1688 = vmatprep.subr.mxu0 0.0
    %1689 = vmatpush1.msra.mxu0 %v363
    %1690 = vmatprep.subr.mxu0 0.0
    %1691 = vmatpush1.msra.mxu0 %v364
    %1692 = vmatprep.subr.mxu0 0.0
    %1693 = vmatpush1.msra.mxu0 %v365
    %1694 = vmatprep.subr.mxu0 0.0
    %1695 = vmatpush1.msra.mxu0 0.0
    %1696 = vmatprep.subr.mxu0 0.0
    %1697 = vmatpush1.msra.mxu0 0.0
    %1698 = vmatprep.subr.mxu0 0.0
    %1699 = vmatpush1.msra.mxu0 0.0
    %1700 = vmatprep.subr.mxu0 0.0
    %1701 = vmatpush1.msra.mxu0 0.0
    %1702 = vmatprep.subr.mxu0 0.0
    %1703 = vmatpush1.msra.mxu0 0.0
    %1704 = vmatprep.subr.mxu0 0.0
    %1705 = vmatpush1.msra.mxu0 0.0
    %1706 = vmatprep.subr.mxu0 0.0
    %1707 = vmatpush1.msra.mxu0 0.0
    %1708 = vmatprep.subr.mxu0 0.0
    %1709 = vmatpush1.msra.mxu0 0.0
    %1710 = vmatprep.subr.mxu0 0.0
    %1711 = vmatpush1.msra.mxu0 0.0
    %1712 = vmatprep.subr.mxu0 0.0
    %1713 = vmatpush1.msra.mxu0 0.0
    %1714 = vmatprep.subr.mxu0 0.0
    %1715 = vmatpush1.msra.mxu0 0.0
    %1716 = vmatprep.subr.mxu0 0.0
    %1717 = vmatpush1.msra.mxu0 0.0
    %1718 = vmatprep.subr.mxu0 0.0
    %1719 = vmatpush1.msra.mxu0 0.0
    %1720 = vmatprep.subr.mxu0 0.0
    %1721 = vmatpush1.msra.mxu0 0.0
    %1722 = vmatprep.subr.mxu0 0.0
    %1723 = vmatpush1.msra.mxu0 0.0
    %1724 = vmatprep.subr.mxu0 0.0
    %1725 = vmatpush1.msra.mxu0 0.0
    %1726 = vmatprep.subr.mxu0 0.0
    %1727 = vmatpush1.msra.mxu0 0.0
    %1728 = vmatprep.subr.mxu0 0.0
    %1729 = vmatpush1.msra.mxu0 0.0
    %1730 = vmatprep.subr.mxu0 0.0
    %1731 = vmatpush1.msra.mxu0 0.0
    %1732 = vmatprep.subr.mxu0 0.0
    %1733 = vmatpush1.msra.mxu0 0.0
    %1734 = vmatprep.subr.mxu0 0.0
    %1735 = vmatpush1.msra.mxu0 0.0
    %1736 = vmatprep.subr.mxu0 0.0
    %1737 = vmatpush1.msra.mxu0 0.0
    %1738 = vmatprep.subr.mxu0 0.0
    %1739 = vmatpush1.msra.mxu0 0.0
    %1740 = vmatprep.subr.mxu0 0.0
    %1741 = vmatpush1.msra.mxu0 0.0
    %1742 = vmatprep.subr.mxu0 0.0
    %1743 = vmatpush1.msra.mxu0 0.0
    %1744 = vmatprep.subr.mxu0 0.0
    %1745 = vmatpush1.msra.mxu0 0.0
    %1746 = vmatprep.subr.mxu0 0.0
    %1747 = vmatpush1.msra.mxu0 0.0
    %1748 = vmatprep.subr.mxu0 0.0
    %1749 = vmatpush1.msra.mxu0 0.0
    %1750 = vmatprep.mubr.f32.mxu0 0.0
    %1751 = vmatmul.mubr.f32.gmra.mrb[0].mxu0 %v1684
    %v1752 = vpop.f32.mrb[0].mxu0
    %v1753 = vadd.f32 0.0, %v1752
    %v1754 = vpop.f32.mrb[0].mxu0
    %1755 = vdwg.mxu0
    %v1757 = vrot.slane %v1753, 4
    %v1759 = vadd.f32 %v273, %v1757
    %v1760 = vrot.slane %v1670, 4
    %1761 = vrot.lane.b32.xlu0 %v1760, 32
    %v1762 = vpop.permute.xlu0 %1761
    %v1763 = vsel %vm194, %v1762, 0
    %1765 = vmatprep.subr.mxu0 0.0
    %1766 = vmatpush1.msra.mxu0 %v366
    %1767 = vmatprep.subr.mxu0 0.0
    %1768 = vmatpush1.msra.mxu0 %v367
    %1769 = vmatprep.subr.mxu0 0.0
    %1770 = vmatpush1.msra.mxu0 %v368
    %1771 = vmatprep.subr.mxu0 0.0
    %1772 = vmatpush1.msra.mxu0 %v369
    %1773 = vmatprep.subr.mxu0 0.0
    %1774 = vmatpush1.msra.mxu0 0.0
    %1775 = vmatprep.subr.mxu0 0.0
    %1776 = vmatpush1.msra.mxu0 0.0
    %1777 = vmatprep.subr.mxu0 0.0
    %1778 = vmatpush1.msra.mxu0 0.0
    %1779 = vmatprep.subr.mxu0 0.0
    %1780 = vmatpush1.msra.mxu0 0.0
    %1781 = vmatprep.subr.mxu0 0.0
    %1782 = vmatpush1.msra.mxu0 0.0
    %1783 = vmatprep.subr.mxu0 0.0
    %1784 = vmatpush1.msra.mxu0 0.0
    %1785 = vmatprep.subr.mxu0 0.0
    %1786 = vmatpush1.msra.mxu0 0.0
    %1787 = vmatprep.subr.mxu0 0.0
    %1788 = vmatpush1.msra.mxu0 0.0
    %1789 = vmatprep.subr.mxu0 0.0
    %1790 = vmatpush1.msra.mxu0 0.0
    %1791 = vmatprep.subr.mxu0 0.0
    %1792 = vmatpush1.msra.mxu0 0.0
    %1793 = vmatprep.subr.mxu0 0.0
    %1794 = vmatpush1.msra.mxu0 0.0
    %1795 = vmatprep.subr.mxu0 0.0
    %1796 = vmatpush1.msra.mxu0 0.0
    %1797 = vmatprep.subr.mxu0 0.0
    %1798 = vmatpush1.msra.mxu0 0.0
    %1799 = vmatprep.subr.mxu0 0.0
    %1800 = vmatpush1.msra.mxu0 0.0
    %1801 = vmatprep.subr.mxu0 0.0
    %1802 = vmatpush1.msra.mxu0 0.0
    %1803 = vmatprep.subr.mxu0 0.0
    %1804 = vmatpush1.msra.mxu0 0.0
    %1805 = vmatprep.subr.mxu0 0.0
    %1806 = vmatpush1.msra.mxu0 0.0
    %1807 = vmatprep.subr.mxu0 0.0
    %1808 = vmatpush1.msra.mxu0 0.0
    %1809 = vmatprep.subr.mxu0 0.0
    %1810 = vmatpush1.msra.mxu0 0.0
    %1811 = vmatprep.subr.mxu0 0.0
    %1812 = vmatpush1.msra.mxu0 0.0
    %1813 = vmatprep.subr.mxu0 0.0
    %1814 = vmatpush1.msra.mxu0 0.0
    %1815 = vmatprep.subr.mxu0 0.0
    %1816 = vmatpush1.msra.mxu0 0.0
    %1817 = vmatprep.subr.mxu0 0.0
    %1818 = vmatpush1.msra.mxu0 0.0
    %1819 = vmatprep.subr.mxu0 0.0
    %1820 = vmatpush1.msra.mxu0 0.0
    %1821 = vmatprep.subr.mxu0 0.0
    %1822 = vmatpush1.msra.mxu0 0.0
    %1823 = vmatprep.subr.mxu0 0.0
    %1824 = vmatpush1.msra.mxu0 0.0
    %1825 = vmatprep.subr.mxu0 0.0
    %1826 = vmatpush1.msra.mxu0 0.0
    %1827 = vmatprep.subr.mxu0 0.0
    %1828 = vmatpush1.msra.mxu0 0.0
    %1829 = vmatprep.mubr.f32.mxu0 0.0
    %1830 = vmatmul.mubr.f32.gmra.mrb[0].mxu0 %v1763
    %v1831 = vpop.f32.mrb[0].mxu0
    %v1832 = vadd.f32 0.0, %v1831
    %v1833 = vpop.f32.mrb[0].mxu0
    %1834 = vdwg.mxu0
    %v1836 = vrot.slane %v1832, 6
    %v1838 = vadd.f32 %v354, %v1836
    %v1839 = vxor.u32 %v1759, 2147483648
    %v1840 = vmul.f32 %v1839, 1.442695
    %v1841 = vpow.pop %v1840
    %v1842 = vadd.f32 %v1841, 1.0
    %v1843 = vrcp.pop %v1842
    %v1844 = vmul.f32 1.0, %v1843
    %v1845 = vtanh.pop %v1759
    %v1847 = vrot.slane %v1637, 6
    %v1849 = vmul.f32 %v1844, %v1847
    %1851 = vrot.lane.b32.xlu0 %v1845, 64
    %v1852 = vpop.permute.xlu0 %1851
    %v1854 = vmul.f32 %v1844, %v1852
    %1856 = vrot.lane.b32.xlu0 %v1854, 32
    %v1857 = vpop.permute.xlu0 %1856
    %v1859 = vadd.f32 %v1849, %v1857
    %v1860 = vtanh.pop %v1859
    %1862 = vrot.lane.b32.xlu0 %v1860, 64
    %v1863 = vpop.permute.xlu0 %1862
    %v1865 = vmul.f32 %v1844, %v1863
    %v1866 = vxor.u32 %v1838, 2147483648
    %v1867 = vmul.f32 %v1866, 1.442695
    %v1868 = vpow.pop %v1867
    %v1869 = vadd.f32 %v1868, 1.0
    %v1870 = vrcp.pop %v1869
    %v1871 = vmul.f32 1.0, %v1870
    %v1872 = vtanh.pop %v1838
    %v1874 = vrot.slane %v1664, 2
    %v1876 = vmul.f32 %v1871, %v1874
    %1878 = vrot.lane.b32.xlu0 %v1872, 64
    %v1879 = vpop.permute.xlu0 %1878
    %v1881 = vmul.f32 %v1871, %v1879
    %1883 = vrot.lane.b32.xlu0 %v1881, 32
    %v1884 = vpop.permute.xlu0 %1883
    %v1886 = vadd.f32 %v1876, %v1884
    %v1887 = vtanh.pop %v1886
    %1889 = vrot.lane.b32.xlu0 %v1887, 64
    %v1890 = vpop.permute.xlu0 %1889
    %v1892 = vmul.f32 %v1871, %v1890
    %1894 = vrot.lane.b32.xlu0 %v1865, 32
    %v1895 = vpop.permute.xlu0 %1894
    %1897 = vst.msk [vmem:[#allocation2 + $0x8] sm:$0x30] %vm1015, %v1895
    %1899 = vrot.lane.b32.xlu0 %v1892, 64
    %v1900 = vpop.permute.xlu0 %1899
    %1902 = vst.msk [vmem:[#allocation2] sm:$0xc] %vm1021, %v1900
    %v1903 = vrot.slane %v1865, 4
    %1904 = vrot.lane.b32.xlu0 %v1903, 32
    %v1905 = vpop.permute.xlu0 %1904
    %v1906 = vsel %vm194, %v1905, 0
    %1908 = vmatprep.subr.mxu0 0.0
    %1909 = vmatpush1.msra.mxu0 %v362
    %1910 = vmatprep.subr.mxu0 0.0
    %1911 = vmatpush1.msra.mxu0 %v363
    %1912 = vmatprep.subr.mxu0 0.0
    %1913 = vmatpush1.msra.mxu0 %v364
    %1914 = vmatprep.subr.mxu0 0.0
    %1915 = vmatpush1.msra.mxu0 %v365
    %1916 = vmatprep.subr.mxu0 0.0
    %1917 = vmatpush1.msra.mxu0 0.0
    %1918 = vmatprep.subr.mxu0 0.0
    %1919 = vmatpush1.msra.mxu0 0.0
    %1920 = vmatprep.subr.mxu0 0.0
    %1921 = vmatpush1.msra.mxu0 0.0
    %1922 = vmatprep.subr.mxu0 0.0
    %1923 = vmatpush1.msra.mxu0 0.0
    %1924 = vmatprep.subr.mxu0 0.0
    %1925 = vmatpush1.msra.mxu0 0.0
    %1926 = vmatprep.subr.mxu0 0.0
    %1927 = vmatpush1.msra.mxu0 0.0
    %1928 = vmatprep.subr.mxu0 0.0
    %1929 = vmatpush1.msra.mxu0 0.0
    %1930 = vmatprep.subr.mxu0 0.0
    %1931 = vmatpush1.msra.mxu0 0.0
    %1932 = vmatprep.subr.mxu0 0.0
    %1933 = vmatpush1.msra.mxu0 0.0
    %1934 = vmatprep.subr.mxu0 0.0
    %1935 = vmatpush1.msra.mxu0 0.0
    %1936 = vmatprep.subr.mxu0 0.0
    %1937 = vmatpush1.msra.mxu0 0.0
    %1938 = vmatprep.subr.mxu0 0.0
    %1939 = vmatpush1.msra.mxu0 0.0
    %1940 = vmatprep.subr.mxu0 0.0
    %1941 = vmatpush1.msra.mxu0 0.0
    %1942 = vmatprep.subr.mxu0 0.0
    %1943 = vmatpush1.msra.mxu0 0.0
    %1944 = vmatprep.subr.mxu0 0.0
    %1945 = vmatpush1.msra.mxu0 0.0
    %1946 = vmatprep.subr.mxu0 0.0
    %1947 = vmatpush1.msra.mxu0 0.0
    %1948 = vmatprep.subr.mxu0 0.0
    %1949 = vmatpush1.msra.mxu0 0.0
    %1950 = vmatprep.subr.mxu0 0.0
    %1951 = vmatpush1.msra.mxu0 0.0
    %1952 = vmatprep.subr.mxu0 0.0
    %1953 = vmatpush1.msra.mxu0 0.0
    %1954 = vmatprep.subr.mxu0 0.0
    %1955 = vmatpush1.msra.mxu0 0.0
    %1956 = vmatprep.subr.mxu0 0.0
    %1957 = vmatpush1.msra.mxu0 0.0
    %1958 = vmatprep.subr.mxu0 0.0
    %1959 = vmatpush1.msra.mxu0 0.0
    %1960 = vmatprep.subr.mxu0 0.0
    %1961 = vmatpush1.msra.mxu0 0.0
    %1962 = vmatprep.subr.mxu0 0.0
    %1963 = vmatpush1.msra.mxu0 0.0
    %1964 = vmatprep.subr.mxu0 0.0
    %1965 = vmatpush1.msra.mxu0 0.0
    %1966 = vmatprep.subr.mxu0 0.0
    %1967 = vmatpush1.msra.mxu0 0.0
    %1968 = vmatprep.subr.mxu0 0.0
    %1969 = vmatpush1.msra.mxu0 0.0
    %1970 = vmatprep.subr.mxu0 0.0
    %1971 = vmatpush1.msra.mxu0 0.0
    %1972 = vmatprep.mubr.f32.mxu0 0.0
    %1973 = vmatmul.mubr.f32.gmra.mrb[0].mxu0 %v1906
    %v1974 = vpop.f32.mrb[0].mxu0
    %v1975 = vadd.f32 0.0, %v1974
    %v1976 = vpop.f32.mrb[0].mxu0
    %1977 = vdwg.mxu0
    %v1979 = vrot.slane %v1975, 2
    %v1981 = vadd.f32 %v273, %v1979
    %v1982 = vrot.slane %v1892, 2
    %1983 = vrot.lane.b32.xlu0 %v1982, 32
    %v1984 = vpop.permute.xlu0 %1983
    %v1985 = vsel %vm194, %v1984, 0
    %1987 = vmatprep.subr.mxu0 0.0
    %1988 = vmatpush1.msra.mxu0 %v366
    %1989 = vmatprep.subr.mxu0 0.0
    %1990 = vmatpush1.msra.mxu0 %v367
    %1991 = vmatprep.subr.mxu0 0.0
    %1992 = vmatpush1.msra.mxu0 %v368
    %1993 = vmatprep.subr.mxu0 0.0
    %1994 = vmatpush1.msra.mxu0 %v369
    %1995 = vmatprep.subr.mxu0 0.0
    %1996 = vmatpush1.msra.mxu0 0.0
    %1997 = vmatprep.subr.mxu0 0.0
    %1998 = vmatpush1.msra.mxu0 0.0
    %1999 = vmatprep.subr.mxu0 0.0
    %2000 = vmatpush1.msra.mxu0 0.0
    %2001 = vmatprep.subr.mxu0 0.0
    %2002 = vmatpush1.msra.mxu0 0.0
    %2003 = vmatprep.subr.mxu0 0.0
    %2004 = vmatpush1.msra.mxu0 0.0
    %2005 = vmatprep.subr.mxu0 0.0
    %2006 = vmatpush1.msra.mxu0 0.0
    %2007 = vmatprep.subr.mxu0 0.0
    %2008 = vmatpush1.msra.mxu0 0.0
    %2009 = vmatprep.subr.mxu0 0.0
    %2010 = vmatpush1.msra.mxu0 0.0
    %2011 = vmatprep.subr.mxu0 0.0
    %2012 = vmatpush1.msra.mxu0 0.0
    %2013 = vmatprep.subr.mxu0 0.0
    %2014 = vmatpush1.msra.mxu0 0.0
    %2015 = vmatprep.subr.mxu0 0.0
    %2016 = vmatpush1.msra.mxu0 0.0
    %2017 = vmatprep.subr.mxu0 0.0
    %2018 = vmatpush1.msra.mxu0 0.0
    %2019 = vmatprep.subr.mxu0 0.0
    %2020 = vmatpush1.msra.mxu0 0.0
    %2021 = vmatprep.subr.mxu0 0.0
    %2022 = vmatpush1.msra.mxu0 0.0
    %2023 = vmatprep.subr.mxu0 0.0
    %2024 = vmatpush1.msra.mxu0 0.0
    %2025 = vmatprep.subr.mxu0 0.0
    %2026 = vmatpush1.msra.mxu0 0.0
    %2027 = vmatprep.subr.mxu0 0.0
    %2028 = vmatpush1.msra.mxu0 0.0
    %2029 = vmatprep.subr.mxu0 0.0
    %2030 = vmatpush1.msra.mxu0 0.0
    %2031 = vmatprep.subr.mxu0 0.0
    %2032 = vmatpush1.msra.mxu0 0.0
    %2033 = vmatprep.subr.mxu0 0.0
    %2034 = vmatpush1.msra.mxu0 0.0
    %2035 = vmatprep.subr.mxu0 0.0
    %2036 = vmatpush1.msra.mxu0 0.0
    %2037 = vmatprep.subr.mxu0 0.0
    %2038 = vmatpush1.msra.mxu0 0.0
    %2039 = vmatprep.subr.mxu0 0.0
    %2040 = vmatpush1.msra.mxu0 0.0
    %2041 = vmatprep.subr.mxu0 0.0
    %2042 = vmatpush1.msra.mxu0 0.0
    %2043 = vmatprep.subr.mxu0 0.0
    %2044 = vmatpush1.msra.mxu0 0.0
    %2045 = vmatprep.subr.mxu0 0.0
    %2046 = vmatpush1.msra.mxu0 0.0
    %2047 = vmatprep.subr.mxu0 0.0
    %2048 = vmatpush1.msra.mxu0 0.0
    %2049 = vmatprep.subr.mxu0 0.0
    %2050 = vmatpush1.msra.mxu0 0.0
    %2051 = vmatprep.mubr.f32.mxu0 0.0
    %2052 = vmatmul.mubr.f32.gmra.mrb[0].mxu0 %v1985
    %v2053 = vpop.f32.mrb[0].mxu0
    %v2054 = vadd.f32 0.0, %v2053
    %v2055 = vpop.f32.mrb[0].mxu0
    %2056 = vdwg.mxu0
    %v2057 = vadd.f32 %v354, %v2054
    %v2058 = vxor.u32 %v1981, 2147483648
    %v2059 = vmul.f32 %v2058, 1.442695
    %v2060 = vpow.pop %v2059
    %v2061 = vadd.f32 %v2060, 1.0
    %v2062 = vrcp.pop %v2061
    %v2063 = vmul.f32 1.0, %v2062
    %v2064 = vtanh.pop %v1981
    %v2066 = vrot.slane %v1859, 6
    %v2068 = vmul.f32 %v2063, %v2066
    %2070 = vrot.lane.b32.xlu0 %v2064, 64
    %v2071 = vpop.permute.xlu0 %2070
    %v2073 = vmul.f32 %v2063, %v2071
    %2075 = vrot.lane.b32.xlu0 %v2073, 32
    %v2076 = vpop.permute.xlu0 %2075
    %v2078 = vadd.f32 %v2068, %v2076
    %v2079 = vtanh.pop %v2078
    %2081 = vrot.lane.b32.xlu0 %v2079, 64
    %v2082 = vpop.permute.xlu0 %2081
    %v2084 = vmul.f32 %v2063, %v2082
    %v2085 = vxor.u32 %v2057, 2147483648
    %v2086 = vmul.f32 %v2085, 1.442695
    %v2087 = vpow.pop %v2086
    %v2088 = vadd.f32 %v2087, 1.0
    %v2089 = vrcp.pop %v2088
    %v2090 = vmul.f32 1.0, %v2089
    %v2091 = vtanh.pop %v2057
    %v2093 = vrot.slane %v1886, 2
    %v2095 = vmul.f32 %v2090, %v2093
    %2097 = vrot.lane.b32.xlu0 %v2091, 64
    %v2098 = vpop.permute.xlu0 %2097
    %v2100 = vmul.f32 %v2090, %v2098
    %2102 = vrot.lane.b32.xlu0 %v2100, 32
    %v2103 = vpop.permute.xlu0 %2102
    %v2105 = vadd.f32 %v2095, %v2103
    %v2106 = vtanh.pop %v2105
    %2108 = vrot.lane.b32.xlu0 %v2106, 64
    %v2109 = vpop.permute.xlu0 %2108
    %v2111 = vmul.f32 %v2090, %v2109
    %2113 = vrot.lane.b32.xlu0 %v2084, 32
    %v2114 = vpop.permute.xlu0 %2113
    %2116 = vst.msk [vmem:[#allocation2 + $0x8] sm:$0xc0] %vm1236, %v2114
    %2118 = vrot.lane.b32.xlu0 %v2111, 64
    %v2119 = vpop.permute.xlu0 %2118
    %2121 = vst.msk [vmem:[#allocation2] sm:$0x3] %vm1242, %v2119
    %v2122 = vld [vmem:[#allocation2] sm:$0xff]
    %v2123 = vld [vmem:[#allocation2 + $0x8] sm:$0xff]
    %v2124 = vld [vmem:[%s8] sm:$0xff]
    %v2125 = vld [vmem:[%s8 + $0x8] sm:$0xff]
    %v2126 = vld [vmem:[%s8 + $0x10] sm:$0xff]
    %v2127 = vld [vmem:[%s8 + $0x18] sm:$0xff]
    %v2128 = vld [vmem:[%s8 + $0x20] sm:$0xff]
    %v2129 = vld [vmem:[%s8 + $0x28] sm:$0xff]
    %v2130 = vld [vmem:[%s8 + $0x30] sm:$0xff]
    %v2131 = vld [vmem:[%s8 + $0x38] sm:$0xff]
    %v2132 = vld [vmem:[%s10] sm:$0x1]
    %v2134 = vlaneseq
    %v2135 = vshrl.u32 %v2134, 7
    %v2136 = vsub.s32 0, %v2135
    %v2137 = vrot.slane %v2132, %v2136
    %vm2139 = vcmask 523264
    %v2141 = vsel %vm2139, %v2122, 0
    %v2144 = vsel %vm2139, %v2123, 0
    %2146 = vmatprep.subr.mxu0 0.0
    %2147 = vmatpush1.msra.mxu0 %v2124
    %2148 = vmatprep.subr.mxu0 0.0
    %2149 = vmatpush1.msra.mxu0 %v2125
    %2150 = vmatprep.subr.mxu0 0.0
    %2151 = vmatpush1.msra.mxu0 %v2126
    %2152 = vmatprep.subr.mxu0 0.0
    %2153 = vmatpush1.msra.mxu0 %v2127
    %2154 = vmatprep.subr.mxu0 0.0
    %2155 = vmatpush1.msra.mxu0 %v2128
    %2156 = vmatprep.subr.mxu0 0.0
    %2157 = vmatpush1.msra.mxu0 %v2129
    %2158 = vmatprep.subr.mxu0 0.0
    %2159 = vmatpush1.msra.mxu0 %v2130
    %2160 = vmatprep.subr.mxu0 0.0
    %2161 = vmatpush1.msra.mxu0 %v2131
    %2162 = vmatprep.subr.mxu0 0.0
    %2163 = vmatpush1.msra.mxu0 0.0
    %2164 = vmatprep.subr.mxu0 0.0
    %2165 = vmatpush1.msra.mxu0 0.0
    %2166 = vmatprep.subr.mxu0 0.0
    %2167 = vmatpush1.msra.mxu0 0.0
    %2168 = vmatprep.subr.mxu0 0.0
    %2169 = vmatpush1.msra.mxu0 0.0
    %2170 = vmatprep.subr.mxu0 0.0
    %2171 = vmatpush1.msra.mxu0 0.0
    %2172 = vmatprep.subr.mxu0 0.0
    %2173 = vmatpush1.msra.mxu0 0.0
    %2174 = vmatprep.subr.mxu0 0.0
    %2175 = vmatpush1.msra.mxu0 0.0
    %2176 = vmatprep.subr.mxu0 0.0
    %2177 = vmatpush1.msra.mxu0 0.0
    %2178 = vmatprep.subr.mxu0 0.0
    %2179 = vmatpush1.msra.mxu0 0.0
    %2180 = vmatprep.subr.mxu0 0.0
    %2181 = vmatpush1.msra.mxu0 0.0
    %2182 = vmatprep.subr.mxu0 0.0
    %2183 = vmatpush1.msra.mxu0 0.0
    %2184 = vmatprep.subr.mxu0 0.0
    %2185 = vmatpush1.msra.mxu0 0.0
    %2186 = vmatprep.subr.mxu0 0.0
    %2187 = vmatpush1.msra.mxu0 0.0
    %2188 = vmatprep.subr.mxu0 0.0
    %2189 = vmatpush1.msra.mxu0 0.0
    %2190 = vmatprep.subr.mxu0 0.0
    %2191 = vmatpush1.msra.mxu0 0.0
    %2192 = vmatprep.subr.mxu0 0.0
    %2193 = vmatpush1.msra.mxu0 0.0
    %2194 = vmatprep.subr.mxu0 0.0
    %2195 = vmatpush1.msra.mxu0 0.0
    %2196 = vmatprep.subr.mxu0 0.0
    %2197 = vmatpush1.msra.mxu0 0.0
    %2198 = vmatprep.subr.mxu0 0.0
    %2199 = vmatpush1.msra.mxu0 0.0
    %2200 = vmatprep.subr.mxu0 0.0
    %2201 = vmatpush1.msra.mxu0 0.0
    %2202 = vmatprep.subr.mxu0 0.0
    %2203 = vmatpush1.msra.mxu0 0.0
    %2204 = vmatprep.subr.mxu0 0.0
    %2205 = vmatpush1.msra.mxu0 0.0
    %2206 = vmatprep.subr.mxu0 0.0
    %2207 = vmatpush1.msra.mxu0 0.0
    %2208 = vmatprep.subr.mxu0 0.0
    %2209 = vmatpush1.msra.mxu0 0.0
    %2210 = vmatprep.mubr.f32.mxu0 0.0
    %2211 = vmatmul.mubr.f32.gmra.mrb[0].mxu0 %v2141
    %v2212 = vpop.f32.mrb[0].mxu0
    %v2213 = vadd.f32 %v2137, %v2212
    %v2214 = vpop.f32.mrb[0].mxu0
    %2215 = vmatprep.mubr.f32.mxu0 0.0
    %2216 = vmatmul.mubr.f32.gmra.mrb[0].mxu0 %v2144
    %v2217 = vpop.f32.mrb[0].mxu0
    %v2218 = vadd.f32 %v2137, %v2217
    %v2219 = vpop.f32.mrb[0].mxu0
    %2220 = vdwg.mxu0
    %v2221 = vld [vmem:[%s11] sm:$0xff]
    %v2222 = vld [vmem:[%s11 + $0x8] sm:$0xff]
    %v2223 = vld [vmem:[%s11 + $0x10] sm:$0xff]
    %v2224 = vld [vmem:[%s11 + $0x18] sm:$0xff]
    %v2225 = vld [vmem:[%s11 + $0x20] sm:$0xff]
    %v2226 = vld [vmem:[%s11 + $0x28] sm:$0xff]
    %v2227 = vld [vmem:[%s11 + $0x30] sm:$0xff]
    %v2228 = vld [vmem:[%s11 + $0x38] sm:$0xff]
    %v2229 = vld [vmem:[%s13] sm:$0x1]
    %v2231 = vlaneseq
    %v2232 = vshrl.u32 %v2231, 7
    %v2233 = vsub.s32 0, %v2232
    %v2234 = vrot.slane %v2229, %v2233
    %2236 = vmatprep.subr.mxu0 0.0
    %2237 = vmatpush1.msra.mxu0 %v2221
    %2238 = vmatprep.subr.mxu0 0.0
    %2239 = vmatpush1.msra.mxu0 %v2222
    %2240 = vmatprep.subr.mxu0 0.0
    %2241 = vmatpush1.msra.mxu0 %v2223
    %2242 = vmatprep.subr.mxu0 0.0
    %2243 = vmatpush1.msra.mxu0 %v2224
    %2244 = vmatprep.subr.mxu0 0.0
    %2245 = vmatpush1.msra.mxu0 %v2225
    %2246 = vmatprep.subr.mxu0 0.0
    %2247 = vmatpush1.msra.mxu0 %v2226
    %2248 = vmatprep.subr.mxu0 0.0
    %2249 = vmatpush1.msra.mxu0 %v2227
    %2250 = vmatprep.subr.mxu0 0.0
    %2251 = vmatpush1.msra.mxu0 %v2228
    %2252 = vmatprep.subr.mxu0 0.0
    %2253 = vmatpush1.msra.mxu0 0.0
    %2254 = vmatprep.subr.mxu0 0.0
    %2255 = vmatpush1.msra.mxu0 0.0
    %2256 = vmatprep.subr.mxu0 0.0
    %2257 = vmatpush1.msra.mxu0 0.0
    %2258 = vmatprep.subr.mxu0 0.0
    %2259 = vmatpush1.msra.mxu0 0.0
    %2260 = vmatprep.subr.mxu0 0.0
    %2261 = vmatpush1.msra.mxu0 0.0
    %2262 = vmatprep.subr.mxu0 0.0
    %2263 = vmatpush1.msra.mxu0 0.0
    %2264 = vmatprep.subr.mxu0 0.0
    %2265 = vmatpush1.msra.mxu0 0.0
    %2266 = vmatprep.subr.mxu0 0.0
    %2267 = vmatpush1.msra.mxu0 0.0
    %2268 = vmatprep.subr.mxu0 0.0
    %2269 = vmatpush1.msra.mxu0 0.0
    %2270 = vmatprep.subr.mxu0 0.0
    %2271 = vmatpush1.msra.mxu0 0.0
    %2272 = vmatprep.subr.mxu0 0.0
    %2273 = vmatpush1.msra.mxu0 0.0
    %2274 = vmatprep.subr.mxu0 0.0
    %2275 = vmatpush1.msra.mxu0 0.0
    %2276 = vmatprep.subr.mxu0 0.0
    %2277 = vmatpush1.msra.mxu0 0.0
    %2278 = vmatprep.subr.mxu0 0.0
    %2279 = vmatpush1.msra.mxu0 0.0
    %2280 = vmatprep.subr.mxu0 0.0
    %2281 = vmatpush1.msra.mxu0 0.0
    %2282 = vmatprep.subr.mxu0 0.0
    %2283 = vmatpush1.msra.mxu0 0.0
    %2284 = vmatprep.subr.mxu0 0.0
    %2285 = vmatpush1.msra.mxu0 0.0
    %2286 = vmatprep.subr.mxu0 0.0
    %2287 = vmatpush1.msra.mxu0 0.0
    %2288 = vmatprep.subr.mxu0 0.0
    %2289 = vmatpush1.msra.mxu0 0.0
    %2290 = vmatprep.subr.mxu0 0.0
    %2291 = vmatpush1.msra.mxu0 0.0
    %2292 = vmatprep.subr.mxu0 0.0
    %2293 = vmatpush1.msra.mxu0 0.0
    %2294 = vmatprep.subr.mxu0 0.0
    %2295 = vmatpush1.msra.mxu0 0.0
    %2296 = vmatprep.subr.mxu0 0.0
    %2297 = vmatpush1.msra.mxu0 0.0
    %2298 = vmatprep.subr.mxu0 0.0
    %2299 = vmatpush1.msra.mxu0 0.0
    %2300 = vmatprep.mubr.f32.mxu0 0.0
    %2301 = vmatmul.mubr.f32.gmra.mrb[0].mxu0 %v2141
    %v2302 = vpop.f32.mrb[0].mxu0
    %v2303 = vadd.f32 %v2234, %v2302
    %v2304 = vpop.f32.mrb[0].mxu0
    %2305 = vmatprep.mubr.f32.mxu0 0.0
    %2306 = vmatmul.mubr.f32.gmra.mrb[0].mxu0 %v2144
    %v2307 = vpop.f32.mrb[0].mxu0
    %v2308 = vadd.f32 %v2234, %v2307
    %v2309 = vpop.f32.mrb[0].mxu0
    %2310 = vdwg.mxu0
    %v2311 = vld [vmem:[%s9] sm:$0xff]
    %v2312 = vld [vmem:[%s9 + $0x8] sm:$0xff]
    %v2313 = vld [vmem:[%s9 + $0x10] sm:$0xff]
    %v2314 = vld [vmem:[%s9 + $0x18] sm:$0xff]
    %v2315 = vld [vmem:[%s12] sm:$0xff]
    %v2316 = vld [vmem:[%s12 + $0x8] sm:$0xff]
    %v2317 = vld [vmem:[%s12 + $0x10] sm:$0xff]
    %v2318 = vld [vmem:[%s12 + $0x18] sm:$0xff]
    %2319 = vmatprep.subr.mxu0 0.0
    %2320 = vmatpush1.msra.mxu0 %v2311
    %2321 = vmatprep.subr.mxu0 0.0
    %2322 = vmatpush1.msra.mxu0 %v2312
    %2323 = vmatprep.subr.mxu0 0.0
    %2324 = vmatpush1.msra.mxu0 %v2313
    %2325 = vmatprep.subr.mxu0 0.0
    %2326 = vmatpush1.msra.mxu0 %v2314
    %2327 = vmatprep.subr.mxu0 0.0
    %2328 = vmatpush1.msra.mxu0 0.0
    %2329 = vmatprep.subr.mxu0 0.0
    %2330 = vmatpush1.msra.mxu0 0.0
    %2331 = vmatprep.subr.mxu0 0.0
    %2332 = vmatpush1.msra.mxu0 0.0
    %2333 = vmatprep.subr.mxu0 0.0
    %2334 = vmatpush1.msra.mxu0 0.0
    %2335 = vmatprep.subr.mxu0 0.0
    %2336 = vmatpush1.msra.mxu0 0.0
    %2337 = vmatprep.subr.mxu0 0.0
    %2338 = vmatpush1.msra.mxu0 0.0
    %2339 = vmatprep.subr.mxu0 0.0
    %2340 = vmatpush1.msra.mxu0 0.0
    %2341 = vmatprep.subr.mxu0 0.0
    %2342 = vmatpush1.msra.mxu0 0.0
    %2343 = vmatprep.subr.mxu0 0.0
    %2344 = vmatpush1.msra.mxu0 0.0
    %2345 = vmatprep.subr.mxu0 0.0
    %2346 = vmatpush1.msra.mxu0 0.0
    %2347 = vmatprep.subr.mxu0 0.0
    %2348 = vmatpush1.msra.mxu0 0.0
    %2349 = vmatprep.subr.mxu0 0.0
    %2350 = vmatpush1.msra.mxu0 0.0
    %2351 = vmatprep.subr.mxu0 0.0
    %2352 = vmatpush1.msra.mxu0 0.0
    %2353 = vmatprep.subr.mxu0 0.0
    %2354 = vmatpush1.msra.mxu0 0.0
    %2355 = vmatprep.subr.mxu0 0.0
    %2356 = vmatpush1.msra.mxu0 0.0
    %2357 = vmatprep.subr.mxu0 0.0
    %2358 = vmatpush1.msra.mxu0 0.0
    %2359 = vmatprep.subr.mxu0 0.0
    %2360 = vmatpush1.msra.mxu0 0.0
    %2361 = vmatprep.subr.mxu0 0.0
    %2362 = vmatpush1.msra.mxu0 0.0
    %2363 = vmatprep.subr.mxu0 0.0
    %2364 = vmatpush1.msra.mxu0 0.0
    %2365 = vmatprep.subr.mxu0 0.0
    %2366 = vmatpush1.msra.mxu0 0.0
    %2367 = vmatprep.subr.mxu0 0.0
    %2368 = vmatpush1.msra.mxu0 0.0
    %2369 = vmatprep.subr.mxu0 0.0
    %2370 = vmatpush1.msra.mxu0 0.0
    %2371 = vmatprep.subr.mxu0 0.0
    %2372 = vmatpush1.msra.mxu0 0.0
    %2373 = vmatprep.subr.mxu0 0.0
    %2374 = vmatpush1.msra.mxu0 0.0
    %2375 = vmatprep.subr.mxu0 0.0
    %2376 = vmatpush1.msra.mxu0 0.0
    %2377 = vmatprep.subr.mxu0 0.0
    %2378 = vmatpush1.msra.mxu0 0.0
    %2379 = vmatprep.subr.mxu0 0.0
    %2380 = vmatpush1.msra.mxu0 0.0
    %2381 = vmatprep.subr.mxu0 0.0
    %2382 = vmatpush1.msra.mxu0 0.0
    %2383 = vmatprep.mubr.f32.mxu0 0.0
    %2384 = vmatmul.mubr.f32.gmra.mrb[0].mxu0 %v371
    %v2385 = vpop.f32.mrb[0].mxu0
    %v2386 = vadd.f32 0.0, %v2385
    %v2387 = vpop.f32.mrb[0].mxu0
    %2388 = vdwg.mxu0
    %v2389 = vadd.f32 %v2213, %v2386
    %2390 = vmatprep.subr.mxu0 0.0
    %2391 = vmatpush1.msra.mxu0 %v2315
    %2392 = vmatprep.subr.mxu0 0.0
    %2393 = vmatpush1.msra.mxu0 %v2316
    %2394 = vmatprep.subr.mxu0 0.0
    %2395 = vmatpush1.msra.mxu0 %v2317
    %2396 = vmatprep.subr.mxu0 0.0
    %2397 = vmatpush1.msra.mxu0 %v2318
    %2398 = vmatprep.subr.mxu0 0.0
    %2399 = vmatpush1.msra.mxu0 0.0
    %2400 = vmatprep.subr.mxu0 0.0
    %2401 = vmatpush1.msra.mxu0 0.0
    %2402 = vmatprep.subr.mxu0 0.0
    %2403 = vmatpush1.msra.mxu0 0.0
    %2404 = vmatprep.subr.mxu0 0.0
    %2405 = vmatpush1.msra.mxu0 0.0
    %2406 = vmatprep.subr.mxu0 0.0
    %2407 = vmatpush1.msra.mxu0 0.0
    %2408 = vmatprep.subr.mxu0 0.0
    %2409 = vmatpush1.msra.mxu0 0.0
    %2410 = vmatprep.subr.mxu0 0.0
    %2411 = vmatpush1.msra.mxu0 0.0
    %2412 = vmatprep.subr.mxu0 0.0
    %2413 = vmatpush1.msra.mxu0 0.0
    %2414 = vmatprep.subr.mxu0 0.0
    %2415 = vmatpush1.msra.mxu0 0.0
    %2416 = vmatprep.subr.mxu0 0.0
    %2417 = vmatpush1.msra.mxu0 0.0
    %2418 = vmatprep.subr.mxu0 0.0
    %2419 = vmatpush1.msra.mxu0 0.0
    %2420 = vmatprep.subr.mxu0 0.0
    %2421 = vmatpush1.msra.mxu0 0.0
    %2422 = vmatprep.subr.mxu0 0.0
    %2423 = vmatpush1.msra.mxu0 0.0
    %2424 = vmatprep.subr.mxu0 0.0
    %2425 = vmatpush1.msra.mxu0 0.0
    %2426 = vmatprep.subr.mxu0 0.0
    %2427 = vmatpush1.msra.mxu0 0.0
    %2428 = vmatprep.subr.mxu0 0.0
    %2429 = vmatpush1.msra.mxu0 0.0
    %2430 = vmatprep.subr.mxu0 0.0
    %2431 = vmatpush1.msra.mxu0 0.0
    %2432 = vmatprep.subr.mxu0 0.0
    %2433 = vmatpush1.msra.mxu0 0.0
    %2434 = vmatprep.subr.mxu0 0.0
    %2435 = vmatpush1.msra.mxu0 0.0
    %2436 = vmatprep.subr.mxu0 0.0
    %2437 = vmatpush1.msra.mxu0 0.0
    %2438 = vmatprep.subr.mxu0 0.0
    %2439 = vmatpush1.msra.mxu0 0.0
    %2440 = vmatprep.subr.mxu0 0.0
    %2441 = vmatpush1.msra.mxu0 0.0
    %2442 = vmatprep.subr.mxu0 0.0
    %2443 = vmatpush1.msra.mxu0 0.0
    %2444 = vmatprep.subr.mxu0 0.0
    %2445 = vmatpush1.msra.mxu0 0.0
    %2446 = vmatprep.subr.mxu0 0.0
    %2447 = vmatpush1.msra.mxu0 0.0
    %2448 = vmatprep.subr.mxu0 0.0
    %2449 = vmatpush1.msra.mxu0 0.0
    %2450 = vmatprep.subr.mxu0 0.0
    %2451 = vmatpush1.msra.mxu0 0.0
    %2452 = vmatprep.subr.mxu0 0.0
    %2453 = vmatpush1.msra.mxu0 0.0
    %2454 = vmatprep.mubr.f32.mxu0 0.0
    %2455 = vmatmul.mubr.f32.gmra.mrb[0].mxu0 %v371
    %v2456 = vpop.f32.mrb[0].mxu0
    %v2457 = vadd.f32 0.0, %v2456
    %v2458 = vpop.f32.mrb[0].mxu0
    %2459 = vdwg.mxu0
    %v2461 = vrot.slane %v2457, 2
    %v2463 = vadd.f32 %v2308, %v2461
    %v2464 = vxor.u32 %v2389, 2147483648
    %v2465 = vmul.f32 %v2464, 1.442695
    %v2466 = vpow.pop %v2465
    %v2467 = vadd.f32 %v2466, 1.0
    %v2468 = vrcp.pop %v2467
    %v2469 = vmul.f32 1.0, %v2468
    %v2470 = vtanh.pop %v2389
    %v2471 = vmul.f32 %v2469, 0.0
    %2473 = vrot.lane.b32.xlu0 %v2470, 64
    %v2474 = vpop.permute.xlu0 %2473
    %v2476 = vmul.f32 %v2469, %v2474
    %2478 = vrot.lane.b32.xlu0 %v2476, 32
    %v2479 = vpop.permute.xlu0 %2478
    %v2481 = vadd.f32 %v2471, %v2479
    %v2482 = vtanh.pop %v2481
    %2484 = vrot.lane.b32.xlu0 %v2482, 64
    %v2485 = vpop.permute.xlu0 %2484
    %v2487 = vmul.f32 %v2469, %v2485
    %v2488 = vxor.u32 %v2463, 2147483648
    %v2489 = vmul.f32 %v2488, 1.442695
    %v2490 = vpow.pop %v2489
    %v2491 = vadd.f32 %v2490, 1.0
    %v2492 = vrcp.pop %v2491
    %v2493 = vmul.f32 1.0, %v2492
    %v2494 = vtanh.pop %v2463
    %v2495 = vmul.f32 %v2493, 0.0
    %2497 = vrot.lane.b32.xlu0 %v2494, 64
    %v2498 = vpop.permute.xlu0 %2497
    %v2500 = vmul.f32 %v2493, %v2498
    %2502 = vrot.lane.b32.xlu0 %v2500, 32
    %v2503 = vpop.permute.xlu0 %2502
    %v2505 = vadd.f32 %v2495, %v2503
    %v2506 = vtanh.pop %v2505
    %2508 = vrot.lane.b32.xlu0 %v2506, 64
    %v2509 = vpop.permute.xlu0 %2508
    %v2511 = vmul.f32 %v2493, %v2509
    %2513 = vrot.lane.b32.xlu0 %v2487, 32
    %v2514 = vpop.permute.xlu0 %2513
    %v2515 = vsel %vm194, %v2514, 0
    %2517 = vmatprep.subr.mxu0 0.0
    %2518 = vmatpush1.msra.mxu0 %v2311
    %2519 = vmatprep.subr.mxu0 0.0
    %2520 = vmatpush1.msra.mxu0 %v2312
    %2521 = vmatprep.subr.mxu0 0.0
    %2522 = vmatpush1.msra.mxu0 %v2313
    %2523 = vmatprep.subr.mxu0 0.0
    %2524 = vmatpush1.msra.mxu0 %v2314
    %2525 = vmatprep.subr.mxu0 0.0
    %2526 = vmatpush1.msra.mxu0 0.0
    %2527 = vmatprep.subr.mxu0 0.0
    %2528 = vmatpush1.msra.mxu0 0.0
    %2529 = vmatprep.subr.mxu0 0.0
    %2530 = vmatpush1.msra.mxu0 0.0
    %2531 = vmatprep.subr.mxu0 0.0
    %2532 = vmatpush1.msra.mxu0 0.0
    %2533 = vmatprep.subr.mxu0 0.0
    %2534 = vmatpush1.msra.mxu0 0.0
    %2535 = vmatprep.subr.mxu0 0.0
    %2536 = vmatpush1.msra.mxu0 0.0
    %2537 = vmatprep.subr.mxu0 0.0
    %2538 = vmatpush1.msra.mxu0 0.0
    %2539 = vmatprep.subr.mxu0 0.0
    %2540 = vmatpush1.msra.mxu0 0.0
    %2541 = vmatprep.subr.mxu0 0.0
    %2542 = vmatpush1.msra.mxu0 0.0
    %2543 = vmatprep.subr.mxu0 0.0
    %2544 = vmatpush1.msra.mxu0 0.0
    %2545 = vmatprep.subr.mxu0 0.0
    %2546 = vmatpush1.msra.mxu0 0.0
    %2547 = vmatprep.subr.mxu0 0.0
    %2548 = vmatpush1.msra.mxu0 0.0
    %2549 = vmatprep.subr.mxu0 0.0
    %2550 = vmatpush1.msra.mxu0 0.0
    %2551 = vmatprep.subr.mxu0 0.0
    %2552 = vmatpush1.msra.mxu0 0.0
    %2553 = vmatprep.subr.mxu0 0.0
    %2554 = vmatpush1.msra.mxu0 0.0
    %2555 = vmatprep.subr.mxu0 0.0
    %2556 = vmatpush1.msra.mxu0 0.0
    %2557 = vmatprep.subr.mxu0 0.0
    %2558 = vmatpush1.msra.mxu0 0.0
    %2559 = vmatprep.subr.mxu0 0.0
    %2560 = vmatpush1.msra.mxu0 0.0
    %2561 = vmatprep.subr.mxu0 0.0
    %2562 = vmatpush1.msra.mxu0 0.0
    %2563 = vmatprep.subr.mxu0 0.0
    %2564 = vmatpush1.msra.mxu0 0.0
    %2565 = vmatprep.subr.mxu0 0.0
    %2566 = vmatpush1.msra.mxu0 0.0
    %2567 = vmatprep.subr.mxu0 0.0
    %2568 = vmatpush1.msra.mxu0 0.0
    %2569 = vmatprep.subr.mxu0 0.0
    %2570 = vmatpush1.msra.mxu0 0.0
    %2571 = vmatprep.subr.mxu0 0.0
    %2572 = vmatpush1.msra.mxu0 0.0
    %2573 = vmatprep.subr.mxu0 0.0
    %2574 = vmatpush1.msra.mxu0 0.0
    %2575 = vmatprep.subr.mxu0 0.0
    %2576 = vmatpush1.msra.mxu0 0.0
    %2577 = vmatprep.subr.mxu0 0.0
    %2578 = vmatpush1.msra.mxu0 0.0
    %2579 = vmatprep.subr.mxu0 0.0
    %2580 = vmatpush1.msra.mxu0 0.0
    %2581 = vmatprep.mubr.f32.mxu0 0.0
    %2582 = vmatmul.mubr.f32.gmra.mrb[0].mxu0 %v2515
    %v2583 = vpop.f32.mrb[0].mxu0
    %v2584 = vadd.f32 0.0, %v2583
    %v2585 = vpop.f32.mrb[0].mxu0
    %2586 = vdwg.mxu0
    %v2588 = vrot.slane %v2584, 6
    %v2590 = vadd.f32 %v2213, %v2588
    %v2592 = vrot.slane %v2511, 6
    %2593 = vrot.lane.b32.xlu0 %v2592, 32
    %v2594 = vpop.permute.xlu0 %2593
    %v2595 = vsel %vm194, %v2594, 0
    %2597 = vmatprep.subr.mxu0 0.0
    %2598 = vmatpush1.msra.mxu0 %v2315
    %2599 = vmatprep.subr.mxu0 0.0
    %2600 = vmatpush1.msra.mxu0 %v2316
    %2601 = vmatprep.subr.mxu0 0.0
    %2602 = vmatpush1.msra.mxu0 %v2317
    %2603 = vmatprep.subr.mxu0 0.0
    %2604 = vmatpush1.msra.mxu0 %v2318
    %2605 = vmatprep.subr.mxu0 0.0
    %2606 = vmatpush1.msra.mxu0 0.0
    %2607 = vmatprep.subr.mxu0 0.0
    %2608 = vmatpush1.msra.mxu0 0.0
    %2609 = vmatprep.subr.mxu0 0.0
    %2610 = vmatpush1.msra.mxu0 0.0
    %2611 = vmatprep.subr.mxu0 0.0
    %2612 = vmatpush1.msra.mxu0 0.0
    %2613 = vmatprep.subr.mxu0 0.0
    %2614 = vmatpush1.msra.mxu0 0.0
    %2615 = vmatprep.subr.mxu0 0.0
    %2616 = vmatpush1.msra.mxu0 0.0
    %2617 = vmatprep.subr.mxu0 0.0
    %2618 = vmatpush1.msra.mxu0 0.0
    %2619 = vmatprep.subr.mxu0 0.0
    %2620 = vmatpush1.msra.mxu0 0.0
    %2621 = vmatprep.subr.mxu0 0.0
    %2622 = vmatpush1.msra.mxu0 0.0
    %2623 = vmatprep.subr.mxu0 0.0
    %2624 = vmatpush1.msra.mxu0 0.0
    %2625 = vmatprep.subr.mxu0 0.0
    %2626 = vmatpush1.msra.mxu0 0.0
    %2627 = vmatprep.subr.mxu0 0.0
    %2628 = vmatpush1.msra.mxu0 0.0
    %2629 = vmatprep.subr.mxu0 0.0
    %2630 = vmatpush1.msra.mxu0 0.0
    %2631 = vmatprep.subr.mxu0 0.0
    %2632 = vmatpush1.msra.mxu0 0.0
    %2633 = vmatprep.subr.mxu0 0.0
    %2634 = vmatpush1.msra.mxu0 0.0
    %2635 = vmatprep.subr.mxu0 0.0
    %2636 = vmatpush1.msra.mxu0 0.0
    %2637 = vmatprep.subr.mxu0 0.0
    %2638 = vmatpush1.msra.mxu0 0.0
    %2639 = vmatprep.subr.mxu0 0.0
    %2640 = vmatpush1.msra.mxu0 0.0
    %2641 = vmatprep.subr.mxu0 0.0
    %2642 = vmatpush1.msra.mxu0 0.0
    %2643 = vmatprep.subr.mxu0 0.0
    %2644 = vmatpush1.msra.mxu0 0.0
    %2645 = vmatprep.subr.mxu0 0.0
    %2646 = vmatpush1.msra.mxu0 0.0
    %2647 = vmatprep.subr.mxu0 0.0
    %2648 = vmatpush1.msra.mxu0 0.0
    %2649 = vmatprep.subr.mxu0 0.0
    %2650 = vmatpush1.msra.mxu0 0.0
    %2651 = vmatprep.subr.mxu0 0.0
    %2652 = vmatpush1.msra.mxu0 0.0
    %2653 = vmatprep.subr.mxu0 0.0
    %2654 = vmatpush1.msra.mxu0 0.0
    %2655 = vmatprep.subr.mxu0 0.0
    %2656 = vmatpush1.msra.mxu0 0.0
    %2657 = vmatprep.subr.mxu0 0.0
    %2658 = vmatpush1.msra.mxu0 0.0
    %2659 = vmatprep.subr.mxu0 0.0
    %2660 = vmatpush1.msra.mxu0 0.0
    %2661 = vmatprep.mubr.f32.mxu0 0.0
    %2662 = vmatmul.mubr.f32.gmra.mrb[0].mxu0 %v2595
    %v2663 = vpop.f32.mrb[0].mxu0
    %v2664 = vadd.f32 0.0, %v2663
    %v2665 = vpop.f32.mrb[0].mxu0
    %2666 = vdwg.mxu0
    %v2668 = vrot.slane %v2664, 4
    %v2670 = vadd.f32 %v2308, %v2668
    %v2671 = vxor.u32 %v2590, 2147483648
    %v2672 = vmul.f32 %v2671, 1.442695
    %v2673 = vpow.pop %v2672
    %v2674 = vadd.f32 %v2673, 1.0
    %v2675 = vrcp.pop %v2674
    %v2676 = vmul.f32 1.0, %v2675
    %v2677 = vtanh.pop %v2590
    %v2679 = vrot.slane %v2481, 6
    %v2681 = vmul.f32 %v2676, %v2679
    %2683 = vrot.lane.b32.xlu0 %v2677, 64
    %v2684 = vpop.permute.xlu0 %2683
    %v2686 = vmul.f32 %v2676, %v2684
    %2688 = vrot.lane.b32.xlu0 %v2686, 32
    %v2689 = vpop.permute.xlu0 %2688
    %v2691 = vadd.f32 %v2681, %v2689
    %v2692 = vtanh.pop %v2691
    %2694 = vrot.lane.b32.xlu0 %v2692, 64
    %v2695 = vpop.permute.xlu0 %2694
    %v2697 = vmul.f32 %v2676, %v2695
    %v2698 = vxor.u32 %v2670, 2147483648
    %v2699 = vmul.f32 %v2698, 1.442695
    %v2700 = vpow.pop %v2699
    %v2701 = vadd.f32 %v2700, 1.0
    %v2702 = vrcp.pop %v2701
    %v2703 = vmul.f32 1.0, %v2702
    %v2704 = vtanh.pop %v2670
    %v2706 = vrot.slane %v2505, 2
    %v2708 = vmul.f32 %v2703, %v2706
    %2710 = vrot.lane.b32.xlu0 %v2704, 64
    %v2711 = vpop.permute.xlu0 %2710
    %v2713 = vmul.f32 %v2703, %v2711
    %2715 = vrot.lane.b32.xlu0 %v2713, 32
    %v2716 = vpop.permute.xlu0 %2715
    %v2718 = vadd.f32 %v2708, %v2716
    %v2719 = vtanh.pop %v2718
    %2721 = vrot.lane.b32.xlu0 %v2719, 64
    %v2722 = vpop.permute.xlu0 %2721
    %v2724 = vmul.f32 %v2703, %v2722
    %v2726 = vrot.slane %v2697, 2
    %v2728 = vmax.f32 %v2487, %v2726
    %v2730 = vrot.slane %v2724, 6
    %v2732 = vmax.f32 %v2511, %v2730
    %2733 = vrot.lane.b32.xlu0 %v2726, 32
    %v2734 = vpop.permute.xlu0 %2733
    %v2735 = vsel %vm194, %v2734, 0
    %2737 = vmatprep.subr.mxu0 0.0
    %2738 = vmatpush1.msra.mxu0 %v2311
    %2739 = vmatprep.subr.mxu0 0.0
    %2740 = vmatpush1.msra.mxu0 %v2312
    %2741 = vmatprep.subr.mxu0 0.0
    %2742 = vmatpush1.msra.mxu0 %v2313
    %2743 = vmatprep.subr.mxu0 0.0
    %2744 = vmatpush1.msra.mxu0 %v2314
    %2745 = vmatprep.subr.mxu0 0.0
    %2746 = vmatpush1.msra.mxu0 0.0
    %2747 = vmatprep.subr.mxu0 0.0
    %2748 = vmatpush1.msra.mxu0 0.0
    %2749 = vmatprep.subr.mxu0 0.0
    %2750 = vmatpush1.msra.mxu0 0.0
    %2751 = vmatprep.subr.mxu0 0.0
    %2752 = vmatpush1.msra.mxu0 0.0
    %2753 = vmatprep.subr.mxu0 0.0
    %2754 = vmatpush1.msra.mxu0 0.0
    %2755 = vmatprep.subr.mxu0 0.0
    %2756 = vmatpush1.msra.mxu0 0.0
    %2757 = vmatprep.subr.mxu0 0.0
    %2758 = vmatpush1.msra.mxu0 0.0
    %2759 = vmatprep.subr.mxu0 0.0
    %2760 = vmatpush1.msra.mxu0 0.0
    %2761 = vmatprep.subr.mxu0 0.0
    %2762 = vmatpush1.msra.mxu0 0.0
    %2763 = vmatprep.subr.mxu0 0.0
    %2764 = vmatpush1.msra.mxu0 0.0
    %2765 = vmatprep.subr.mxu0 0.0
    %2766 = vmatpush1.msra.mxu0 0.0
    %2767 = vmatprep.subr.mxu0 0.0
    %2768 = vmatpush1.msra.mxu0 0.0
    %2769 = vmatprep.subr.mxu0 0.0
    %2770 = vmatpush1.msra.mxu0 0.0
    %2771 = vmatprep.subr.mxu0 0.0
    %2772 = vmatpush1.msra.mxu0 0.0
    %2773 = vmatprep.subr.mxu0 0.0
    %2774 = vmatpush1.msra.mxu0 0.0
    %2775 = vmatprep.subr.mxu0 0.0
    %2776 = vmatpush1.msra.mxu0 0.0
    %2777 = vmatprep.subr.mxu0 0.0
    %2778 = vmatpush1.msra.mxu0 0.0
    %2779 = vmatprep.subr.mxu0 0.0
    %2780 = vmatpush1.msra.mxu0 0.0
    %2781 = vmatprep.subr.mxu0 0.0
    %2782 = vmatpush1.msra.mxu0 0.0
    %2783 = vmatprep.subr.mxu0 0.0
    %2784 = vmatpush1.msra.mxu0 0.0
    %2785 = vmatprep.subr.mxu0 0.0
    %2786 = vmatpush1.msra.mxu0 0.0
    %2787 = vmatprep.subr.mxu0 0.0
    %2788 = vmatpush1.msra.mxu0 0.0
    %2789 = vmatprep.subr.mxu0 0.0
    %2790 = vmatpush1.msra.mxu0 0.0
    %2791 = vmatprep.subr.mxu0 0.0
    %2792 = vmatpush1.msra.mxu0 0.0
    %2793 = vmatprep.subr.mxu0 0.0
    %2794 = vmatpush1.msra.mxu0 0.0
    %2795 = vmatprep.subr.mxu0 0.0
    %2796 = vmatpush1.msra.mxu0 0.0
    %2797 = vmatprep.subr.mxu0 0.0
    %2798 = vmatpush1.msra.mxu0 0.0
    %2799 = vmatprep.subr.mxu0 0.0
    %2800 = vmatpush1.msra.mxu0 0.0
    %2801 = vmatprep.mubr.f32.mxu0 0.0
    %2802 = vmatmul.mubr.f32.gmra.mrb[0].mxu0 %v2735
    %v2803 = vpop.f32.mrb[0].mxu0
    %v2804 = vadd.f32 0.0, %v2803
    %v2805 = vpop.f32.mrb[0].mxu0
    %2806 = vdwg.mxu0
    %v2808 = vrot.slane %v2804, 4
    %v2810 = vadd.f32 %v2213, %v2808
    %v2811 = vrot.slane %v2724, 4
    %2812 = vrot.lane.b32.xlu0 %v2811, 32
    %v2813 = vpop.permute.xlu0 %2812
    %v2814 = vsel %vm194, %v2813, 0
    %2816 = vmatprep.subr.mxu0 0.0
    %2817 = vmatpush1.msra.mxu0 %v2315
    %2818 = vmatprep.subr.mxu0 0.0
    %2819 = vmatpush1.msra.mxu0 %v2316
    %2820 = vmatprep.subr.mxu0 0.0
    %2821 = vmatpush1.msra.mxu0 %v2317
    %2822 = vmatprep.subr.mxu0 0.0
    %2823 = vmatpush1.msra.mxu0 %v2318
    %2824 = vmatprep.subr.mxu0 0.0
    %2825 = vmatpush1.msra.mxu0 0.0
    %2826 = vmatprep.subr.mxu0 0.0
    %2827 = vmatpush1.msra.mxu0 0.0
    %2828 = vmatprep.subr.mxu0 0.0
    %2829 = vmatpush1.msra.mxu0 0.0
    %2830 = vmatprep.subr.mxu0 0.0
    %2831 = vmatpush1.msra.mxu0 0.0
    %2832 = vmatprep.subr.mxu0 0.0
    %2833 = vmatpush1.msra.mxu0 0.0
    %2834 = vmatprep.subr.mxu0 0.0
    %2835 = vmatpush1.msra.mxu0 0.0
    %2836 = vmatprep.subr.mxu0 0.0
    %2837 = vmatpush1.msra.mxu0 0.0
    %2838 = vmatprep.subr.mxu0 0.0
    %2839 = vmatpush1.msra.mxu0 0.0
    %2840 = vmatprep.subr.mxu0 0.0
    %2841 = vmatpush1.msra.mxu0 0.0
    %2842 = vmatprep.subr.mxu0 0.0
    %2843 = vmatpush1.msra.mxu0 0.0
    %2844 = vmatprep.subr.mxu0 0.0
    %2845 = vmatpush1.msra.mxu0 0.0
    %2846 = vmatprep.subr.mxu0 0.0
    %2847 = vmatpush1.msra.mxu0 0.0
    %2848 = vmatprep.subr.mxu0 0.0
    %2849 = vmatpush1.msra.mxu0 0.0
    %2850 = vmatprep.subr.mxu0 0.0
    %2851 = vmatpush1.msra.mxu0 0.0
    %2852 = vmatprep.subr.mxu0 0.0
    %2853 = vmatpush1.msra.mxu0 0.0
    %2854 = vmatprep.subr.mxu0 0.0
    %2855 = vmatpush1.msra.mxu0 0.0
    %2856 = vmatprep.subr.mxu0 0.0
    %2857 = vmatpush1.msra.mxu0 0.0
    %2858 = vmatprep.subr.mxu0 0.0
    %2859 = vmatpush1.msra.mxu0 0.0
    %2860 = vmatprep.subr.mxu0 0.0
    %2861 = vmatpush1.msra.mxu0 0.0
    %2862 = vmatprep.subr.mxu0 0.0
    %2863 = vmatpush1.msra.mxu0 0.0
    %2864 = vmatprep.subr.mxu0 0.0
    %2865 = vmatpush1.msra.mxu0 0.0
    %2866 = vmatprep.subr.mxu0 0.0
    %2867 = vmatpush1.msra.mxu0 0.0
    %2868 = vmatprep.subr.mxu0 0.0
    %2869 = vmatpush1.msra.mxu0 0.0
    %2870 = vmatprep.subr.mxu0 0.0
    %2871 = vmatpush1.msra.mxu0 0.0
    %2872 = vmatprep.subr.mxu0 0.0
    %2873 = vmatpush1.msra.mxu0 0.0
    %2874 = vmatprep.subr.mxu0 0.0
    %2875 = vmatpush1.msra.mxu0 0.0
    %2876 = vmatprep.subr.mxu0 0.0
    %2877 = vmatpush1.msra.mxu0 0.0
    %2878 = vmatprep.subr.mxu0 0.0
    %2879 = vmatpush1.msra.mxu0 0.0
    %2880 = vmatprep.mubr.f32.mxu0 0.0
    %2881 = vmatmul.mubr.f32.gmra.mrb[0].mxu0 %v2814
    %v2882 = vpop.f32.mrb[0].mxu0
    %v2883 = vadd.f32 0.0, %v2882
    %v2884 = vpop.f32.mrb[0].mxu0
    %2885 = vdwg.mxu0
    %v2887 = vrot.slane %v2883, 6
    %v2889 = vadd.f32 %v2308, %v2887
    %v2890 = vxor.u32 %v2810, 2147483648
    %v2891 = vmul.f32 %v2890, 1.442695
    %v2892 = vpow.pop %v2891
    %v2893 = vadd.f32 %v2892, 1.0
    %v2894 = vrcp.pop %v2893
    %v2895 = vmul.f32 1.0, %v2894
    %v2896 = vtanh.pop %v2810
    %v2898 = vrot.slane %v2691, 6
    %v2900 = vmul.f32 %v2895, %v2898
    %2902 = vrot.lane.b32.xlu0 %v2896, 64
    %v2903 = vpop.permute.xlu0 %2902
    %v2905 = vmul.f32 %v2895, %v2903
    %2907 = vrot.lane.b32.xlu0 %v2905, 32
    %v2908 = vpop.permute.xlu0 %2907
    %v2910 = vadd.f32 %v2900, %v2908
    %v2911 = vtanh.pop %v2910
    %2913 = vrot.lane.b32.xlu0 %v2911, 64
    %v2914 = vpop.permute.xlu0 %2913
    %v2916 = vmul.f32 %v2895, %v2914
    %v2917 = vxor.u32 %v2889, 2147483648
    %v2918 = vmul.f32 %v2917, 1.442695
    %v2919 = vpow.pop %v2918
    %v2920 = vadd.f32 %v2919, 1.0
    %v2921 = vrcp.pop %v2920
    %v2922 = vmul.f32 1.0, %v2921
    %v2923 = vtanh.pop %v2889
    %v2925 = vrot.slane %v2718, 2
    %v2927 = vmul.f32 %v2922, %v2925
    %2929 = vrot.lane.b32.xlu0 %v2923, 64
    %v2930 = vpop.permute.xlu0 %2929
    %v2932 = vmul.f32 %v2922, %v2930
    %2934 = vrot.lane.b32.xlu0 %v2932, 32
    %v2935 = vpop.permute.xlu0 %2934
    %v2937 = vadd.f32 %v2927, %v2935
    %v2938 = vtanh.pop %v2937
    %2940 = vrot.lane.b32.xlu0 %v2938, 64
    %v2941 = vpop.permute.xlu0 %2940
    %v2943 = vmul.f32 %v2922, %v2941
    %v2945 = vrot.slane %v2916, 4
    %v2947 = vmax.f32 %v2728, %v2945
    %v2949 = vrot.slane %v2943, 4
    %v2951 = vmax.f32 %v2732, %v2949
    %2952 = vrot.lane.b32.xlu0 %v2945, 32
    %v2953 = vpop.permute.xlu0 %2952
    %v2954 = vsel %vm194, %v2953, 0
    %2956 = vmatprep.subr.mxu0 0.0
    %2957 = vmatpush1.msra.mxu0 %v2311
    %2958 = vmatprep.subr.mxu0 0.0
    %2959 = vmatpush1.msra.mxu0 %v2312
    %2960 = vmatprep.subr.mxu0 0.0
    %2961 = vmatpush1.msra.mxu0 %v2313
    %2962 = vmatprep.subr.mxu0 0.0
    %2963 = vmatpush1.msra.mxu0 %v2314
    %2964 = vmatprep.subr.mxu0 0.0
    %2965 = vmatpush1.msra.mxu0 0.0
    %2966 = vmatprep.subr.mxu0 0.0
    %2967 = vmatpush1.msra.mxu0 0.0
    %2968 = vmatprep.subr.mxu0 0.0
    %2969 = vmatpush1.msra.mxu0 0.0
    %2970 = vmatprep.subr.mxu0 0.0
    %2971 = vmatpush1.msra.mxu0 0.0
    %2972 = vmatprep.subr.mxu0 0.0
    %2973 = vmatpush1.msra.mxu0 0.0
    %2974 = vmatprep.subr.mxu0 0.0
    %2975 = vmatpush1.msra.mxu0 0.0
    %2976 = vmatprep.subr.mxu0 0.0
    %2977 = vmatpush1.msra.mxu0 0.0
    %2978 = vmatprep.subr.mxu0 0.0
    %2979 = vmatpush1.msra.mxu0 0.0
    %2980 = vmatprep.subr.mxu0 0.0
    %2981 = vmatpush1.msra.mxu0 0.0
    %2982 = vmatprep.subr.mxu0 0.0
    %2983 = vmatpush1.msra.mxu0 0.0
    %2984 = vmatprep.subr.mxu0 0.0
    %2985 = vmatpush1.msra.mxu0 0.0
    %2986 = vmatprep.subr.mxu0 0.0
    %2987 = vmatpush1.msra.mxu0 0.0
    %2988 = vmatprep.subr.mxu0 0.0
    %2989 = vmatpush1.msra.mxu0 0.0
    %2990 = vmatprep.subr.mxu0 0.0
    %2991 = vmatpush1.msra.mxu0 0.0
    %2992 = vmatprep.subr.mxu0 0.0
    %2993 = vmatpush1.msra.mxu0 0.0
    %2994 = vmatprep.subr.mxu0 0.0
    %2995 = vmatpush1.msra.mxu0 0.0
    %2996 = vmatprep.subr.mxu0 0.0
    %2997 = vmatpush1.msra.mxu0 0.0
    %2998 = vmatprep.subr.mxu0 0.0
    %2999 = vmatpush1.msra.mxu0 0.0
    %3000 = vmatprep.subr.mxu0 0.0
    %3001 = vmatpush1.msra.mxu0 0.0
    %3002 = vmatprep.subr.mxu0 0.0
    %3003 = vmatpush1.msra.mxu0 0.0
    %3004 = vmatprep.subr.mxu0 0.0
    %3005 = vmatpush1.msra.mxu0 0.0
    %3006 = vmatprep.subr.mxu0 0.0
    %3007 = vmatpush1.msra.mxu0 0.0
    %3008 = vmatprep.subr.mxu0 0.0
    %3009 = vmatpush1.msra.mxu0 0.0
    %3010 = vmatprep.subr.mxu0 0.0
    %3011 = vmatpush1.msra.mxu0 0.0
    %3012 = vmatprep.subr.mxu0 0.0
    %3013 = vmatpush1.msra.mxu0 0.0
    %3014 = vmatprep.subr.mxu0 0.0
    %3015 = vmatpush1.msra.mxu0 0.0
    %3016 = vmatprep.subr.mxu0 0.0
    %3017 = vmatpush1.msra.mxu0 0.0
    %3018 = vmatprep.subr.mxu0 0.0
    %3019 = vmatpush1.msra.mxu0 0.0
    %3020 = vmatprep.mubr.f32.mxu0 0.0
    %3021 = vmatmul.mubr.f32.gmra.mrb[0].mxu0 %v2954
    %v3022 = vpop.f32.mrb[0].mxu0
    %v3023 = vadd.f32 0.0, %v3022
    %v3024 = vpop.f32.mrb[0].mxu0
    %3025 = vdwg.mxu0
    %v3027 = vrot.slane %v3023, 2
    %v3029 = vadd.f32 %v2213, %v3027
    %v3030 = vrot.slane %v2943, 2
    %3031 = vrot.lane.b32.xlu0 %v3030, 32
    %v3032 = vpop.permute.xlu0 %3031
    %v3033 = vsel %vm194, %v3032, 0
    %3035 = vmatprep.subr.mxu0 0.0
    %3036 = vmatpush1.msra.mxu0 %v2315
    %3037 = vmatprep.subr.mxu0 0.0
    %3038 = vmatpush1.msra.mxu0 %v2316
    %3039 = vmatprep.subr.mxu0 0.0
    %3040 = vmatpush1.msra.mxu0 %v2317
    %3041 = vmatprep.subr.mxu0 0.0
    %3042 = vmatpush1.msra.mxu0 %v2318
    %3043 = vmatprep.subr.mxu0 0.0
    %3044 = vmatpush1.msra.mxu0 0.0
    %3045 = vmatprep.subr.mxu0 0.0
    %3046 = vmatpush1.msra.mxu0 0.0
    %3047 = vmatprep.subr.mxu0 0.0
    %3048 = vmatpush1.msra.mxu0 0.0
    %3049 = vmatprep.subr.mxu0 0.0
    %3050 = vmatpush1.msra.mxu0 0.0
    %3051 = vmatprep.subr.mxu0 0.0
    %3052 = vmatpush1.msra.mxu0 0.0
    %3053 = vmatprep.subr.mxu0 0.0
    %3054 = vmatpush1.msra.mxu0 0.0
    %3055 = vmatprep.subr.mxu0 0.0
    %3056 = vmatpush1.msra.mxu0 0.0
    %3057 = vmatprep.subr.mxu0 0.0
    %3058 = vmatpush1.msra.mxu0 0.0
    %3059 = vmatprep.subr.mxu0 0.0
    %3060 = vmatpush1.msra.mxu0 0.0
    %3061 = vmatprep.subr.mxu0 0.0
    %3062 = vmatpush1.msra.mxu0 0.0
    %3063 = vmatprep.subr.mxu0 0.0
    %3064 = vmatpush1.msra.mxu0 0.0
    %3065 = vmatprep.subr.mxu0 0.0
    %3066 = vmatpush1.msra.mxu0 0.0
    %3067 = vmatprep.subr.mxu0 0.0
    %3068 = vmatpush1.msra.mxu0 0.0
    %3069 = vmatprep.subr.mxu0 0.0
    %3070 = vmatpush1.msra.mxu0 0.0
    %3071 = vmatprep.subr.mxu0 0.0
    %3072 = vmatpush1.msra.mxu0 0.0
    %3073 = vmatprep.subr.mxu0 0.0
    %3074 = vmatpush1.msra.mxu0 0.0
    %3075 = vmatprep.subr.mxu0 0.0
    %3076 = vmatpush1.msra.mxu0 0.0
    %3077 = vmatprep.subr.mxu0 0.0
    %3078 = vmatpush1.msra.mxu0 0.0
    %3079 = vmatprep.subr.mxu0 0.0
    %3080 = vmatpush1.msra.mxu0 0.0
    %3081 = vmatprep.subr.mxu0 0.0
    %3082 = vmatpush1.msra.mxu0 0.0
    %3083 = vmatprep.subr.mxu0 0.0
    %3084 = vmatpush1.msra.mxu0 0.0
    %3085 = vmatprep.subr.mxu0 0.0
    %3086 = vmatpush1.msra.mxu0 0.0
    %3087 = vmatprep.subr.mxu0 0.0
    %3088 = vmatpush1.msra.mxu0 0.0
    %3089 = vmatprep.subr.mxu0 0.0
    %3090 = vmatpush1.msra.mxu0 0.0
    %3091 = vmatprep.subr.mxu0 0.0
    %3092 = vmatpush1.msra.mxu0 0.0
    %3093 = vmatprep.subr.mxu0 0.0
    %3094 = vmatpush1.msra.mxu0 0.0
    %3095 = vmatprep.subr.mxu0 0.0
    %3096 = vmatpush1.msra.mxu0 0.0
    %3097 = vmatprep.subr.mxu0 0.0
    %3098 = vmatpush1.msra.mxu0 0.0
    %3099 = vmatprep.mubr.f32.mxu0 0.0
    %3100 = vmatmul.mubr.f32.gmra.mrb[0].mxu0 %v3033
    %v3101 = vpop.f32.mrb[0].mxu0
    %v3102 = vadd.f32 0.0, %v3101
    %v3103 = vpop.f32.mrb[0].mxu0
    %3104 = vdwg.mxu0
    %v3105 = vadd.f32 %v2308, %v3102
    %v3106 = vxor.u32 %v3029, 2147483648
    %v3107 = vmul.f32 %v3106, 1.442695
    %v3108 = vpow.pop %v3107
    %v3109 = vadd.f32 %v3108, 1.0
    %v3110 = vrcp.pop %v3109
    %v3111 = vmul.f32 1.0, %v3110
    %v3112 = vtanh.pop %v3029
    %v3114 = vrot.slane %v2910, 6
    %v3116 = vmul.f32 %v3111, %v3114
    %3118 = vrot.lane.b32.xlu0 %v3112, 64
    %v3119 = vpop.permute.xlu0 %3118
    %v3121 = vmul.f32 %v3111, %v3119
    %3123 = vrot.lane.b32.xlu0 %v3121, 32
    %v3124 = vpop.permute.xlu0 %3123
    %v3126 = vadd.f32 %v3116, %v3124
    %v3127 = vtanh.pop %v3126
    %3129 = vrot.lane.b32.xlu0 %v3127, 64
    %v3130 = vpop.permute.xlu0 %3129
    %v3132 = vmul.f32 %v3111, %v3130
    %v3133 = vxor.u32 %v3105, 2147483648
    %v3134 = vmul.f32 %v3133, 1.442695
    %v3135 = vpow.pop %v3134
    %v3136 = vadd.f32 %v3135, 1.0
    %v3137 = vrcp.pop %v3136
    %v3138 = vmul.f32 1.0, %v3137
    %v3139 = vtanh.pop %v3105
    %v3141 = vrot.slane %v2937, 2
    %v3143 = vmul.f32 %v3138, %v3141
    %3145 = vrot.lane.b32.xlu0 %v3139, 64
    %v3146 = vpop.permute.xlu0 %3145
    %v3148 = vmul.f32 %v3138, %v3146
    %3150 = vrot.lane.b32.xlu0 %v3148, 32
    %v3151 = vpop.permute.xlu0 %3150
    %v3153 = vadd.f32 %v3143, %v3151
    %v3154 = vtanh.pop %v3153
    %3156 = vrot.lane.b32.xlu0 %v3154, 64
    %v3157 = vpop.permute.xlu0 %3156
    %v3159 = vmul.f32 %v3138, %v3157
    %v3161 = vrot.slane %v3132, 6
    %v3163 = vmax.f32 %v2947, %v3161
    %v3165 = vrot.slane %v3159, 2
    %v3167 = vmax.f32 %v2951, %v3165
    %3168 = vrot.lane.b32.xlu0 %v3161, 32
    %v3169 = vpop.permute.xlu0 %3168
    %v3170 = vsel %vm194, %v3169, 0
    %3172 = vmatprep.subr.mxu0 0.0
    %3173 = vmatpush1.msra.mxu0 %v2311
    %3174 = vmatprep.subr.mxu0 0.0
    %3175 = vmatpush1.msra.mxu0 %v2312
    %3176 = vmatprep.subr.mxu0 0.0
    %3177 = vmatpush1.msra.mxu0 %v2313
    %3178 = vmatprep.subr.mxu0 0.0
    %3179 = vmatpush1.msra.mxu0 %v2314
    %3180 = vmatprep.subr.mxu0 0.0
    %3181 = vmatpush1.msra.mxu0 0.0
    %3182 = vmatprep.subr.mxu0 0.0
    %3183 = vmatpush1.msra.mxu0 0.0
    %3184 = vmatprep.subr.mxu0 0.0
    %3185 = vmatpush1.msra.mxu0 0.0
    %3186 = vmatprep.subr.mxu0 0.0
    %3187 = vmatpush1.msra.mxu0 0.0
    %3188 = vmatprep.subr.mxu0 0.0
    %3189 = vmatpush1.msra.mxu0 0.0
    %3190 = vmatprep.subr.mxu0 0.0
    %3191 = vmatpush1.msra.mxu0 0.0
    %3192 = vmatprep.subr.mxu0 0.0
    %3193 = vmatpush1.msra.mxu0 0.0
    %3194 = vmatprep.subr.mxu0 0.0
    %3195 = vmatpush1.msra.mxu0 0.0
    %3196 = vmatprep.subr.mxu0 0.0
    %3197 = vmatpush1.msra.mxu0 0.0
    %3198 = vmatprep.subr.mxu0 0.0
    %3199 = vmatpush1.msra.mxu0 0.0
    %3200 = vmatprep.subr.mxu0 0.0
    %3201 = vmatpush1.msra.mxu0 0.0
    %3202 = vmatprep.subr.mxu0 0.0
    %3203 = vmatpush1.msra.mxu0 0.0
    %3204 = vmatprep.subr.mxu0 0.0
    %3205 = vmatpush1.msra.mxu0 0.0
    %3206 = vmatprep.subr.mxu0 0.0
    %3207 = vmatpush1.msra.mxu0 0.0
    %3208 = vmatprep.subr.mxu0 0.0
    %3209 = vmatpush1.msra.mxu0 0.0
    %3210 = vmatprep.subr.mxu0 0.0
    %3211 = vmatpush1.msra.mxu0 0.0
    %3212 = vmatprep.subr.mxu0 0.0
    %3213 = vmatpush1.msra.mxu0 0.0
    %3214 = vmatprep.subr.mxu0 0.0
    %3215 = vmatpush1.msra.mxu0 0.0
    %3216 = vmatprep.subr.mxu0 0.0
    %3217 = vmatpush1.msra.mxu0 0.0
    %3218 = vmatprep.subr.mxu0 0.0
    %3219 = vmatpush1.msra.mxu0 0.0
    %3220 = vmatprep.subr.mxu0 0.0
    %3221 = vmatpush1.msra.mxu0 0.0
    %3222 = vmatprep.subr.mxu0 0.0
    %3223 = vmatpush1.msra.mxu0 0.0
    %3224 = vmatprep.subr.mxu0 0.0
    %3225 = vmatpush1.msra.mxu0 0.0
    %3226 = vmatprep.subr.mxu0 0.0
    %3227 = vmatpush1.msra.mxu0 0.0
    %3228 = vmatprep.subr.mxu0 0.0
    %3229 = vmatpush1.msra.mxu0 0.0
    %3230 = vmatprep.subr.mxu0 0.0
    %3231 = vmatpush1.msra.mxu0 0.0
    %3232 = vmatprep.subr.mxu0 0.0
    %3233 = vmatpush1.msra.mxu0 0.0
    %3234 = vmatprep.subr.mxu0 0.0
    %3235 = vmatpush1.msra.mxu0 0.0
    %3236 = vmatprep.mubr.f32.mxu0 0.0
    %3237 = vmatmul.mubr.f32.gmra.mrb[0].mxu0 %v3170
    %v3238 = vpop.f32.mrb[0].mxu0
    %v3239 = vadd.f32 0.0, %v3238
    %v3240 = vpop.f32.mrb[0].mxu0
    %3241 = vdwg.mxu0
    %v3242 = vadd.f32 %v2218, %v3239
    %3243 = vrot.lane.b32.xlu0 %v3159, 32
    %v3244 = vpop.permute.xlu0 %3243
    %v3245 = vsel %vm194, %v3244, 0
    %3247 = vmatprep.subr.mxu0 0.0
    %3248 = vmatpush1.msra.mxu0 %v2315
    %3249 = vmatprep.subr.mxu0 0.0
    %3250 = vmatpush1.msra.mxu0 %v2316
    %3251 = vmatprep.subr.mxu0 0.0
    %3252 = vmatpush1.msra.mxu0 %v2317
    %3253 = vmatprep.subr.mxu0 0.0
    %3254 = vmatpush1.msra.mxu0 %v2318
    %3255 = vmatprep.subr.mxu0 0.0
    %3256 = vmatpush1.msra.mxu0 0.0
    %3257 = vmatprep.subr.mxu0 0.0
    %3258 = vmatpush1.msra.mxu0 0.0
    %3259 = vmatprep.subr.mxu0 0.0
    %3260 = vmatpush1.msra.mxu0 0.0
    %3261 = vmatprep.subr.mxu0 0.0
    %3262 = vmatpush1.msra.mxu0 0.0
    %3263 = vmatprep.subr.mxu0 0.0
    %3264 = vmatpush1.msra.mxu0 0.0
    %3265 = vmatprep.subr.mxu0 0.0
    %3266 = vmatpush1.msra.mxu0 0.0
    %3267 = vmatprep.subr.mxu0 0.0
    %3268 = vmatpush1.msra.mxu0 0.0
    %3269 = vmatprep.subr.mxu0 0.0
    %3270 = vmatpush1.msra.mxu0 0.0
    %3271 = vmatprep.subr.mxu0 0.0
    %3272 = vmatpush1.msra.mxu0 0.0
    %3273 = vmatprep.subr.mxu0 0.0
    %3274 = vmatpush1.msra.mxu0 0.0
    %3275 = vmatprep.subr.mxu0 0.0
    %3276 = vmatpush1.msra.mxu0 0.0
    %3277 = vmatprep.subr.mxu0 0.0
    %3278 = vmatpush1.msra.mxu0 0.0
    %3279 = vmatprep.subr.mxu0 0.0
    %3280 = vmatpush1.msra.mxu0 0.0
    %3281 = vmatprep.subr.mxu0 0.0
    %3282 = vmatpush1.msra.mxu0 0.0
    %3283 = vmatprep.subr.mxu0 0.0
    %3284 = vmatpush1.msra.mxu0 0.0
    %3285 = vmatprep.subr.mxu0 0.0
    %3286 = vmatpush1.msra.mxu0 0.0
    %3287 = vmatprep.subr.mxu0 0.0
    %3288 = vmatpush1.msra.mxu0 0.0
    %3289 = vmatprep.subr.mxu0 0.0
    %3290 = vmatpush1.msra.mxu0 0.0
    %3291 = vmatprep.subr.mxu0 0.0
    %3292 = vmatpush1.msra.mxu0 0.0
    %3293 = vmatprep.subr.mxu0 0.0
    %3294 = vmatpush1.msra.mxu0 0.0
    %3295 = vmatprep.subr.mxu0 0.0
    %3296 = vmatpush1.msra.mxu0 0.0
    %3297 = vmatprep.subr.mxu0 0.0
    %3298 = vmatpush1.msra.mxu0 0.0
    %3299 = vmatprep.subr.mxu0 0.0
    %3300 = vmatpush1.msra.mxu0 0.0
    %3301 = vmatprep.subr.mxu0 0.0
    %3302 = vmatpush1.msra.mxu0 0.0
    %3303 = vmatprep.subr.mxu0 0.0
    %3304 = vmatpush1.msra.mxu0 0.0
    %3305 = vmatprep.subr.mxu0 0.0
    %3306 = vmatpush1.msra.mxu0 0.0
    %3307 = vmatprep.subr.mxu0 0.0
    %3308 = vmatpush1.msra.mxu0 0.0
    %3309 = vmatprep.subr.mxu0 0.0
    %3310 = vmatpush1.msra.mxu0 0.0
    %3311 = vmatprep.mubr.f32.mxu0 0.0
    %3312 = vmatmul.mubr.f32.gmra.mrb[0].mxu0 %v3245
    %v3313 = vpop.f32.mrb[0].mxu0
    %v3314 = vadd.f32 0.0, %v3313
    %v3315 = vpop.f32.mrb[0].mxu0
    %3316 = vdwg.mxu0
    %v3318 = vrot.slane %v3314, 2
    %v3320 = vadd.f32 %v2303, %v3318
    %v3321 = vxor.u32 %v3242, 2147483648
    %v3322 = vmul.f32 %v3321, 1.442695
    %v3323 = vpow.pop %v3322
    %v3324 = vadd.f32 %v3323, 1.0
    %v3325 = vrcp.pop %v3324
    %v3326 = vmul.f32 1.0, %v3325
    %v3327 = vtanh.pop %v3242
    %v3329 = vrot.slane %v3126, 6
    %v3331 = vmul.f32 %v3326, %v3329
    %3333 = vrot.lane.b32.xlu0 %v3327, 64
    %v3334 = vpop.permute.xlu0 %3333
    %v3336 = vmul.f32 %v3326, %v3334
    %3338 = vrot.lane.b32.xlu0 %v3336, 32
    %v3339 = vpop.permute.xlu0 %3338
    %v3341 = vadd.f32 %v3331, %v3339
    %v3342 = vtanh.pop %v3341
    %3344 = vrot.lane.b32.xlu0 %v3342, 64
    %v3345 = vpop.permute.xlu0 %3344
    %v3347 = vmul.f32 %v3326, %v3345
    %v3348 = vxor.u32 %v3320, 2147483648
    %v3349 = vmul.f32 %v3348, 1.442695
    %v3350 = vpow.pop %v3349
    %v3351 = vadd.f32 %v3350, 1.0
    %v3352 = vrcp.pop %v3351
    %v3353 = vmul.f32 1.0, %v3352
    %v3354 = vtanh.pop %v3320
    %v3356 = vrot.slane %v3153, 2
    %v3358 = vmul.f32 %v3353, %v3356
    %3360 = vrot.lane.b32.xlu0 %v3354, 64
    %v3361 = vpop.permute.xlu0 %3360
    %v3363 = vmul.f32 %v3353, %v3361
    %3365 = vrot.lane.b32.xlu0 %v3363, 32
    %v3366 = vpop.permute.xlu0 %3365
    %v3368 = vadd.f32 %v3358, %v3366
    %v3369 = vtanh.pop %v3368
    %3371 = vrot.lane.b32.xlu0 %v3369, 64
    %v3372 = vpop.permute.xlu0 %3371
    %v3374 = vmul.f32 %v3353, %v3372
    %v3375 = vmax.f32 %v3163, %v3347
    %v3376 = vmax.f32 %v3167, %v3374
    %3378 = vrot.lane.b32.xlu0 %v3347, 32
    %v3379 = vpop.permute.xlu0 %3378
    %v3380 = vsel %vm194, %v3379, 0
    %3382 = vmatprep.subr.mxu0 0.0
    %3383 = vmatpush1.msra.mxu0 %v2311
    %3384 = vmatprep.subr.mxu0 0.0
    %3385 = vmatpush1.msra.mxu0 %v2312
    %3386 = vmatprep.subr.mxu0 0.0
    %3387 = vmatpush1.msra.mxu0 %v2313
    %3388 = vmatprep.subr.mxu0 0.0
    %3389 = vmatpush1.msra.mxu0 %v2314
    %3390 = vmatprep.subr.mxu0 0.0
    %3391 = vmatpush1.msra.mxu0 0.0
    %3392 = vmatprep.subr.mxu0 0.0
    %3393 = vmatpush1.msra.mxu0 0.0
    %3394 = vmatprep.subr.mxu0 0.0
    %3395 = vmatpush1.msra.mxu0 0.0
    %3396 = vmatprep.subr.mxu0 0.0
    %3397 = vmatpush1.msra.mxu0 0.0
    %3398 = vmatprep.subr.mxu0 0.0
    %3399 = vmatpush1.msra.mxu0 0.0
    %3400 = vmatprep.subr.mxu0 0.0
    %3401 = vmatpush1.msra.mxu0 0.0
    %3402 = vmatprep.subr.mxu0 0.0
    %3403 = vmatpush1.msra.mxu0 0.0
    %3404 = vmatprep.subr.mxu0 0.0
    %3405 = vmatpush1.msra.mxu0 0.0
    %3406 = vmatprep.subr.mxu0 0.0
    %3407 = vmatpush1.msra.mxu0 0.0
    %3408 = vmatprep.subr.mxu0 0.0
    %3409 = vmatpush1.msra.mxu0 0.0
    %3410 = vmatprep.subr.mxu0 0.0
    %3411 = vmatpush1.msra.mxu0 0.0
    %3412 = vmatprep.subr.mxu0 0.0
    %3413 = vmatpush1.msra.mxu0 0.0
    %3414 = vmatprep.subr.mxu0 0.0
    %3415 = vmatpush1.msra.mxu0 0.0
    %3416 = vmatprep.subr.mxu0 0.0
    %3417 = vmatpush1.msra.mxu0 0.0
    %3418 = vmatprep.subr.mxu0 0.0
    %3419 = vmatpush1.msra.mxu0 0.0
    %3420 = vmatprep.subr.mxu0 0.0
    %3421 = vmatpush1.msra.mxu0 0.0
    %3422 = vmatprep.subr.mxu0 0.0
    %3423 = vmatpush1.msra.mxu0 0.0
    %3424 = vmatprep.subr.mxu0 0.0
    %3425 = vmatpush1.msra.mxu0 0.0
    %3426 = vmatprep.subr.mxu0 0.0
    %3427 = vmatpush1.msra.mxu0 0.0
    %3428 = vmatprep.subr.mxu0 0.0
    %3429 = vmatpush1.msra.mxu0 0.0
    %3430 = vmatprep.subr.mxu0 0.0
    %3431 = vmatpush1.msra.mxu0 0.0
    %3432 = vmatprep.subr.mxu0 0.0
    %3433 = vmatpush1.msra.mxu0 0.0
    %3434 = vmatprep.subr.mxu0 0.0
    %3435 = vmatpush1.msra.mxu0 0.0
    %3436 = vmatprep.subr.mxu0 0.0
    %3437 = vmatpush1.msra.mxu0 0.0
    %3438 = vmatprep.subr.mxu0 0.0
    %3439 = vmatpush1.msra.mxu0 0.0
    %3440 = vmatprep.subr.mxu0 0.0
    %3441 = vmatpush1.msra.mxu0 0.0
    %3442 = vmatprep.subr.mxu0 0.0
    %3443 = vmatpush1.msra.mxu0 0.0
    %3444 = vmatprep.subr.mxu0 0.0
    %3445 = vmatpush1.msra.mxu0 0.0
    %3446 = vmatprep.mubr.f32.mxu0 0.0
    %3447 = vmatmul.mubr.f32.gmra.mrb[0].mxu0 %v3380
    %v3448 = vpop.f32.mrb[0].mxu0
    %v3449 = vadd.f32 0.0, %v3448
    %v3450 = vpop.f32.mrb[0].mxu0
    %3451 = vdwg.mxu0
    %v3453 = vrot.slane %v3449, 6
    %v3455 = vadd.f32 %v2218, %v3453
    %v3457 = vrot.slane %v3374, 6
    %3458 = vrot.lane.b32.xlu0 %v3457, 32
    %v3459 = vpop.permute.xlu0 %3458
    %v3460 = vsel %vm194, %v3459, 0
    %3462 = vmatprep.subr.mxu0 0.0
    %3463 = vmatpush1.msra.mxu0 %v2315
    %3464 = vmatprep.subr.mxu0 0.0
    %3465 = vmatpush1.msra.mxu0 %v2316
    %3466 = vmatprep.subr.mxu0 0.0
    %3467 = vmatpush1.msra.mxu0 %v2317
    %3468 = vmatprep.subr.mxu0 0.0
    %3469 = vmatpush1.msra.mxu0 %v2318
    %3470 = vmatprep.subr.mxu0 0.0
    %3471 = vmatpush1.msra.mxu0 0.0
    %3472 = vmatprep.subr.mxu0 0.0
    %3473 = vmatpush1.msra.mxu0 0.0
    %3474 = vmatprep.subr.mxu0 0.0
    %3475 = vmatpush1.msra.mxu0 0.0
    %3476 = vmatprep.subr.mxu0 0.0
    %3477 = vmatpush1.msra.mxu0 0.0
    %3478 = vmatprep.subr.mxu0 0.0
    %3479 = vmatpush1.msra.mxu0 0.0
    %3480 = vmatprep.subr.mxu0 0.0
    %3481 = vmatpush1.msra.mxu0 0.0
    %3482 = vmatprep.subr.mxu0 0.0
    %3483 = vmatpush1.msra.mxu0 0.0
    %3484 = vmatprep.subr.mxu0 0.0
    %3485 = vmatpush1.msra.mxu0 0.0
    %3486 = vmatprep.subr.mxu0 0.0
    %3487 = vmatpush1.msra.mxu0 0.0
    %3488 = vmatprep.subr.mxu0 0.0
    %3489 = vmatpush1.msra.mxu0 0.0
    %3490 = vmatprep.subr.mxu0 0.0
    %3491 = vmatpush1.msra.mxu0 0.0
    %3492 = vmatprep.subr.mxu0 0.0
    %3493 = vmatpush1.msra.mxu0 0.0
    %3494 = vmatprep.subr.mxu0 0.0
    %3495 = vmatpush1.msra.mxu0 0.0
    %3496 = vmatprep.subr.mxu0 0.0
    %3497 = vmatpush1.msra.mxu0 0.0
    %3498 = vmatprep.subr.mxu0 0.0
    %3499 = vmatpush1.msra.mxu0 0.0
    %3500 = vmatprep.subr.mxu0 0.0
    %3501 = vmatpush1.msra.mxu0 0.0
    %3502 = vmatprep.subr.mxu0 0.0
    %3503 = vmatpush1.msra.mxu0 0.0
    %3504 = vmatprep.subr.mxu0 0.0
    %3505 = vmatpush1.msra.mxu0 0.0
    %3506 = vmatprep.subr.mxu0 0.0
    %3507 = vmatpush1.msra.mxu0 0.0
    %3508 = vmatprep.subr.mxu0 0.0
    %3509 = vmatpush1.msra.mxu0 0.0
    %3510 = vmatprep.subr.mxu0 0.0
    %3511 = vmatpush1.msra.mxu0 0.0
    %3512 = vmatprep.subr.mxu0 0.0
    %3513 = vmatpush1.msra.mxu0 0.0
    %3514 = vmatprep.subr.mxu0 0.0
    %3515 = vmatpush1.msra.mxu0 0.0
    %3516 = vmatprep.subr.mxu0 0.0
    %3517 = vmatpush1.msra.mxu0 0.0
    %3518 = vmatprep.subr.mxu0 0.0
    %3519 = vmatpush1.msra.mxu0 0.0
    %3520 = vmatprep.subr.mxu0 0.0
    %3521 = vmatpush1.msra.mxu0 0.0
    %3522 = vmatprep.subr.mxu0 0.0
    %3523 = vmatpush1.msra.mxu0 0.0
    %3524 = vmatprep.subr.mxu0 0.0
    %3525 = vmatpush1.msra.mxu0 0.0
    %3526 = vmatprep.mubr.f32.mxu0 0.0
    %3527 = vmatmul.mubr.f32.gmra.mrb[0].mxu0 %v3460
    %v3528 = vpop.f32.mrb[0].mxu0
    %v3529 = vadd.f32 0.0, %v3528
    %v3530 = vpop.f32.mrb[0].mxu0
    %3531 = vdwg.mxu0
    %v3533 = vrot.slane %v3529, 4
    %v3535 = vadd.f32 %v2303, %v3533
    %v3536 = vxor.u32 %v3455, 2147483648
    %v3537 = vmul.f32 %v3536, 1.442695
    %v3538 = vpow.pop %v3537
    %v3539 = vadd.f32 %v3538, 1.0
    %v3540 = vrcp.pop %v3539
    %v3541 = vmul.f32 1.0, %v3540
    %v3542 = vtanh.pop %v3455
    %v3544 = vrot.slane %v3341, 6
    %v3546 = vmul.f32 %v3541, %v3544
    %3548 = vrot.lane.b32.xlu0 %v3542, 64
    %v3549 = vpop.permute.xlu0 %3548
    %v3551 = vmul.f32 %v3541, %v3549
    %3553 = vrot.lane.b32.xlu0 %v3551, 32
    %v3554 = vpop.permute.xlu0 %3553
    %v3556 = vadd.f32 %v3546, %v3554
    %v3557 = vtanh.pop %v3556
    %3559 = vrot.lane.b32.xlu0 %v3557, 64
    %v3560 = vpop.permute.xlu0 %3559
    %v3562 = vmul.f32 %v3541, %v3560
    %v3563 = vxor.u32 %v3535, 2147483648
    %v3564 = vmul.f32 %v3563, 1.442695
    %v3565 = vpow.pop %v3564
    %v3566 = vadd.f32 %v3565, 1.0
    %v3567 = vrcp.pop %v3566
    %v3568 = vmul.f32 1.0, %v3567
    %v3569 = vtanh.pop %v3535
    %v3571 = vrot.slane %v3368, 2
    %v3573 = vmul.f32 %v3568, %v3571
    %3575 = vrot.lane.b32.xlu0 %v3569, 64
    %v3576 = vpop.permute.xlu0 %3575
    %v3578 = vmul.f32 %v3568, %v3576
    %3580 = vrot.lane.b32.xlu0 %v3578, 32
    %v3581 = vpop.permute.xlu0 %3580
    %v3583 = vadd.f32 %v3573, %v3581
    %v3584 = vtanh.pop %v3583
    %3586 = vrot.lane.b32.xlu0 %v3584, 64
    %v3587 = vpop.permute.xlu0 %3586
    %v3589 = vmul.f32 %v3568, %v3587
    %v3591 = vrot.slane %v3562, 2
    %v3593 = vmax.f32 %v3375, %v3591
    %v3595 = vrot.slane %v3589, 6
    %v3597 = vmax.f32 %v3376, %v3595
    %3598 = vrot.lane.b32.xlu0 %v3591, 32
    %v3599 = vpop.permute.xlu0 %3598
    %v3600 = vsel %vm194, %v3599, 0
    %3602 = vmatprep.subr.mxu0 0.0
    %3603 = vmatpush1.msra.mxu0 %v2311
    %3604 = vmatprep.subr.mxu0 0.0
    %3605 = vmatpush1.msra.mxu0 %v2312
    %3606 = vmatprep.subr.mxu0 0.0
    %3607 = vmatpush1.msra.mxu0 %v2313
    %3608 = vmatprep.subr.mxu0 0.0
    %3609 = vmatpush1.msra.mxu0 %v2314
    %3610 = vmatprep.subr.mxu0 0.0
    %3611 = vmatpush1.msra.mxu0 0.0
    %3612 = vmatprep.subr.mxu0 0.0
    %3613 = vmatpush1.msra.mxu0 0.0
    %3614 = vmatprep.subr.mxu0 0.0
    %3615 = vmatpush1.msra.mxu0 0.0
    %3616 = vmatprep.subr.mxu0 0.0
    %3617 = vmatpush1.msra.mxu0 0.0
    %3618 = vmatprep.subr.mxu0 0.0
    %3619 = vmatpush1.msra.mxu0 0.0
    %3620 = vmatprep.subr.mxu0 0.0
    %3621 = vmatpush1.msra.mxu0 0.0
    %3622 = vmatprep.subr.mxu0 0.0
    %3623 = vmatpush1.msra.mxu0 0.0
    %3624 = vmatprep.subr.mxu0 0.0
    %3625 = vmatpush1.msra.mxu0 0.0
    %3626 = vmatprep.subr.mxu0 0.0
    %3627 = vmatpush1.msra.mxu0 0.0
    %3628 = vmatprep.subr.mxu0 0.0
    %3629 = vmatpush1.msra.mxu0 0.0
    %3630 = vmatprep.subr.mxu0 0.0
    %3631 = vmatpush1.msra.mxu0 0.0
    %3632 = vmatprep.subr.mxu0 0.0
    %3633 = vmatpush1.msra.mxu0 0.0
    %3634 = vmatprep.subr.mxu0 0.0
    %3635 = vmatpush1.msra.mxu0 0.0
    %3636 = vmatprep.subr.mxu0 0.0
    %3637 = vmatpush1.msra.mxu0 0.0
    %3638 = vmatprep.subr.mxu0 0.0
    %3639 = vmatpush1.msra.mxu0 0.0
    %3640 = vmatprep.subr.mxu0 0.0
    %3641 = vmatpush1.msra.mxu0 0.0
    %3642 = vmatprep.subr.mxu0 0.0
    %3643 = vmatpush1.msra.mxu0 0.0
    %3644 = vmatprep.subr.mxu0 0.0
    %3645 = vmatpush1.msra.mxu0 0.0
    %3646 = vmatprep.subr.mxu0 0.0
    %3647 = vmatpush1.msra.mxu0 0.0
    %3648 = vmatprep.subr.mxu0 0.0
    %3649 = vmatpush1.msra.mxu0 0.0
    %3650 = vmatprep.subr.mxu0 0.0
    %3651 = vmatpush1.msra.mxu0 0.0
    %3652 = vmatprep.subr.mxu0 0.0
    %3653 = vmatpush1.msra.mxu0 0.0
    %3654 = vmatprep.subr.mxu0 0.0
    %3655 = vmatpush1.msra.mxu0 0.0
    %3656 = vmatprep.subr.mxu0 0.0
    %3657 = vmatpush1.msra.mxu0 0.0
    %3658 = vmatprep.subr.mxu0 0.0
    %3659 = vmatpush1.msra.mxu0 0.0
    %3660 = vmatprep.subr.mxu0 0.0
    %3661 = vmatpush1.msra.mxu0 0.0
    %3662 = vmatprep.subr.mxu0 0.0
    %3663 = vmatpush1.msra.mxu0 0.0
    %3664 = vmatprep.subr.mxu0 0.0
    %3665 = vmatpush1.msra.mxu0 0.0
    %3666 = vmatprep.mubr.f32.mxu0 0.0
    %3667 = vmatmul.mubr.f32.gmra.mrb[0].mxu0 %v3600
    %v3668 = vpop.f32.mrb[0].mxu0
    %v3669 = vadd.f32 0.0, %v3668
    %v3670 = vpop.f32.mrb[0].mxu0
    %3671 = vdwg.mxu0
    %v3673 = vrot.slane %v3669, 4
    %v3675 = vadd.f32 %v2218, %v3673
    %v3676 = vrot.slane %v3589, 4
    %3677 = vrot.lane.b32.xlu0 %v3676, 32
    %v3678 = vpop.permute.xlu0 %3677
    %v3679 = vsel %vm194, %v3678, 0
    %3681 = vmatprep.subr.mxu0 0.0
    %3682 = vmatpush1.msra.mxu0 %v2315
    %3683 = vmatprep.subr.mxu0 0.0
    %3684 = vmatpush1.msra.mxu0 %v2316
    %3685 = vmatprep.subr.mxu0 0.0
    %3686 = vmatpush1.msra.mxu0 %v2317
    %3687 = vmatprep.subr.mxu0 0.0
    %3688 = vmatpush1.msra.mxu0 %v2318
    %3689 = vmatprep.subr.mxu0 0.0
    %3690 = vmatpush1.msra.mxu0 0.0
    %3691 = vmatprep.subr.mxu0 0.0
    %3692 = vmatpush1.msra.mxu0 0.0
    %3693 = vmatprep.subr.mxu0 0.0
    %3694 = vmatpush1.msra.mxu0 0.0
    %3695 = vmatprep.subr.mxu0 0.0
    %3696 = vmatpush1.msra.mxu0 0.0
    %3697 = vmatprep.subr.mxu0 0.0
    %3698 = vmatpush1.msra.mxu0 0.0
    %3699 = vmatprep.subr.mxu0 0.0
    %3700 = vmatpush1.msra.mxu0 0.0
    %3701 = vmatprep.subr.mxu0 0.0
    %3702 = vmatpush1.msra.mxu0 0.0
    %3703 = vmatprep.subr.mxu0 0.0
    %3704 = vmatpush1.msra.mxu0 0.0
    %3705 = vmatprep.subr.mxu0 0.0
    %3706 = vmatpush1.msra.mxu0 0.0
    %3707 = vmatprep.subr.mxu0 0.0
    %3708 = vmatpush1.msra.mxu0 0.0
    %3709 = vmatprep.subr.mxu0 0.0
    %3710 = vmatpush1.msra.mxu0 0.0
    %3711 = vmatprep.subr.mxu0 0.0
    %3712 = vmatpush1.msra.mxu0 0.0
    %3713 = vmatprep.subr.mxu0 0.0
    %3714 = vmatpush1.msra.mxu0 0.0
    %3715 = vmatprep.subr.mxu0 0.0
    %3716 = vmatpush1.msra.mxu0 0.0
    %3717 = vmatprep.subr.mxu0 0.0
    %3718 = vmatpush1.msra.mxu0 0.0
    %3719 = vmatprep.subr.mxu0 0.0
    %3720 = vmatpush1.msra.mxu0 0.0
    %3721 = vmatprep.subr.mxu0 0.0
    %3722 = vmatpush1.msra.mxu0 0.0
    %3723 = vmatprep.subr.mxu0 0.0
    %3724 = vmatpush1.msra.mxu0 0.0
    %3725 = vmatprep.subr.mxu0 0.0
    %3726 = vmatpush1.msra.mxu0 0.0
    %3727 = vmatprep.subr.mxu0 0.0
    %3728 = vmatpush1.msra.mxu0 0.0
    %3729 = vmatprep.subr.mxu0 0.0
    %3730 = vmatpush1.msra.mxu0 0.0
    %3731 = vmatprep.subr.mxu0 0.0
    %3732 = vmatpush1.msra.mxu0 0.0
    %3733 = vmatprep.subr.mxu0 0.0
    %3734 = vmatpush1.msra.mxu0 0.0
    %3735 = vmatprep.subr.mxu0 0.0
    %3736 = vmatpush1.msra.mxu0 0.0
    %3737 = vmatprep.subr.mxu0 0.0
    %3738 = vmatpush1.msra.mxu0 0.0
    %3739 = vmatprep.subr.mxu0 0.0
    %3740 = vmatpush1.msra.mxu0 0.0
    %3741 = vmatprep.subr.mxu0 0.0
    %3742 = vmatpush1.msra.mxu0 0.0
    %3743 = vmatprep.subr.mxu0 0.0
    %3744 = vmatpush1.msra.mxu0 0.0
    %3745 = vmatprep.mubr.f32.mxu0 0.0
    %3746 = vmatmul.mubr.f32.gmra.mrb[0].mxu0 %v3679
    %v3747 = vpop.f32.mrb[0].mxu0
    %v3748 = vadd.f32 0.0, %v3747
    %v3749 = vpop.f32.mrb[0].mxu0
    %3750 = vdwg.mxu0
    %v3752 = vrot.slane %v3748, 6
    %v3754 = vadd.f32 %v2303, %v3752
    %v3755 = vxor.u32 %v3675, 2147483648
    %v3756 = vmul.f32 %v3755, 1.442695
    %v3757 = vpow.pop %v3756
    %v3758 = vadd.f32 %v3757, 1.0
    %v3759 = vrcp.pop %v3758
    %v3760 = vmul.f32 1.0, %v3759
    %v3761 = vtanh.pop %v3675
    %v3763 = vrot.slane %v3556, 6
    %v3765 = vmul.f32 %v3760, %v3763
    %3767 = vrot.lane.b32.xlu0 %v3761, 64
    %v3768 = vpop.permute.xlu0 %3767
    %v3770 = vmul.f32 %v3760, %v3768
    %3772 = vrot.lane.b32.xlu0 %v3770, 32
    %v3773 = vpop.permute.xlu0 %3772
    %v3775 = vadd.f32 %v3765, %v3773
    %v3776 = vtanh.pop %v3775
    %3778 = vrot.lane.b32.xlu0 %v3776, 64
    %v3779 = vpop.permute.xlu0 %3778
    %v3781 = vmul.f32 %v3760, %v3779
    %v3782 = vxor.u32 %v3754, 2147483648
    %v3783 = vmul.f32 %v3782, 1.442695
    %v3784 = vpow.pop %v3783
    %v3785 = vadd.f32 %v3784, 1.0
    %v3786 = vrcp.pop %v3785
    %v3787 = vmul.f32 1.0, %v3786
    %v3788 = vtanh.pop %v3754
    %v3790 = vrot.slane %v3583, 2
    %v3792 = vmul.f32 %v3787, %v3790
    %3794 = vrot.lane.b32.xlu0 %v3788, 64
    %v3795 = vpop.permute.xlu0 %3794
    %v3797 = vmul.f32 %v3787, %v3795
    %3799 = vrot.lane.b32.xlu0 %v3797, 32
    %v3800 = vpop.permute.xlu0 %3799
    %v3802 = vadd.f32 %v3792, %v3800
    %v3803 = vtanh.pop %v3802
    %3805 = vrot.lane.b32.xlu0 %v3803, 64
    %v3806 = vpop.permute.xlu0 %3805
    %v3808 = vmul.f32 %v3787, %v3806
    %v3810 = vrot.slane %v3781, 4
    %v3812 = vmax.f32 %v3593, %v3810
    %v3814 = vrot.slane %v3808, 4
    %v3816 = vmax.f32 %v3597, %v3814
    %3817 = vrot.lane.b32.xlu0 %v3810, 32
    %v3818 = vpop.permute.xlu0 %3817
    %v3819 = vsel %vm194, %v3818, 0
    %3821 = vmatprep.subr.mxu0 0.0
    %3822 = vmatpush1.msra.mxu0 %v2311
    %3823 = vmatprep.subr.mxu0 0.0
    %3824 = vmatpush1.msra.mxu0 %v2312
    %3825 = vmatprep.subr.mxu0 0.0
    %3826 = vmatpush1.msra.mxu0 %v2313
    %3827 = vmatprep.subr.mxu0 0.0
    %3828 = vmatpush1.msra.mxu0 %v2314
    %3829 = vmatprep.subr.mxu0 0.0
    %3830 = vmatpush1.msra.mxu0 0.0
    %3831 = vmatprep.subr.mxu0 0.0
    %3832 = vmatpush1.msra.mxu0 0.0
    %3833 = vmatprep.subr.mxu0 0.0
    %3834 = vmatpush1.msra.mxu0 0.0
    %3835 = vmatprep.subr.mxu0 0.0
    %3836 = vmatpush1.msra.mxu0 0.0
    %3837 = vmatprep.subr.mxu0 0.0
    %3838 = vmatpush1.msra.mxu0 0.0
    %3839 = vmatprep.subr.mxu0 0.0
    %3840 = vmatpush1.msra.mxu0 0.0
    %3841 = vmatprep.subr.mxu0 0.0
    %3842 = vmatpush1.msra.mxu0 0.0
    %3843 = vmatprep.subr.mxu0 0.0
    %3844 = vmatpush1.msra.mxu0 0.0
    %3845 = vmatprep.subr.mxu0 0.0
    %3846 = vmatpush1.msra.mxu0 0.0
    %3847 = vmatprep.subr.mxu0 0.0
    %3848 = vmatpush1.msra.mxu0 0.0
    %3849 = vmatprep.subr.mxu0 0.0
    %3850 = vmatpush1.msra.mxu0 0.0
    %3851 = vmatprep.subr.mxu0 0.0
    %3852 = vmatpush1.msra.mxu0 0.0
    %3853 = vmatprep.subr.mxu0 0.0
    %3854 = vmatpush1.msra.mxu0 0.0
    %3855 = vmatprep.subr.mxu0 0.0
    %3856 = vmatpush1.msra.mxu0 0.0
    %3857 = vmatprep.subr.mxu0 0.0
    %3858 = vmatpush1.msra.mxu0 0.0
    %3859 = vmatprep.subr.mxu0 0.0
    %3860 = vmatpush1.msra.mxu0 0.0
    %3861 = vmatprep.subr.mxu0 0.0
    %3862 = vmatpush1.msra.mxu0 0.0
    %3863 = vmatprep.subr.mxu0 0.0
    %3864 = vmatpush1.msra.mxu0 0.0
    %3865 = vmatprep.subr.mxu0 0.0
    %3866 = vmatpush1.msra.mxu0 0.0
    %3867 = vmatprep.subr.mxu0 0.0
    %3868 = vmatpush1.msra.mxu0 0.0
    %3869 = vmatprep.subr.mxu0 0.0
    %3870 = vmatpush1.msra.mxu0 0.0
    %3871 = vmatprep.subr.mxu0 0.0
    %3872 = vmatpush1.msra.mxu0 0.0
    %3873 = vmatprep.subr.mxu0 0.0
    %3874 = vmatpush1.msra.mxu0 0.0
    %3875 = vmatprep.subr.mxu0 0.0
    %3876 = vmatpush1.msra.mxu0 0.0
    %3877 = vmatprep.subr.mxu0 0.0
    %3878 = vmatpush1.msra.mxu0 0.0
    %3879 = vmatprep.subr.mxu0 0.0
    %3880 = vmatpush1.msra.mxu0 0.0
    %3881 = vmatprep.subr.mxu0 0.0
    %3882 = vmatpush1.msra.mxu0 0.0
    %3883 = vmatprep.subr.mxu0 0.0
    %3884 = vmatpush1.msra.mxu0 0.0
    %3885 = vmatprep.mubr.f32.mxu0 0.0
    %3886 = vmatmul.mubr.f32.gmra.mrb[0].mxu0 %v3819
    %v3887 = vpop.f32.mrb[0].mxu0
    %v3888 = vadd.f32 0.0, %v3887
    %v3889 = vpop.f32.mrb[0].mxu0
    %3890 = vdwg.mxu0
    %v3892 = vrot.slane %v3888, 2
    %v3894 = vadd.f32 %v2218, %v3892
    %v3895 = vrot.slane %v3808, 2
    %3896 = vrot.lane.b32.xlu0 %v3895, 32
    %v3897 = vpop.permute.xlu0 %3896
    %v3898 = vsel %vm194, %v3897, 0
    %3900 = vmatprep.subr.mxu0 0.0
    %3901 = vmatpush1.msra.mxu0 %v2315
    %3902 = vmatprep.subr.mxu0 0.0
    %3903 = vmatpush1.msra.mxu0 %v2316
    %3904 = vmatprep.subr.mxu0 0.0
    %3905 = vmatpush1.msra.mxu0 %v2317
    %3906 = vmatprep.subr.mxu0 0.0
    %3907 = vmatpush1.msra.mxu0 %v2318
    %3908 = vmatprep.subr.mxu0 0.0
    %3909 = vmatpush1.msra.mxu0 0.0
    %3910 = vmatprep.subr.mxu0 0.0
    %3911 = vmatpush1.msra.mxu0 0.0
    %3912 = vmatprep.subr.mxu0 0.0
    %3913 = vmatpush1.msra.mxu0 0.0
    %3914 = vmatprep.subr.mxu0 0.0
    %3915 = vmatpush1.msra.mxu0 0.0
    %3916 = vmatprep.subr.mxu0 0.0
    %3917 = vmatpush1.msra.mxu0 0.0
    %3918 = vmatprep.subr.mxu0 0.0
    %3919 = vmatpush1.msra.mxu0 0.0
    %3920 = vmatprep.subr.mxu0 0.0
    %3921 = vmatpush1.msra.mxu0 0.0
    %3922 = vmatprep.subr.mxu0 0.0
    %3923 = vmatpush1.msra.mxu0 0.0
    %3924 = vmatprep.subr.mxu0 0.0
    %3925 = vmatpush1.msra.mxu0 0.0
    %3926 = vmatprep.subr.mxu0 0.0
    %3927 = vmatpush1.msra.mxu0 0.0
    %3928 = vmatprep.subr.mxu0 0.0
    %3929 = vmatpush1.msra.mxu0 0.0
    %3930 = vmatprep.subr.mxu0 0.0
    %3931 = vmatpush1.msra.mxu0 0.0
    %3932 = vmatprep.subr.mxu0 0.0
    %3933 = vmatpush1.msra.mxu0 0.0
    %3934 = vmatprep.subr.mxu0 0.0
    %3935 = vmatpush1.msra.mxu0 0.0
    %3936 = vmatprep.subr.mxu0 0.0
    %3937 = vmatpush1.msra.mxu0 0.0
    %3938 = vmatprep.subr.mxu0 0.0
    %3939 = vmatpush1.msra.mxu0 0.0
    %3940 = vmatprep.subr.mxu0 0.0
    %3941 = vmatpush1.msra.mxu0 0.0
    %3942 = vmatprep.subr.mxu0 0.0
    %3943 = vmatpush1.msra.mxu0 0.0
    %3944 = vmatprep.subr.mxu0 0.0
    %3945 = vmatpush1.msra.mxu0 0.0
    %3946 = vmatprep.subr.mxu0 0.0
    %3947 = vmatpush1.msra.mxu0 0.0
    %3948 = vmatprep.subr.mxu0 0.0
    %3949 = vmatpush1.msra.mxu0 0.0
    %3950 = vmatprep.subr.mxu0 0.0
    %3951 = vmatpush1.msra.mxu0 0.0
    %3952 = vmatprep.subr.mxu0 0.0
    %3953 = vmatpush1.msra.mxu0 0.0
    %3954 = vmatprep.subr.mxu0 0.0
    %3955 = vmatpush1.msra.mxu0 0.0
    %3956 = vmatprep.subr.mxu0 0.0
    %3957 = vmatpush1.msra.mxu0 0.0
    %3958 = vmatprep.subr.mxu0 0.0
    %3959 = vmatpush1.msra.mxu0 0.0
    %3960 = vmatprep.subr.mxu0 0.0
    %3961 = vmatpush1.msra.mxu0 0.0
    %3962 = vmatprep.subr.mxu0 0.0
    %3963 = vmatpush1.msra.mxu0 0.0
    %3964 = vmatprep.mubr.f32.mxu0 0.0
    %3965 = vmatmul.mubr.f32.gmra.mrb[0].mxu0 %v3898
    %v3966 = vpop.f32.mrb[0].mxu0
    %v3967 = vadd.f32 0.0, %v3966
    %v3968 = vpop.f32.mrb[0].mxu0
    %3969 = vdwg.mxu0
    %v3970 = vadd.f32 %v2303, %v3967
    %v3971 = vxor.u32 %v3894, 2147483648
    %v3972 = vmul.f32 %v3971, 1.442695
    %v3973 = vpow.pop %v3972
    %v3974 = vadd.f32 %v3973, 1.0
    %v3975 = vrcp.pop %v3974
    %v3976 = vmul.f32 1.0, %v3975
    %v3977 = vtanh.pop %v3894
    %v3979 = vrot.slane %v3775, 6
    %v3981 = vmul.f32 %v3976, %v3979
    %3983 = vrot.lane.b32.xlu0 %v3977, 64
    %v3984 = vpop.permute.xlu0 %3983
    %v3986 = vmul.f32 %v3976, %v3984
    %3988 = vrot.lane.b32.xlu0 %v3986, 32
    %v3989 = vpop.permute.xlu0 %3988
    %v3991 = vadd.f32 %v3981, %v3989
    %v3992 = vtanh.pop %v3991
    %3994 = vrot.lane.b32.xlu0 %v3992, 64
    %v3995 = vpop.permute.xlu0 %3994
    %v3997 = vmul.f32 %v3976, %v3995
    %v3998 = vxor.u32 %v3970, 2147483648
    %v3999 = vmul.f32 %v3998, 1.442695
    %v4000 = vpow.pop %v3999
    %v4001 = vadd.f32 %v4000, 1.0
    %v4002 = vrcp.pop %v4001
    %v4003 = vmul.f32 1.0, %v4002
    %v4004 = vtanh.pop %v3970
    %v4006 = vrot.slane %v3802, 2
    %v4008 = vmul.f32 %v4003, %v4006
    %4010 = vrot.lane.b32.xlu0 %v4004, 64
    %v4011 = vpop.permute.xlu0 %4010
    %v4013 = vmul.f32 %v4003, %v4011
    %4015 = vrot.lane.b32.xlu0 %v4013, 32
    %v4016 = vpop.permute.xlu0 %4015
    %v4018 = vadd.f32 %v4008, %v4016
    %v4019 = vtanh.pop %v4018
    %4021 = vrot.lane.b32.xlu0 %v4019, 64
    %v4022 = vpop.permute.xlu0 %4021
    %v4024 = vmul.f32 %v4003, %v4022
    %v4026 = vrot.slane %v3997, 6
    %v4028 = vmax.f32 %v3812, %v4026
    %v4030 = vrot.slane %v4024, 2
    %v4032 = vmax.f32 %v3816, %v4030
    %4034 = vrot.lane.b32.xlu0 %v4028, 32
    %v4035 = vpop.permute.xlu0 %4034
    %v4038 = vrot.slane %v4032, 6
    %4039 = vrot.lane.b32.xlu0 %v4038, 64
    %v4040 = vpop.permute.xlu0 %4039
    %v4042 = vsel %vm194, %v4035, %v4040
    %v4043 = vld [vmem:[%s14] sm:$0xff]
    %v4044 = vld [vmem:[%s14 + $0x8] sm:$0xff]
    %v4045 = vld [vmem:[%s14 + $0x10] sm:$0xff]
    %v4046 = vld [vmem:[%s14 + $0x18] sm:$0xff]
    %v4047 = vld [vmem:[%s14 + $0x20] sm:$0xff]
    %v4048 = vld [vmem:[%s14 + $0x28] sm:$0xff]
    %v4049 = vld [vmem:[%s14 + $0x30] sm:$0xff]
    %v4050 = vld [vmem:[%s14 + $0x38] sm:$0xff]
    %v4051 = vld [vmem:[%s15] sm:$0x1]
    %v4053 = vlaneseq
    %v4054 = vshrl.u32 %v4053, 7
    %v4055 = vsub.s32 0, %v4054
    %v4056 = vrot.slane %v4051, %v4055
    %v4059 = vsel %vm2139, %v4042, 0
    %4061 = vmatprep.subr.mxu0 0.0
    %4062 = vmatpush1.msra.mxu0 %v4043
    %4063 = vmatprep.subr.mxu0 0.0
    %4064 = vmatpush1.msra.mxu0 %v4044
    %4065 = vmatprep.subr.mxu0 0.0
    %4066 = vmatpush1.msra.mxu0 %v4045
    %4067 = vmatprep.subr.mxu0 0.0
    %4068 = vmatpush1.msra.mxu0 %v4046
    %4069 = vmatprep.subr.mxu0 0.0
    %4070 = vmatpush1.msra.mxu0 %v4047
    %4071 = vmatprep.subr.mxu0 0.0
    %4072 = vmatpush1.msra.mxu0 %v4048
    %4073 = vmatprep.subr.mxu0 0.0
    %4074 = vmatpush1.msra.mxu0 %v4049
    %4075 = vmatprep.subr.mxu0 0.0
    %4076 = vmatpush1.msra.mxu0 %v4050
    %4077 = vmatprep.subr.mxu0 0.0
    %4078 = vmatpush1.msra.mxu0 0.0
    %4079 = vmatprep.subr.mxu0 0.0
    %4080 = vmatpush1.msra.mxu0 0.0
    %4081 = vmatprep.subr.mxu0 0.0
    %4082 = vmatpush1.msra.mxu0 0.0
    %4083 = vmatprep.subr.mxu0 0.0
    %4084 = vmatpush1.msra.mxu0 0.0
    %4085 = vmatprep.subr.mxu0 0.0
    %4086 = vmatpush1.msra.mxu0 0.0
    %4087 = vmatprep.subr.mxu0 0.0
    %4088 = vmatpush1.msra.mxu0 0.0
    %4089 = vmatprep.subr.mxu0 0.0
    %4090 = vmatpush1.msra.mxu0 0.0
    %4091 = vmatprep.subr.mxu0 0.0
    %4092 = vmatpush1.msra.mxu0 0.0
    %4093 = vmatprep.subr.mxu0 0.0
    %4094 = vmatpush1.msra.mxu0 0.0
    %4095 = vmatprep.subr.mxu0 0.0
    %4096 = vmatpush1.msra.mxu0 0.0
    %4097 = vmatprep.subr.mxu0 0.0
    %4098 = vmatpush1.msra.mxu0 0.0
    %4099 = vmatprep.subr.mxu0 0.0
    %4100 = vmatpush1.msra.mxu0 0.0
    %4101 = vmatprep.subr.mxu0 0.0
    %4102 = vmatpush1.msra.mxu0 0.0
    %4103 = vmatprep.subr.mxu0 0.0
    %4104 = vmatpush1.msra.mxu0 0.0
    %4105 = vmatprep.subr.mxu0 0.0
    %4106 = vmatpush1.msra.mxu0 0.0
    %4107 = vmatprep.subr.mxu0 0.0
    %4108 = vmatpush1.msra.mxu0 0.0
    %4109 = vmatprep.subr.mxu0 0.0
    %4110 = vmatpush1.msra.mxu0 0.0
    %4111 = vmatprep.subr.mxu0 0.0
    %4112 = vmatpush1.msra.mxu0 0.0
    %4113 = vmatprep.subr.mxu0 0.0
    %4114 = vmatpush1.msra.mxu0 0.0
    %4115 = vmatprep.subr.mxu0 0.0
    %4116 = vmatpush1.msra.mxu0 0.0
    %4117 = vmatprep.subr.mxu0 0.0
    %4118 = vmatpush1.msra.mxu0 0.0
    %4119 = vmatprep.subr.mxu0 0.0
    %4120 = vmatpush1.msra.mxu0 0.0
    %4121 = vmatprep.subr.mxu0 0.0
    %4122 = vmatpush1.msra.mxu0 0.0
    %4123 = vmatprep.subr.mxu0 0.0
    %4124 = vmatpush1.msra.mxu0 0.0
    %4125 = vmatprep.mubr.f32.mxu0 0.0
    %4126 = vmatmul.mubr.f32.gmra.mrb[0].mxu0 %v4059
    %v4127 = vpop.f32.mrb[0].mxu0
    %v4128 = vadd.f32 %v4056, %v4127
    %v4129 = vpop.f32.mrb[0].mxu0
    %4130 = vdwg.mxu0
    %v4131 = vmax.f32 %v4128, 0.0
    %v4132 = vld [vmem:[%s16] sm:$0xff]
    %v4133 = vld [vmem:[%s16 + $0x8] sm:$0xff]
    %v4134 = vld [vmem:[%s16 + $0x10] sm:$0xff]
    %v4135 = vld [vmem:[%s16 + $0x18] sm:$0xff]
    %v4136 = vld [vmem:[%s17] sm:$0x1]
    %v4138 = vlaneseq
    %v4139 = vshrl.u32 %v4138, 7
    %v4140 = vsub.s32 0, %v4139
    %v4141 = vrot.slane %v4136, %v4140
    %v4144 = vsel %vm194, %v4131, 0
    %4146 = vmatprep.subr.mxu0 0.0
    %4147 = vmatpush1.msra.mxu0 %v4132
    %4148 = vmatprep.subr.mxu0 0.0
    %4149 = vmatpush1.msra.mxu0 %v4133
    %4150 = vmatprep.subr.mxu0 0.0
    %4151 = vmatpush1.msra.mxu0 %v4134
    %4152 = vmatprep.subr.mxu0 0.0
    %4153 = vmatpush1.msra.mxu0 %v4135
    %4154 = vmatprep.subr.mxu0 0.0
    %4155 = vmatpush1.msra.mxu0 0.0
    %4156 = vmatprep.subr.mxu0 0.0
    %4157 = vmatpush1.msra.mxu0 0.0
    %4158 = vmatprep.subr.mxu0 0.0
    %4159 = vmatpush1.msra.mxu0 0.0
    %4160 = vmatprep.subr.mxu0 0.0
    %4161 = vmatpush1.msra.mxu0 0.0
    %4162 = vmatprep.subr.mxu0 0.0
    %4163 = vmatpush1.msra.mxu0 0.0
    %4164 = vmatprep.subr.mxu0 0.0
    %4165 = vmatpush1.msra.mxu0 0.0
    %4166 = vmatprep.subr.mxu0 0.0
    %4167 = vmatpush1.msra.mxu0 0.0
    %4168 = vmatprep.subr.mxu0 0.0
    %4169 = vmatpush1.msra.mxu0 0.0
    %4170 = vmatprep.subr.mxu0 0.0
    %4171 = vmatpush1.msra.mxu0 0.0
    %4172 = vmatprep.subr.mxu0 0.0
    %4173 = vmatpush1.msra.mxu0 0.0
    %4174 = vmatprep.subr.mxu0 0.0
    %4175 = vmatpush1.msra.mxu0 0.0
    %4176 = vmatprep.subr.mxu0 0.0
    %4177 = vmatpush1.msra.mxu0 0.0
    %4178 = vmatprep.subr.mxu0 0.0
    %4179 = vmatpush1.msra.mxu0 0.0
    %4180 = vmatprep.subr.mxu0 0.0
    %4181 = vmatpush1.msra.mxu0 0.0
    %4182 = vmatprep.subr.mxu0 0.0
    %4183 = vmatpush1.msra.mxu0 0.0
    %4184 = vmatprep.subr.mxu0 0.0
    %4185 = vmatpush1.msra.mxu0 0.0
    %4186 = vmatprep.subr.mxu0 0.0
    %4187 = vmatpush1.msra.mxu0 0.0
    %4188 = vmatprep.subr.mxu0 0.0
    %4189 = vmatpush1.msra.mxu0 0.0
    %4190 = vmatprep.subr.mxu0 0.0
    %4191 = vmatpush1.msra.mxu0 0.0
    %4192 = vmatprep.subr.mxu0 0.0
    %4193 = vmatpush1.msra.mxu0 0.0
    %4194 = vmatprep.subr.mxu0 0.0
    %4195 = vmatpush1.msra.mxu0 0.0
    %4196 = vmatprep.subr.mxu0 0.0
    %4197 = vmatpush1.msra.mxu0 0.0
    %4198 = vmatprep.subr.mxu0 0.0
    %4199 = vmatpush1.msra.mxu0 0.0
    %4200 = vmatprep.subr.mxu0 0.0
    %4201 = vmatpush1.msra.mxu0 0.0
    %4202 = vmatprep.subr.mxu0 0.0
    %4203 = vmatpush1.msra.mxu0 0.0
    %4204 = vmatprep.subr.mxu0 0.0
    %4205 = vmatpush1.msra.mxu0 0.0
    %4206 = vmatprep.subr.mxu0 0.0
    %4207 = vmatpush1.msra.mxu0 0.0
    %4208 = vmatprep.subr.mxu0 0.0
    %4209 = vmatpush1.msra.mxu0 0.0
    %4210 = vmatprep.mubr.f32.mxu0 0.0
    %4211 = vmatmul.mubr.f32.gmra.mrb[0].mxu0 %v4144
    %v4212 = vpop.f32.mrb[0].mxu0
    %v4213 = vadd.f32 %v4141, %v4212
    %v4214 = vpop.f32.mrb[0].mxu0
    %4215 = vdwg.mxu0
    %v4216 = vmax.f32 %v4213, 0.0
    %v4217 = vld [vmem:[%s18] sm:$0xff]
    %v4218 = vld [vmem:[%s18 + $0x8] sm:$0xff]
    %v4219 = vld [vmem:[%s18 + $0x10] sm:$0xff]
    %v4220 = vld [vmem:[%s18 + $0x18] sm:$0xff]
    %v4221 = vld [vmem:[%s19] sm:$0x1]
    %v4223 = vlaneseq
    %v4224 = vshrl.u32 %v4223, 7
    %v4225 = vsub.s32 0, %v4224
    %v4226 = vrot.slane %v4221, %v4225
    %v4229 = vsel %vm194, %v4216, 0
    %4231 = vmatprep.subr.mxu0 0.0
    %4232 = vmatpush1.msra.mxu0 %v4217
    %4233 = vmatprep.subr.mxu0 0.0
    %4234 = vmatpush1.msra.mxu0 %v4218
    %4235 = vmatprep.subr.mxu0 0.0
    %4236 = vmatpush1.msra.mxu0 %v4219
    %4237 = vmatprep.subr.mxu0 0.0
    %4238 = vmatpush1.msra.mxu0 %v4220
    %4239 = vmatprep.subr.mxu0 0.0
    %4240 = vmatpush1.msra.mxu0 0.0
    %4241 = vmatprep.subr.mxu0 0.0
    %4242 = vmatpush1.msra.mxu0 0.0
    %4243 = vmatprep.subr.mxu0 0.0
    %4244 = vmatpush1.msra.mxu0 0.0
    %4245 = vmatprep.subr.mxu0 0.0
    %4246 = vmatpush1.msra.mxu0 0.0
    %4247 = vmatprep.subr.mxu0 0.0
    %4248 = vmatpush1.msra.mxu0 0.0
    %4249 = vmatprep.subr.mxu0 0.0
    %4250 = vmatpush1.msra.mxu0 0.0
    %4251 = vmatprep.subr.mxu0 0.0
    %4252 = vmatpush1.msra.mxu0 0.0
    %4253 = vmatprep.subr.mxu0 0.0
    %4254 = vmatpush1.msra.mxu0 0.0
    %4255 = vmatprep.subr.mxu0 0.0
    %4256 = vmatpush1.msra.mxu0 0.0
    %4257 = vmatprep.subr.mxu0 0.0
    %4258 = vmatpush1.msra.mxu0 0.0
    %4259 = vmatprep.subr.mxu0 0.0
    %4260 = vmatpush1.msra.mxu0 0.0
    %4261 = vmatprep.subr.mxu0 0.0
    %4262 = vmatpush1.msra.mxu0 0.0
    %4263 = vmatprep.subr.mxu0 0.0
    %4264 = vmatpush1.msra.mxu0 0.0
    %4265 = vmatprep.subr.mxu0 0.0
    %4266 = vmatpush1.msra.mxu0 0.0
    %4267 = vmatprep.subr.mxu0 0.0
    %4268 = vmatpush1.msra.mxu0 0.0
    %4269 = vmatprep.subr.mxu0 0.0
    %4270 = vmatpush1.msra.mxu0 0.0
    %4271 = vmatprep.subr.mxu0 0.0
    %4272 = vmatpush1.msra.mxu0 0.0
    %4273 = vmatprep.subr.mxu0 0.0
    %4274 = vmatpush1.msra.mxu0 0.0
    %4275 = vmatprep.subr.mxu0 0.0
    %4276 = vmatpush1.msra.mxu0 0.0
    %4277 = vmatprep.subr.mxu0 0.0
    %4278 = vmatpush1.msra.mxu0 0.0
    %4279 = vmatprep.subr.mxu0 0.0
    %4280 = vmatpush1.msra.mxu0 0.0
    %4281 = vmatprep.subr.mxu0 0.0
    %4282 = vmatpush1.msra.mxu0 0.0
    %4283 = vmatprep.subr.mxu0 0.0
    %4284 = vmatpush1.msra.mxu0 0.0
    %4285 = vmatprep.subr.mxu0 0.0
    %4286 = vmatpush1.msra.mxu0 0.0
    %4287 = vmatprep.subr.mxu0 0.0
    %4288 = vmatpush1.msra.mxu0 0.0
    %4289 = vmatprep.subr.mxu0 0.0
    %4290 = vmatpush1.msra.mxu0 0.0
    %4291 = vmatprep.subr.mxu0 0.0
    %4292 = vmatpush1.msra.mxu0 0.0
    %4293 = vmatprep.subr.mxu0 0.0
    %4294 = vmatpush1.msra.mxu0 0.0
    %4295 = vmatprep.mubr.f32.mxu0 0.0
    %4296 = vmatmul.mubr.f32.gmra.mrb[0].mxu0 %v4229
    %v4297 = vpop.f32.mrb[0].mxu0
    %v4298 = vadd.f32 %v4226, %v4297
    %v4299 = vpop.f32.mrb[0].mxu0
    %4300 = vdwg.mxu0
    %vm4301 = vcmask 9216
    %4302 = vst.msk [vmem:[#allocation6] sm:$0x3] %vm4301, %v4298
    // Predicated region
    $region86: #{lstm_score_forward.1} parent=1 // pred_check
      _
    $region87: #{lstm_score_forward.1} parent=1 // pred_check_branch
      %4304 = sbr.rel (0) target = $region89
    $region88: #{lstm_score_forward.1} parent=1 // pred_region
      %s4306 = ssub.s32 32, 32
      %4307 = vsyncadd [#allocation5], %s4306
      %s4309 = sshll.u32 [#allocation6], 4
      %s4310 = int_to_ptr.vmem [resolvable:$true] %s4309
      %4312 = dma.vmem_to_hbm [thread:$0]  %s4310, 32, %s20, [#allocation5]
    $region89: #{lstm_score_forward.1} parent=1 // pred_fallthru
      _
    // Predicated region
    $region90: #{lstm_score_forward.1} parent=1 // pred_check
      _
    $region91: #{lstm_score_forward.1} parent=1 // pred_check_branch
      %4314 = sbr.rel (0) target = $region93
    $region92: #{lstm_score_forward.1} parent=1 // pred_region
      %4315 = dma.done [#allocation5], 32
    $region93: #{lstm_score_forward.1} parent=1 // pred_fallthru
      _
    %4316 = vsyncpa [#allocation4], 1
    %4317 = vsyncpa [#allocation5], 1

</llo_original>
